<compile_context>
chip_gen: v7x
topology: tpu7x:2x2x1
jax: 0.10.0
libtpu: 0.0.40
codegen_flags: <defaults>
</compile_context>

<pallas_src>
import math

import jax
import jax.numpy as jnp
from jax import lax
from jax.experimental import pallas as pl
from jax.experimental.pallas import tpu as pltpu

_SQRT2 = math.sqrt(2.0)
_LN_EPS = 1e-5  # PyTorch nn.LayerNorm default eps


def _sab_kernel(xt_ref, wdw_ref, bdw_ref, gamma_ref, beta_ref,
                w1_ref, b1_ref, w2_ref, b2_ref, o_ref):
    """One (batch, H-tile) slab per grid step.

    xt_ref : (1, TH+6, W+6, C)  padded input slab (3-row/col halo each side)
    wdw    : (7, 7, C) depthwise weights ; bdw / gamma / beta : (1, C)
    w1     : (C, 4*Cout) [bf16] ; b1 : (1, 4*Cout) [f32]
    w2     : (4*Cout, Cout) [bf16] ; b2 : (1, Cout) [f32]
    o_ref  : (1, TH, W, C)
    """
    _, TH, W, C = o_ref.shape

    xp = xt_ref[0]                      # (TH+6, W+6, C)  f32
    wdw = wdw_ref[...]                  # (7, 7, C)

    # ---- depthwise 7x7 conv (padding=3, groups=C) --------------------------
    # Build each width-shifted view once (one sublane shift per dw), reuse it
    # for all 7 height taps (leading-dim slices are just offsets).
    acc = jnp.zeros((TH, W, C), jnp.float32)
    for dw in range(7):
        xw = xp[:, dw:dw + W, :]        # (TH+6, W, C)
        for dh in range(7):
            acc = acc + xw[dh:dh + TH] * wdw[dh:dh + 1, dw:dw + 1]
    acc = acc + bdw_ref[...]

    # ---- LayerNorm over channels (f32, biased variance, eps inside rsqrt) ---
    y = acc.reshape(TH * W, C)
    mean = jnp.mean(y, axis=-1, keepdims=True)
    var = jnp.mean(jnp.square(y - mean), axis=-1, keepdims=True)
    yn = (y - mean) * lax.rsqrt(var + _LN_EPS)
    yn = yn * gamma_ref[...] + beta_ref[...]

    # ---- pwconv1 (C -> 4*Cout) + exact GELU (erf, matches nn.GELU default) --
    h = jnp.dot(yn.astype(w1_ref.dtype), w1_ref[...],
                preferred_element_type=jnp.float32) + b1_ref[...]
    h = 0.5 * h * (1.0 + lax.erf(h / _SQRT2))

    # ---- pwconv2 (4*Cout -> Cout) -------------------------------------------
    z = jnp.dot(h.astype(w2_ref.dtype), w2_ref[...],
                preferred_element_type=jnp.float32) + b2_ref[...]

    # ---- residual add: interior of the padded slab is the original input ----
    res = xp[3:3 + TH, 3:3 + W, :]
    o_ref[0] = (res + z.reshape(TH, W, C)).astype(o_ref.dtype)
    # TODO(synk): for C < 128 a lane-dense (TH, W*C) output slab would avoid
    # masked partial stores; skipped here to keep the Mosaic reshape lowering
    # on the safe, well-supported path.


def spatial_aware_block(x_nchw, params, *, tile_h=8, mxu_dtype=jnp.bfloat16):
    """x_nchw: (N, C, H, W) float32. Returns (N, C, H, W) float32."""
    x = jnp.transpose(x_nchw, (0, 2, 3, 1)).astype(jnp.float32)   # NHWC
    N, H, W, C = x.shape

    th = max(1, min(int(tile_h), H))
    h_pad = (-H) % th
    n_th = (H + h_pad) // th

    # Pad by 3 (conv halo) and cut overlapping row slabs of th+6 rows so plain
    # Blocked BlockSpecs (auto double-buffered) can feed the kernel.
    xpad = jnp.pad(x, ((0, 0), (3, 3 + h_pad), (3, 3), (0, 0)))
    xt = jnp.stack([xpad[:, t * th: t * th + th + 6] for t in range(n_th)],
                   axis=1)                               # (N, n_th, th+6, W+6, C)
    xt = xt.reshape(N * n_th, th + 6, W + 6, C)
    # TODO(synk): the NCHW<->NHWC permutes and this pad/halo materialisation are
    # extra HBM passes; they could be fused into the kernel with element-indexed
    # manual DMAs at the cost of a hand-rolled pipeline.

    # Parameter layout conversion (glue, plain JAX):
    wdw = jnp.transpose(params["dw_w"][:, 0], (1, 2, 0)).astype(jnp.float32)  # (7,7,C)
    bdw = params["dw_b"].reshape(1, C).astype(jnp.float32)
    gamma = params["ln_w"].reshape(1, C).astype(jnp.float32)
    beta = params["ln_b"].reshape(1, C).astype(jnp.float32)
    w1t = params["w1"].T.astype(mxu_dtype)               # (C, 4*Cout)  MXU operand
    b1 = params["b1"].reshape(1, -1).astype(jnp.float32)
    w2t = params["w2"].T.astype(mxu_dtype)               # (4*Cout, Cout)
    b2 = params["b2"].reshape(1, -1).astype(jnp.float32)
    hid = w1t.shape[1]
    cout = w2t.shape[1]
    assert cout == C, "residual add requires out_channel == in_channel"

    out = pl.pallas_call(
        _sab_kernel,
        grid=(N * n_th,),
        in_specs=[
            pl.BlockSpec((1, th + 6, W + 6, C), lambda g: (g, 0, 0, 0)),
            pl.BlockSpec((7, 7, C), lambda g: (0, 0, 0)),
            pl.BlockSpec((1, C), lambda g: (0, 0)),
            pl.BlockSpec((1, C), lambda g: (0, 0)),
            pl.BlockSpec((1, C), lambda g: (0, 0)),
            pl.BlockSpec((C, hid), lambda g: (0, 0)),
            pl.BlockSpec((1, hid), lambda g: (0, 0)),
            pl.BlockSpec((hid, cout), lambda g: (0, 0)),
            pl.BlockSpec((1, cout), lambda g: (0, 0)),
        ],
        out_specs=pl.BlockSpec((1, th, W, C), lambda g: (g, 0, 0, 0)),
        out_shape=jax.ShapeDtypeStruct((N * n_th, th, W, C), jnp.float32),
        compiler_params=pltpu.CompilerParams(
            dimension_semantics=("parallel",),        # megacore sharding on v7x
            vmem_limit_bytes=48 * 1024 * 1024,        # headroom under v7x 64 MiB
        ),
    )(xt, wdw, bdw, gamma, beta, w1t, b1, w2t, b2)

    out = out.reshape(N, n_th * th, W, C)[:, :H]
    return jnp.transpose(out, (0, 3, 1, 2))              # -> NCHW


def _reference(x_nchw, params, mxu_dtype=jnp.float32):
    """Pure-JAX reference of the PyTorch forward.

    mxu_dtype=float32   -> exact PyTorch semantics.
    mxu_dtype=bfloat16  -> mirrors the kernel's bf16 MXU operands (f32 accum).
    """
    x = jnp.transpose(x_nchw, (0, 2, 3, 1)).astype(jnp.float32)
    N, H, W, C = x.shape
    xpad = jnp.pad(x, ((0, 0), (3, 3), (3, 3), (0, 0)))
    wdw = jnp.transpose(params["dw_w"][:, 0], (1, 2, 0))           # (7,7,C)
    acc = jnp.zeros_like(x)
    for dw in range(7):
        for dh in range(7):
            acc = acc + xpad[:, dh:dh + H, dw:dw + W, :] * wdw[dh, dw]
    acc = acc + params["dw_b"]
    mean = jnp.mean(acc, axis=-1, keepdims=True)
    var = jnp.mean((acc - mean) ** 2, axis=-1, keepdims=True)
    yn = (acc - mean) / jnp.sqrt(var + _LN_EPS)
    yn = yn * params["ln_w"] + params["ln_b"]
    w1t = params["w1"].T.astype(mxu_dtype)
    w2t = params["w2"].T.astype(mxu_dtype)
    h = jnp.dot(yn.reshape(N * H * W, C).astype(mxu_dtype), w1t,
                preferred_element_type=jnp.float32) + params["b1"]
    h = 0.5 * h * (1.0 + lax.erf(h / _SQRT2))
    z = jnp.dot(h.astype(mxu_dtype), w2t,
                preferred_element_type=jnp.float32) + params["b2"]
    z = z.reshape(N, H, W, -1)
    return x_nchw + jnp.transpose(z, (0, 3, 1, 2))


def _make_params(key, in_ch, out_ch):
    ks = jax.random.split(key, 8)
    f32 = jnp.float32
    return {
        "dw_w": 0.1 * jax.random.normal(ks[0], (in_ch, 1, 7, 7), f32),
        "dw_b": 0.1 * jax.random.normal(ks[1], (in_ch,), f32),
        "ln_w": 1.0 + 0.1 * jax.random.normal(ks[2], (in_ch,), f32),
        "ln_b": 0.1 * jax.random.normal(ks[3], (in_ch,), f32),
        "w1":   0.1 * jax.random.normal(ks[4], (4 * out_ch, in_ch), f32),
        "b1":   0.1 * jax.random.normal(ks[5], (4 * out_ch,), f32),
        "w2":   0.1 * jax.random.normal(ks[6], (out_ch, 4 * out_ch), f32),
        "b2":   0.1 * jax.random.normal(ks[7], (out_ch,), f32),
    }


if __name__ == "__main__":
    key = jax.random.PRNGKey(0)
    kx, kp = jax.random.split(key)

    N, C, H, W = 2, 8, 16, 16          # in_channel == out_channel (residual add)
    x = jax.random.normal(kx, (N, C, H, W), jnp.float32)
    params = _make_params(kp, C, C)

    out = jax.block_until_ready(spatial_aware_block(x, params, tile_h=8))
    assert out.shape == (N, C, H, W)

    # Tight check against a reference that mirrors the kernel's bf16 MXU inputs.
    ref_mxu = jax.block_until_ready(_reference(x, params, jnp.bfloat16))
    assert jnp.allclose(out, ref_mxu, atol=5e-3, rtol=5e-3), \
        "mismatch vs bf16-MXU reference"

    # Looser check against exact f32 PyTorch semantics (bf16 matmul rounding).
    ref_f32 = jax.block_until_ready(_reference(x, params, jnp.float32))
    assert jnp.allclose(out, ref_f32, atol=2e-2, rtol=2e-2), \
        "mismatch vs f32 (PyTorch) reference"

    print("KERNEL_OK")
</pallas_src>

<mosaic_0001>
module attributes {stable_mosaic.version = 11 : i64} {
  func.func @_sab_kernel(%arg0: i32, %arg1: memref<1x14x22x8xf32, #tpu.memory_space<vmem>>, %arg2: memref<7x7x8xf32, #tpu.memory_space<vmem>>, %arg3: memref<1x8xf32, #tpu.memory_space<vmem>>, %arg4: memref<1x8xf32, #tpu.memory_space<vmem>>, %arg5: memref<1x8xf32, #tpu.memory_space<vmem>>, %arg6: memref<8x32xbf16, #tpu.memory_space<vmem>>, %arg7: memref<1x32xf32, #tpu.memory_space<vmem>>, %arg8: memref<32x8xbf16, #tpu.memory_space<vmem>>, %arg9: memref<1x8xf32, #tpu.memory_space<vmem>>, %arg10: memref<1x8x16x8xf32, #tpu.memory_space<vmem>>) attributes {dimension_semantics = [#tpu.dimension_semantics<parallel>], iteration_bounds = array<i64: 4>, scalar_prefetch = 0 : i64, scratch_operands = 0 : i64, tpu.core_type = #tpu.core_type<tc>, window_params = [{transform_indices = @transform_0, window_bounds = array<i64: 1, 14, 22, 8>}, {pipeline_mode = #tpu.pipeline_mode<synchronous>, transform_indices = @transform_1, window_bounds = array<i64: 7, 7, 8>}, {pipeline_mode = #tpu.pipeline_mode<synchronous>, transform_indices = @transform_2, window_bounds = array<i64: 1, 8>}, {pipeline_mode = #tpu.pipeline_mode<synchronous>, transform_indices = @transform_3, window_bounds = array<i64: 1, 8>}, {pipeline_mode = #tpu.pipeline_mode<synchronous>, transform_indices = @transform_4, window_bounds = array<i64: 1, 8>}, {pipeline_mode = #tpu.pipeline_mode<synchronous>, transform_indices = @transform_5, window_bounds = array<i64: 8, 32>}, {pipeline_mode = #tpu.pipeline_mode<synchronous>, transform_indices = @transform_6, window_bounds = array<i64: 1, 32>}, {pipeline_mode = #tpu.pipeline_mode<synchronous>, transform_indices = @transform_7, window_bounds = array<i64: 32, 8>}, {pipeline_mode = #tpu.pipeline_mode<synchronous>, transform_indices = @transform_8, window_bounds = array<i64: 1, 8>}, {transform_indices = @transform_9, window_bounds = array<i64: 1, 8, 16, 8>}]} {
    %c0 = arith.constant 0 : index
    %c0_0 = arith.constant 0 : index
    %c0_1 = arith.constant 0 : index
    %c0_2 = arith.constant 0 : index
    %0 = vector.load %arg1[%c0, %c0_0, %c0_1, %c0_2] : memref<1x14x22x8xf32, #tpu.memory_space<vmem>>, vector<1x14x22x8xf32>
    %1 = vector.shape_cast %0 : vector<1x14x22x8xf32> to vector<14x22x8xf32>
    %c0_3 = arith.constant 0 : index
    %c0_4 = arith.constant 0 : index
    %c0_5 = arith.constant 0 : index
    %2 = vector.load %arg2[%c0_3, %c0_4, %c0_5] : memref<7x7x8xf32, #tpu.memory_space<vmem>>, vector<7x7x8xf32>
    %cst = arith.constant 0.000000e+00 : f32
    %3 = vector.broadcast %cst : f32 to vector<8x16x8xf32>
    %4 = vector.extract_strided_slice %1 {offsets = [0, 0, 0], sizes = [14, 16, 8], strides = [1, 1, 1]} : vector<14x22x8xf32> to vector<14x16x8xf32>
    %5 = vector.extract_strided_slice %4 {offsets = [0, 0, 0], sizes = [8, 16, 8], strides = [1, 1, 1]} : vector<14x16x8xf32> to vector<8x16x8xf32>
    %6 = vector.extract_strided_slice %2 {offsets = [0, 0, 0], sizes = [1, 1, 8], strides = [1, 1, 1]} : vector<7x7x8xf32> to vector<1x1x8xf32>
    %7 = vector.broadcast %6 : vector<1x1x8xf32> to vector<8x16x8xf32>
    %8 = arith.mulf %5, %7 : vector<8x16x8xf32>
    %9 = arith.addf %3, %8 : vector<8x16x8xf32>
    %10 = vector.extract_strided_slice %4 {offsets = [1, 0, 0], sizes = [8, 16, 8], strides = [1, 1, 1]} : vector<14x16x8xf32> to vector<8x16x8xf32>
    %11 = vector.extract_strided_slice %2 {offsets = [1, 0, 0], sizes = [1, 1, 8], strides = [1, 1, 1]} : vector<7x7x8xf32> to vector<1x1x8xf32>
    %12 = vector.broadcast %11 : vector<1x1x8xf32> to vector<8x16x8xf32>
    %13 = arith.mulf %10, %12 : vector<8x16x8xf32>
    %14 = arith.addf %9, %13 : vector<8x16x8xf32>
    %15 = vector.extract_strided_slice %4 {offsets = [2, 0, 0], sizes = [8, 16, 8], strides = [1, 1, 1]} : vector<14x16x8xf32> to vector<8x16x8xf32>
    %16 = vector.extract_strided_slice %2 {offsets = [2, 0, 0], sizes = [1, 1, 8], strides = [1, 1, 1]} : vector<7x7x8xf32> to vector<1x1x8xf32>
    %17 = vector.broadcast %16 : vector<1x1x8xf32> to vector<8x16x8xf32>
    %18 = arith.mulf %15, %17 : vector<8x16x8xf32>
    %19 = arith.addf %14, %18 : vector<8x16x8xf32>
    %20 = vector.extract_strided_slice %4 {offsets = [3, 0, 0], sizes = [8, 16, 8], strides = [1, 1, 1]} : vector<14x16x8xf32> to vector<8x16x8xf32>
    %21 = vector.extract_strided_slice %2 {offsets = [3, 0, 0], sizes = [1, 1, 8], strides = [1, 1, 1]} : vector<7x7x8xf32> to vector<1x1x8xf32>
    %22 = vector.broadcast %21 : vector<1x1x8xf32> to vector<8x16x8xf32>
    %23 = arith.mulf %20, %22 : vector<8x16x8xf32>
    %24 = arith.addf %19, %23 : vector<8x16x8xf32>
    %25 = vector.extract_strided_slice %4 {offsets = [4, 0, 0], sizes = [8, 16, 8], strides = [1, 1, 1]} : vector<14x16x8xf32> to vector<8x16x8xf32>
    %26 = vector.extract_strided_slice %2 {offsets = [4, 0, 0], sizes = [1, 1, 8], strides = [1, 1, 1]} : vector<7x7x8xf32> to vector<1x1x8xf32>
    %27 = vector.broadcast %26 : vector<1x1x8xf32> to vector<8x16x8xf32>
    %28 = arith.mulf %25, %27 : vector<8x16x8xf32>
    %29 = arith.addf %24, %28 : vector<8x16x8xf32>
    %30 = vector.extract_strided_slice %4 {offsets = [5, 0, 0], sizes = [8, 16, 8], strides = [1, 1, 1]} : vector<14x16x8xf32> to vector<8x16x8xf32>
    %31 = vector.extract_strided_slice %2 {offsets = [5, 0, 0], sizes = [1, 1, 8], strides = [1, 1, 1]} : vector<7x7x8xf32> to vector<1x1x8xf32>
    %32 = vector.broadcast %31 : vector<1x1x8xf32> to vector<8x16x8xf32>
    %33 = arith.mulf %30, %32 : vector<8x16x8xf32>
    %34 = arith.addf %29, %33 : vector<8x16x8xf32>
    %35 = vector.extract_strided_slice %4 {offsets = [6, 0, 0], sizes = [8, 16, 8], strides = [1, 1, 1]} : vector<14x16x8xf32> to vector<8x16x8xf32>
    %36 = vector.extract_strided_slice %2 {offsets = [6, 0, 0], sizes = [1, 1, 8], strides = [1, 1, 1]} : vector<7x7x8xf32> to vector<1x1x8xf32>
    %37 = vector.broadcast %36 : vector<1x1x8xf32> to vector<8x16x8xf32>
    %38 = arith.mulf %35, %37 : vector<8x16x8xf32>
    %39 = arith.addf %34, %38 : vector<8x16x8xf32>
    %40 = vector.extract_strided_slice %1 {offsets = [0, 1, 0], sizes = [14, 16, 8], strides = [1, 1, 1]} : vector<14x22x8xf32> to vector<14x16x8xf32>
    %41 = vector.extract_strided_slice %40 {offsets = [0, 0, 0], sizes = [8, 16, 8], strides = [1, 1, 1]} : vector<14x16x8xf32> to vector<8x16x8xf32>
    %42 = vector.extract_strided_slice %2 {offsets = [0, 1, 0], sizes = [1, 1, 8], strides = [1, 1, 1]} : vector<7x7x8xf32> to vector<1x1x8xf32>
    %43 = vector.broadcast %42 : vector<1x1x8xf32> to vector<8x16x8xf32>
    %44 = arith.mulf %41, %43 : vector<8x16x8xf32>
    %45 = arith.addf %39, %44 : vector<8x16x8xf32>
    %46 = vector.extract_strided_slice %40 {offsets = [1, 0, 0], sizes = [8, 16, 8], strides = [1, 1, 1]} : vector<14x16x8xf32> to vector<8x16x8xf32>
    %47 = vector.extract_strided_slice %2 {offsets = [1, 1, 0], sizes = [1, 1, 8], strides = [1, 1, 1]} : vector<7x7x8xf32> to vector<1x1x8xf32>
    %48 = vector.broadcast %47 : vector<1x1x8xf32> to vector<8x16x8xf32>
    %49 = arith.mulf %46, %48 : vector<8x16x8xf32>
    %50 = arith.addf %45, %49 : vector<8x16x8xf32>
    %51 = vector.extract_strided_slice %40 {offsets = [2, 0, 0], sizes = [8, 16, 8], strides = [1, 1, 1]} : vector<14x16x8xf32> to vector<8x16x8xf32>
    %52 = vector.extract_strided_slice %2 {offsets = [2, 1, 0], sizes = [1, 1, 8], strides = [1, 1, 1]} : vector<7x7x8xf32> to vector<1x1x8xf32>
    %53 = vector.broadcast %52 : vector<1x1x8xf32> to vector<8x16x8xf32>
    %54 = arith.mulf %51, %53 : vector<8x16x8xf32>
    %55 = arith.addf %50, %54 : vector<8x16x8xf32>
    %56 = vector.extract_strided_slice %40 {offsets = [3, 0, 0], sizes = [8, 16, 8], strides = [1, 1, 1]} : vector<14x16x8xf32> to vector<8x16x8xf32>
    %57 = vector.extract_strided_slice %2 {offsets = [3, 1, 0], sizes = [1, 1, 8], strides = [1, 1, 1]} : vector<7x7x8xf32> to vector<1x1x8xf32>
    %58 = vector.broadcast %57 : vector<1x1x8xf32> to vector<8x16x8xf32>
    %59 = arith.mulf %56, %58 : vector<8x16x8xf32>
    %60 = arith.addf %55, %59 : vector<8x16x8xf32>
    %61 = vector.extract_strided_slice %40 {offsets = [4, 0, 0], sizes = [8, 16, 8], strides = [1, 1, 1]} : vector<14x16x8xf32> to vector<8x16x8xf32>
    %62 = vector.extract_strided_slice %2 {offsets = [4, 1, 0], sizes = [1, 1, 8], strides = [1, 1, 1]} : vector<7x7x8xf32> to vector<1x1x8xf32>
    %63 = vector.broadcast %62 : vector<1x1x8xf32> to vector<8x16x8xf32>
    %64 = arith.mulf %61, %63 : vector<8x16x8xf32>
    %65 = arith.addf %60, %64 : vector<8x16x8xf32>
    %66 = vector.extract_strided_slice %40 {offsets = [5, 0, 0], sizes = [8, 16, 8], strides = [1, 1, 1]} : vector<14x16x8xf32> to vector<8x16x8xf32>
    %67 = vector.extract_strided_slice %2 {offsets = [5, 1, 0], sizes = [1, 1, 8], strides = [1, 1, 1]} : vector<7x7x8xf32> to vector<1x1x8xf32>
    %68 = vector.broadcast %67 : vector<1x1x8xf32> to vector<8x16x8xf32>
    %69 = arith.mulf %66, %68 : vector<8x16x8xf32>
    %70 = arith.addf %65, %69 : vector<8x16x8xf32>
    %71 = vector.extract_strided_slice %40 {offsets = [6, 0, 0], sizes = [8, 16, 8], strides = [1, 1, 1]} : vector<14x16x8xf32> to vector<8x16x8xf32>
    %72 = vector.extract_strided_slice %2 {offsets = [6, 1, 0], sizes = [1, 1, 8], strides = [1, 1, 1]} : vector<7x7x8xf32> to vector<1x1x8xf32>
    %73 = vector.broadcast %72 : vector<1x1x8xf32> to vector<8x16x8xf32>
    %74 = arith.mulf %71, %73 : vector<8x16x8xf32>
    %75 = arith.addf %70, %74 : vector<8x16x8xf32>
    %76 = vector.extract_strided_slice %1 {offsets = [0, 2, 0], sizes = [14, 16, 8], strides = [1, 1, 1]} : vector<14x22x8xf32> to vector<14x16x8xf32>
    %77 = vector.extract_strided_slice %76 {offsets = [0, 0, 0], sizes = [8, 16, 8], strides = [1, 1, 1]} : vector<14x16x8xf32> to vector<8x16x8xf32>
    %78 = vector.extract_strided_slice %2 {offsets = [0, 2, 0], sizes = [1, 1, 8], strides = [1, 1, 1]} : vector<7x7x8xf32> to vector<1x1x8xf32>
    %79 = vector.broadcast %78 : vector<1x1x8xf32> to vector<8x16x8xf32>
    %80 = arith.mulf %77, %79 : vector<8x16x8xf32>
    %81 = arith.addf %75, %80 : vector<8x16x8xf32>
    %82 = vector.extract_strided_slice %76 {offsets = [1, 0, 0], sizes = [8, 16, 8], strides = [1, 1, 1]} : vector<14x16x8xf32> to vector<8x16x8xf32>
    %83 = vector.extract_strided_slice %2 {offsets = [1, 2, 0], sizes = [1, 1, 8], strides = [1, 1, 1]} : vector<7x7x8xf32> to vector<1x1x8xf32>
    %84 = vector.broadcast %83 : vector<1x1x8xf32> to vector<8x16x8xf32>
    %85 = arith.mulf %82, %84 : vector<8x16x8xf32>
    %86 = arith.addf %81, %85 : vector<8x16x8xf32>
    %87 = vector.extract_strided_slice %76 {offsets = [2, 0, 0], sizes = [8, 16, 8], strides = [1, 1, 1]} : vector<14x16x8xf32> to vector<8x16x8xf32>
    %88 = vector.extract_strided_slice %2 {offsets = [2, 2, 0], sizes = [1, 1, 8], strides = [1, 1, 1]} : vector<7x7x8xf32> to vector<1x1x8xf32>
    %89 = vector.broadcast %88 : vector<1x1x8xf32> to vector<8x16x8xf32>
    %90 = arith.mulf %87, %89 : vector<8x16x8xf32>
    %91 = arith.addf %86, %90 : vector<8x16x8xf32>
    %92 = vector.extract_strided_slice %76 {offsets = [3, 0, 0], sizes = [8, 16, 8], strides = [1, 1, 1]} : vector<14x16x8xf32> to vector<8x16x8xf32>
    %93 = vector.extract_strided_slice %2 {offsets = [3, 2, 0], sizes = [1, 1, 8], strides = [1, 1, 1]} : vector<7x7x8xf32> to vector<1x1x8xf32>
    %94 = vector.broadcast %93 : vector<1x1x8xf32> to vector<8x16x8xf32>
    %95 = arith.mulf %92, %94 : vector<8x16x8xf32>
    %96 = arith.addf %91, %95 : vector<8x16x8xf32>
    %97 = vector.extract_strided_slice %76 {offsets = [4, 0, 0], sizes = [8, 16, 8], strides = [1, 1, 1]} : vector<14x16x8xf32> to vector<8x16x8xf32>
    %98 = vector.extract_strided_slice %2 {offsets = [4, 2, 0], sizes = [1, 1, 8], strides = [1, 1, 1]} : vector<7x7x8xf32> to vector<1x1x8xf32>
    %99 = vector.broadcast %98 : vector<1x1x8xf32> to vector<8x16x8xf32>
    %100 = arith.mulf %97, %99 : vector<8x16x8xf32>
    %101 = arith.addf %96, %100 : vector<8x16x8xf32>
    %102 = vector.extract_strided_slice %76 {offsets = [5, 0, 0], sizes = [8, 16, 8], strides = [1, 1, 1]} : vector<14x16x8xf32> to vector<8x16x8xf32>
    %103 = vector.extract_strided_slice %2 {offsets = [5, 2, 0], sizes = [1, 1, 8], strides = [1, 1, 1]} : vector<7x7x8xf32> to vector<1x1x8xf32>
    %104 = vector.broadcast %103 : vector<1x1x8xf32> to vector<8x16x8xf32>
    %105 = arith.mulf %102, %104 : vector<8x16x8xf32>
    %106 = arith.addf %101, %105 : vector<8x16x8xf32>
    %107 = vector.extract_strided_slice %76 {offsets = [6, 0, 0], sizes = [8, 16, 8], strides = [1, 1, 1]} : vector<14x16x8xf32> to vector<8x16x8xf32>
    %108 = vector.extract_strided_slice %2 {offsets = [6, 2, 0], sizes = [1, 1, 8], strides = [1, 1, 1]} : vector<7x7x8xf32> to vector<1x1x8xf32>
    %109 = vector.broadcast %108 : vector<1x1x8xf32> to vector<8x16x8xf32>
    %110 = arith.mulf %107, %109 : vector<8x16x8xf32>
    %111 = arith.addf %106, %110 : vector<8x16x8xf32>
    %112 = vector.extract_strided_slice %1 {offsets = [0, 3, 0], sizes = [14, 16, 8], strides = [1, 1, 1]} : vector<14x22x8xf32> to vector<14x16x8xf32>
    %113 = vector.extract_strided_slice %112 {offsets = [0, 0, 0], sizes = [8, 16, 8], strides = [1, 1, 1]} : vector<14x16x8xf32> to vector<8x16x8xf32>
    %114 = vector.extract_strided_slice %2 {offsets = [0, 3, 0], sizes = [1, 1, 8], strides = [1, 1, 1]} : vector<7x7x8xf32> to vector<1x1x8xf32>
    %115 = vector.broadcast %114 : vector<1x1x8xf32> to vector<8x16x8xf32>
    %116 = arith.mulf %113, %115 : vector<8x16x8xf32>
    %117 = arith.addf %111, %116 : vector<8x16x8xf32>
    %118 = vector.extract_strided_slice %112 {offsets = [1, 0, 0], sizes = [8, 16, 8], strides = [1, 1, 1]} : vector<14x16x8xf32> to vector<8x16x8xf32>
    %119 = vector.extract_strided_slice %2 {offsets = [1, 3, 0], sizes = [1, 1, 8], strides = [1, 1, 1]} : vector<7x7x8xf32> to vector<1x1x8xf32>
    %120 = vector.broadcast %119 : vector<1x1x8xf32> to vector<8x16x8xf32>
    %121 = arith.mulf %118, %120 : vector<8x16x8xf32>
    %122 = arith.addf %117, %121 : vector<8x16x8xf32>
    %123 = vector.extract_strided_slice %112 {offsets = [2, 0, 0], sizes = [8, 16, 8], strides = [1, 1, 1]} : vector<14x16x8xf32> to vector<8x16x8xf32>
    %124 = vector.extract_strided_slice %2 {offsets = [2, 3, 0], sizes = [1, 1, 8], strides = [1, 1, 1]} : vector<7x7x8xf32> to vector<1x1x8xf32>
    %125 = vector.broadcast %124 : vector<1x1x8xf32> to vector<8x16x8xf32>
    %126 = arith.mulf %123, %125 : vector<8x16x8xf32>
    %127 = arith.addf %122, %126 : vector<8x16x8xf32>
    %128 = vector.extract_strided_slice %112 {offsets = [3, 0, 0], sizes = [8, 16, 8], strides = [1, 1, 1]} : vector<14x16x8xf32> to vector<8x16x8xf32>
    %129 = vector.extract_strided_slice %2 {offsets = [3, 3, 0], sizes = [1, 1, 8], strides = [1, 1, 1]} : vector<7x7x8xf32> to vector<1x1x8xf32>
    %130 = vector.broadcast %129 : vector<1x1x8xf32> to vector<8x16x8xf32>
    %131 = arith.mulf %128, %130 : vector<8x16x8xf32>
    %132 = arith.addf %127, %131 : vector<8x16x8xf32>
    %133 = vector.extract_strided_slice %112 {offsets = [4, 0, 0], sizes = [8, 16, 8], strides = [1, 1, 1]} : vector<14x16x8xf32> to vector<8x16x8xf32>
    %134 = vector.extract_strided_slice %2 {offsets = [4, 3, 0], sizes = [1, 1, 8], strides = [1, 1, 1]} : vector<7x7x8xf32> to vector<1x1x8xf32>
    %135 = vector.broadcast %134 : vector<1x1x8xf32> to vector<8x16x8xf32>
    %136 = arith.mulf %133, %135 : vector<8x16x8xf32>
    %137 = arith.addf %132, %136 : vector<8x16x8xf32>
    %138 = vector.extract_strided_slice %112 {offsets = [5, 0, 0], sizes = [8, 16, 8], strides = [1, 1, 1]} : vector<14x16x8xf32> to vector<8x16x8xf32>
    %139 = vector.extract_strided_slice %2 {offsets = [5, 3, 0], sizes = [1, 1, 8], strides = [1, 1, 1]} : vector<7x7x8xf32> to vector<1x1x8xf32>
    %140 = vector.broadcast %139 : vector<1x1x8xf32> to vector<8x16x8xf32>
    %141 = arith.mulf %138, %140 : vector<8x16x8xf32>
    %142 = arith.addf %137, %141 : vector<8x16x8xf32>
    %143 = vector.extract_strided_slice %112 {offsets = [6, 0, 0], sizes = [8, 16, 8], strides = [1, 1, 1]} : vector<14x16x8xf32> to vector<8x16x8xf32>
    %144 = vector.extract_strided_slice %2 {offsets = [6, 3, 0], sizes = [1, 1, 8], strides = [1, 1, 1]} : vector<7x7x8xf32> to vector<1x1x8xf32>
    %145 = vector.broadcast %144 : vector<1x1x8xf32> to vector<8x16x8xf32>
    %146 = arith.mulf %143, %145 : vector<8x16x8xf32>
    %147 = arith.addf %142, %146 : vector<8x16x8xf32>
    %148 = vector.extract_strided_slice %1 {offsets = [0, 4, 0], sizes = [14, 16, 8], strides = [1, 1, 1]} : vector<14x22x8xf32> to vector<14x16x8xf32>
    %149 = vector.extract_strided_slice %148 {offsets = [0, 0, 0], sizes = [8, 16, 8], strides = [1, 1, 1]} : vector<14x16x8xf32> to vector<8x16x8xf32>
    %150 = vector.extract_strided_slice %2 {offsets = [0, 4, 0], sizes = [1, 1, 8], strides = [1, 1, 1]} : vector<7x7x8xf32> to vector<1x1x8xf32>
    %151 = vector.broadcast %150 : vector<1x1x8xf32> to vector<8x16x8xf32>
    %152 = arith.mulf %149, %151 : vector<8x16x8xf32>
    %153 = arith.addf %147, %152 : vector<8x16x8xf32>
    %154 = vector.extract_strided_slice %148 {offsets = [1, 0, 0], sizes = [8, 16, 8], strides = [1, 1, 1]} : vector<14x16x8xf32> to vector<8x16x8xf32>
    %155 = vector.extract_strided_slice %2 {offsets = [1, 4, 0], sizes = [1, 1, 8], strides = [1, 1, 1]} : vector<7x7x8xf32> to vector<1x1x8xf32>
    %156 = vector.broadcast %155 : vector<1x1x8xf32> to vector<8x16x8xf32>
    %157 = arith.mulf %154, %156 : vector<8x16x8xf32>
    %158 = arith.addf %153, %157 : vector<8x16x8xf32>
    %159 = vector.extract_strided_slice %148 {offsets = [2, 0, 0], sizes = [8, 16, 8], strides = [1, 1, 1]} : vector<14x16x8xf32> to vector<8x16x8xf32>
    %160 = vector.extract_strided_slice %2 {offsets = [2, 4, 0], sizes = [1, 1, 8], strides = [1, 1, 1]} : vector<7x7x8xf32> to vector<1x1x8xf32>
    %161 = vector.broadcast %160 : vector<1x1x8xf32> to vector<8x16x8xf32>
    %162 = arith.mulf %159, %161 : vector<8x16x8xf32>
    %163 = arith.addf %158, %162 : vector<8x16x8xf32>
    %164 = vector.extract_strided_slice %148 {offsets = [3, 0, 0], sizes = [8, 16, 8], strides = [1, 1, 1]} : vector<14x16x8xf32> to vector<8x16x8xf32>
    %165 = vector.extract_strided_slice %2 {offsets = [3, 4, 0], sizes = [1, 1, 8], strides = [1, 1, 1]} : vector<7x7x8xf32> to vector<1x1x8xf32>
    %166 = vector.broadcast %165 : vector<1x1x8xf32> to vector<8x16x8xf32>
    %167 = arith.mulf %164, %166 : vector<8x16x8xf32>
    %168 = arith.addf %163, %167 : vector<8x16x8xf32>
    %169 = vector.extract_strided_slice %148 {offsets = [4, 0, 0], sizes = [8, 16, 8], strides = [1, 1, 1]} : vector<14x16x8xf32> to vector<8x16x8xf32>
    %170 = vector.extract_strided_slice %2 {offsets = [4, 4, 0], sizes = [1, 1, 8], strides = [1, 1, 1]} : vector<7x7x8xf32> to vector<1x1x8xf32>
    %171 = vector.broadcast %170 : vector<1x1x8xf32> to vector<8x16x8xf32>
    %172 = arith.mulf %169, %171 : vector<8x16x8xf32>
    %173 = arith.addf %168, %172 : vector<8x16x8xf32>
    %174 = vector.extract_strided_slice %148 {offsets = [5, 0, 0], sizes = [8, 16, 8], strides = [1, 1, 1]} : vector<14x16x8xf32> to vector<8x16x8xf32>
    %175 = vector.extract_strided_slice %2 {offsets = [5, 4, 0], sizes = [1, 1, 8], strides = [1, 1, 1]} : vector<7x7x8xf32> to vector<1x1x8xf32>
    %176 = vector.broadcast %175 : vector<1x1x8xf32> to vector<8x16x8xf32>
    %177 = arith.mulf %174, %176 : vector<8x16x8xf32>
    %178 = arith.addf %173, %177 : vector<8x16x8xf32>
    %179 = vector.extract_strided_slice %148 {offsets = [6, 0, 0], sizes = [8, 16, 8], strides = [1, 1, 1]} : vector<14x16x8xf32> to vector<8x16x8xf32>
    %180 = vector.extract_strided_slice %2 {offsets = [6, 4, 0], sizes = [1, 1, 8], strides = [1, 1, 1]} : vector<7x7x8xf32> to vector<1x1x8xf32>
    %181 = vector.broadcast %180 : vector<1x1x8xf32> to vector<8x16x8xf32>
    %182 = arith.mulf %179, %181 : vector<8x16x8xf32>
    %183 = arith.addf %178, %182 : vector<8x16x8xf32>
    %184 = vector.extract_strided_slice %1 {offsets = [0, 5, 0], sizes = [14, 16, 8], strides = [1, 1, 1]} : vector<14x22x8xf32> to vector<14x16x8xf32>
    %185 = vector.extract_strided_slice %184 {offsets = [0, 0, 0], sizes = [8, 16, 8], strides = [1, 1, 1]} : vector<14x16x8xf32> to vector<8x16x8xf32>
    %186 = vector.extract_strided_slice %2 {offsets = [0, 5, 0], sizes = [1, 1, 8], strides = [1, 1, 1]} : vector<7x7x8xf32> to vector<1x1x8xf32>
    %187 = vector.broadcast %186 : vector<1x1x8xf32> to vector<8x16x8xf32>
    %188 = arith.mulf %185, %187 : vector<8x16x8xf32>
    %189 = arith.addf %183, %188 : vector<8x16x8xf32>
    %190 = vector.extract_strided_slice %184 {offsets = [1, 0, 0], sizes = [8, 16, 8], strides = [1, 1, 1]} : vector<14x16x8xf32> to vector<8x16x8xf32>
    %191 = vector.extract_strided_slice %2 {offsets = [1, 5, 0], sizes = [1, 1, 8], strides = [1, 1, 1]} : vector<7x7x8xf32> to vector<1x1x8xf32>
    %192 = vector.broadcast %191 : vector<1x1x8xf32> to vector<8x16x8xf32>
    %193 = arith.mulf %190, %192 : vector<8x16x8xf32>
    %194 = arith.addf %189, %193 : vector<8x16x8xf32>
    %195 = vector.extract_strided_slice %184 {offsets = [2, 0, 0], sizes = [8, 16, 8], strides = [1, 1, 1]} : vector<14x16x8xf32> to vector<8x16x8xf32>
    %196 = vector.extract_strided_slice %2 {offsets = [2, 5, 0], sizes = [1, 1, 8], strides = [1, 1, 1]} : vector<7x7x8xf32> to vector<1x1x8xf32>
    %197 = vector.broadcast %196 : vector<1x1x8xf32> to vector<8x16x8xf32>
    %198 = arith.mulf %195, %197 : vector<8x16x8xf32>
    %199 = arith.addf %194, %198 : vector<8x16x8xf32>
    %200 = vector.extract_strided_slice %184 {offsets = [3, 0, 0], sizes = [8, 16, 8], strides = [1, 1, 1]} : vector<14x16x8xf32> to vector<8x16x8xf32>
    %201 = vector.extract_strided_slice %2 {offsets = [3, 5, 0], sizes = [1, 1, 8], strides = [1, 1, 1]} : vector<7x7x8xf32> to vector<1x1x8xf32>
    %202 = vector.broadcast %201 : vector<1x1x8xf32> to vector<8x16x8xf32>
    %203 = arith.mulf %200, %202 : vector<8x16x8xf32>
    %204 = arith.addf %199, %203 : vector<8x16x8xf32>
    %205 = vector.extract_strided_slice %184 {offsets = [4, 0, 0], sizes = [8, 16, 8], strides = [1, 1, 1]} : vector<14x16x8xf32> to vector<8x16x8xf32>
    %206 = vector.extract_strided_slice %2 {offsets = [4, 5, 0], sizes = [1, 1, 8], strides = [1, 1, 1]} : vector<7x7x8xf32> to vector<1x1x8xf32>
    %207 = vector.broadcast %206 : vector<1x1x8xf32> to vector<8x16x8xf32>
    %208 = arith.mulf %205, %207 : vector<8x16x8xf32>
    %209 = arith.addf %204, %208 : vector<8x16x8xf32>
    %210 = vector.extract_strided_slice %184 {offsets = [5, 0, 0], sizes = [8, 16, 8], strides = [1, 1, 1]} : vector<14x16x8xf32> to vector<8x16x8xf32>
    %211 = vector.extract_strided_slice %2 {offsets = [5, 5, 0], sizes = [1, 1, 8], strides = [1, 1, 1]} : vector<7x7x8xf32> to vector<1x1x8xf32>
    %212 = vector.broadcast %211 : vector<1x1x8xf32> to vector<8x16x8xf32>
    %213 = arith.mulf %210, %212 : vector<8x16x8xf32>
    %214 = arith.addf %209, %213 : vector<8x16x8xf32>
    %215 = vector.extract_strided_slice %184 {offsets = [6, 0, 0], sizes = [8, 16, 8], strides = [1, 1, 1]} : vector<14x16x8xf32> to vector<8x16x8xf32>
    %216 = vector.extract_strided_slice %2 {offsets = [6, 5, 0], sizes = [1, 1, 8], strides = [1, 1, 1]} : vector<7x7x8xf32> to vector<1x1x8xf32>
    %217 = vector.broadcast %216 : vector<1x1x8xf32> to vector<8x16x8xf32>
    %218 = arith.mulf %215, %217 : vector<8x16x8xf32>
    %219 = arith.addf %214, %218 : vector<8x16x8xf32>
    %220 = vector.extract_strided_slice %1 {offsets = [0, 6, 0], sizes = [14, 16, 8], strides = [1, 1, 1]} : vector<14x22x8xf32> to vector<14x16x8xf32>
    %221 = vector.extract_strided_slice %220 {offsets = [0, 0, 0], sizes = [8, 16, 8], strides = [1, 1, 1]} : vector<14x16x8xf32> to vector<8x16x8xf32>
    %222 = vector.extract_strided_slice %2 {offsets = [0, 6, 0], sizes = [1, 1, 8], strides = [1, 1, 1]} : vector<7x7x8xf32> to vector<1x1x8xf32>
    %223 = vector.broadcast %222 : vector<1x1x8xf32> to vector<8x16x8xf32>
    %224 = arith.mulf %221, %223 : vector<8x16x8xf32>
    %225 = arith.addf %219, %224 : vector<8x16x8xf32>
    %226 = vector.extract_strided_slice %220 {offsets = [1, 0, 0], sizes = [8, 16, 8], strides = [1, 1, 1]} : vector<14x16x8xf32> to vector<8x16x8xf32>
    %227 = vector.extract_strided_slice %2 {offsets = [1, 6, 0], sizes = [1, 1, 8], strides = [1, 1, 1]} : vector<7x7x8xf32> to vector<1x1x8xf32>
    %228 = vector.broadcast %227 : vector<1x1x8xf32> to vector<8x16x8xf32>
    %229 = arith.mulf %226, %228 : vector<8x16x8xf32>
    %230 = arith.addf %225, %229 : vector<8x16x8xf32>
    %231 = vector.extract_strided_slice %220 {offsets = [2, 0, 0], sizes = [8, 16, 8], strides = [1, 1, 1]} : vector<14x16x8xf32> to vector<8x16x8xf32>
    %232 = vector.extract_strided_slice %2 {offsets = [2, 6, 0], sizes = [1, 1, 8], strides = [1, 1, 1]} : vector<7x7x8xf32> to vector<1x1x8xf32>
    %233 = vector.broadcast %232 : vector<1x1x8xf32> to vector<8x16x8xf32>
    %234 = arith.mulf %231, %233 : vector<8x16x8xf32>
    %235 = arith.addf %230, %234 : vector<8x16x8xf32>
    %236 = vector.extract_strided_slice %220 {offsets = [3, 0, 0], sizes = [8, 16, 8], strides = [1, 1, 1]} : vector<14x16x8xf32> to vector<8x16x8xf32>
    %237 = vector.extract_strided_slice %2 {offsets = [3, 6, 0], sizes = [1, 1, 8], strides = [1, 1, 1]} : vector<7x7x8xf32> to vector<1x1x8xf32>
    %238 = vector.broadcast %237 : vector<1x1x8xf32> to vector<8x16x8xf32>
    %239 = arith.mulf %236, %238 : vector<8x16x8xf32>
    %240 = arith.addf %235, %239 : vector<8x16x8xf32>
    %241 = vector.extract_strided_slice %220 {offsets = [4, 0, 0], sizes = [8, 16, 8], strides = [1, 1, 1]} : vector<14x16x8xf32> to vector<8x16x8xf32>
    %242 = vector.extract_strided_slice %2 {offsets = [4, 6, 0], sizes = [1, 1, 8], strides = [1, 1, 1]} : vector<7x7x8xf32> to vector<1x1x8xf32>
    %243 = vector.broadcast %242 : vector<1x1x8xf32> to vector<8x16x8xf32>
    %244 = arith.mulf %241, %243 : vector<8x16x8xf32>
    %245 = arith.addf %240, %244 : vector<8x16x8xf32>
    %246 = vector.extract_strided_slice %220 {offsets = [5, 0, 0], sizes = [8, 16, 8], strides = [1, 1, 1]} : vector<14x16x8xf32> to vector<8x16x8xf32>
    %247 = vector.extract_strided_slice %2 {offsets = [5, 6, 0], sizes = [1, 1, 8], strides = [1, 1, 1]} : vector<7x7x8xf32> to vector<1x1x8xf32>
    %248 = vector.broadcast %247 : vector<1x1x8xf32> to vector<8x16x8xf32>
    %249 = arith.mulf %246, %248 : vector<8x16x8xf32>
    %250 = arith.addf %245, %249 : vector<8x16x8xf32>
    %251 = vector.extract_strided_slice %220 {offsets = [6, 0, 0], sizes = [8, 16, 8], strides = [1, 1, 1]} : vector<14x16x8xf32> to vector<8x16x8xf32>
    %252 = vector.extract_strided_slice %2 {offsets = [6, 6, 0], sizes = [1, 1, 8], strides = [1, 1, 1]} : vector<7x7x8xf32> to vector<1x1x8xf32>
    %253 = vector.broadcast %252 : vector<1x1x8xf32> to vector<8x16x8xf32>
    %254 = arith.mulf %251, %253 : vector<8x16x8xf32>
    %255 = arith.addf %250, %254 : vector<8x16x8xf32>
    %c0_6 = arith.constant 0 : index
    %c0_7 = arith.constant 0 : index
    %256 = vector.load %arg3[%c0_6, %c0_7] : memref<1x8xf32, #tpu.memory_space<vmem>>, vector<1x8xf32>
    %257 = vector.shape_cast %256 : vector<1x8xf32> to vector<1x1x8xf32>
    %258 = vector.broadcast %257 : vector<1x1x8xf32> to vector<8x16x8xf32>
    %259 = arith.addf %255, %258 : vector<8x16x8xf32>
    %260 = vector.shape_cast %259 : vector<8x16x8xf32> to vector<128x8xf32>
    %cst_8 = arith.constant dense<0.000000e+00> : vector<128xf32>
    %261 = vector.multi_reduction <add>, %260, %cst_8 [1] : vector<128x8xf32> to vector<128xf32>
    %262 = vector.shape_cast %261 : vector<128xf32> to vector<128x1xf32>
    %cst_9 = arith.constant 8.000000e+00 : f32
    %263 = vector.broadcast %cst_9 : f32 to vector<128x1xf32>
    %264 = arith.divf %262, %263 : vector<128x1xf32>
    %265 = vector.broadcast %264 : vector<128x1xf32> to vector<128x8xf32>
    %266 = arith.subf %260, %265 : vector<128x8xf32>
    %267 = arith.mulf %266, %266 : vector<128x8xf32>
    %cst_10 = arith.constant dense<0.000000e+00> : vector<128xf32>
    %268 = vector.multi_reduction <add>, %267, %cst_10 [1] : vector<128x8xf32> to vector<128xf32>
    %269 = vector.shape_cast %268 : vector<128xf32> to vector<128x1xf32>
    %cst_11 = arith.constant 8.000000e+00 : f32
    %270 = vector.broadcast %cst_11 : f32 to vector<128x1xf32>
    %271 = arith.divf %269, %270 : vector<128x1xf32>
    %272 = vector.broadcast %264 : vector<128x1xf32> to vector<128x8xf32>
    %273 = arith.subf %260, %272 : vector<128x8xf32>
    %cst_12 = arith.constant 9.99999974E-6 : f32
    %274 = vector.broadcast %cst_12 : f32 to vector<128x1xf32>
    %275 = arith.addf %271, %274 : vector<128x1xf32>
    %276 = math.rsqrt %275 : vector<128x1xf32>
    %277 = vector.broadcast %276 : vector<128x1xf32> to vector<128x8xf32>
    %278 = arith.mulf %273, %277 : vector<128x8xf32>
    %c0_13 = arith.constant 0 : index
    %c0_14 = arith.constant 0 : index
    %279 = vector.load %arg4[%c0_13, %c0_14] : memref<1x8xf32, #tpu.memory_space<vmem>>, vector<1x8xf32>
    %280 = vector.broadcast %279 : vector<1x8xf32> to vector<128x8xf32>
    %281 = arith.mulf %278, %280 : vector<128x8xf32>
    %c0_15 = arith.constant 0 : index
    %c0_16 = arith.constant 0 : index
    %282 = vector.load %arg5[%c0_15, %c0_16] : memref<1x8xf32, #tpu.memory_space<vmem>>, vector<1x8xf32>
    %283 = vector.broadcast %282 : vector<1x8xf32> to vector<128x8xf32>
    %284 = arith.addf %281, %283 : vector<128x8xf32>
    %285 = arith.truncf %284 : vector<128x8xf32> to vector<128x8xbf16>
    %c0_17 = arith.constant 0 : index
    %c0_18 = arith.constant 0 : index
    %286 = vector.load %arg6[%c0_17, %c0_18] : memref<8x32xbf16, #tpu.memory_space<vmem>>, vector<8x32xbf16>
    %cst_19 = arith.constant dense<0.000000e+00> : vector<128x32xf32>
    %287 = tpu.matmul %285, %286, %cst_19 {dimension_numbers = #tpu.dot_dimension_numbers<[1], [0], [0], [1], [0, 0, 1, 1], [], []>} : vector<128x8xbf16>, vector<8x32xbf16>, vector<128x32xf32> -> vector<128x32xf32>
    %c0_20 = arith.constant 0 : index
    %c0_21 = arith.constant 0 : index
    %288 = vector.load %arg7[%c0_20, %c0_21] : memref<1x32xf32, #tpu.memory_space<vmem>>, vector<1x32xf32>
    %289 = vector.broadcast %288 : vector<1x32xf32> to vector<128x32xf32>
    %290 = arith.addf %287, %289 : vector<128x32xf32>
    %cst_22 = arith.constant 5.000000e-01 : f32
    %291 = vector.broadcast %cst_22 : f32 to vector<128x32xf32>
    %292 = arith.mulf %291, %290 : vector<128x32xf32>
    %cst_23 = arith.constant 1.41421354 : f32
    %293 = vector.broadcast %cst_23 : f32 to vector<128x32xf32>
    %294 = arith.divf %290, %293 : vector<128x32xf32>
    %295 = math.erf %294 : vector<128x32xf32>
    %cst_24 = arith.constant 1.000000e+00 : f32
    %296 = vector.broadcast %cst_24 : f32 to vector<128x32xf32>
    %297 = arith.addf %296, %295 : vector<128x32xf32>
    %298 = arith.mulf %292, %297 : vector<128x32xf32>
    %299 = arith.truncf %298 : vector<128x32xf32> to vector<128x32xbf16>
    %c0_25 = arith.constant 0 : index
    %c0_26 = arith.constant 0 : index
    %300 = vector.load %arg8[%c0_25, %c0_26] : memref<32x8xbf16, #tpu.memory_space<vmem>>, vector<32x8xbf16>
    %cst_27 = arith.constant dense<0.000000e+00> : vector<128x8xf32>
    %301 = tpu.matmul %299, %300, %cst_27 {dimension_numbers = #tpu.dot_dimension_numbers<[1], [0], [0], [1], [0, 0, 1, 1], [], []>} : vector<128x32xbf16>, vector<32x8xbf16>, vector<128x8xf32> -> vector<128x8xf32>
    %c0_28 = arith.constant 0 : index
    %c0_29 = arith.constant 0 : index
    %302 = vector.load %arg9[%c0_28, %c0_29] : memref<1x8xf32, #tpu.memory_space<vmem>>, vector<1x8xf32>
    %303 = vector.broadcast %302 : vector<1x8xf32> to vector<128x8xf32>
    %304 = arith.addf %301, %303 : vector<128x8xf32>
    %305 = vector.extract_strided_slice %1 {offsets = [3, 3, 0], sizes = [8, 16, 8], strides = [1, 1, 1]} : vector<14x22x8xf32> to vector<8x16x8xf32>
    %306 = vector.shape_cast %304 : vector<128x8xf32> to vector<8x16x8xf32>
    %307 = arith.addf %305, %306 : vector<8x16x8xf32>
    %c0_30 = arith.constant 0 : index
    %c0_31 = arith.constant 0 : index
    %c0_32 = arith.constant 0 : index
    %c0_33 = arith.constant 0 : index
    %308 = vector.load %arg10[%c0_30, %c0_31, %c0_32, %c0_33] : memref<1x8x16x8xf32, #tpu.memory_space<vmem>>, vector<1x8x16x8xf32>
    %309 = vector.shape_cast %308 : vector<1x8x16x8xf32> to vector<8x16x8xf32>
    %310 = vector.shape_cast %307 : vector<8x16x8xf32> to vector<1x8x16x8xf32>
    tpu.vector_store %arg10[%c0_30, %c0_31, %c0_32, %c0_33], %310 {strides = array<i32>} : memref<1x8x16x8xf32, #tpu.memory_space<vmem>>, vector<1x8x16x8xf32>,
    return
  }
  func.func @transform_0(%arg0: i32) -> (i32, i32, i32, i32) {
    %c0_i32 = arith.constant 0 : i32
    %c0_i32_0 = arith.constant 0 : i32
    %c0_i32_1 = arith.constant 0 : i32
    %c0_i32_2 = arith.constant 0 : i32
    return %arg0, %c0_i32, %c0_i32_0, %c0_i32_1 : i32, i32, i32, i32
  }
  func.func @transform_1(%arg0: i32) -> (i32, i32, i32) {
    %c0_i32 = arith.constant 0 : i32
    %c0_i32_0 = arith.constant 0 : i32
    %c0_i32_1 = arith.constant 0 : i32
    %c0_i32_2 = arith.constant 0 : i32
    return %c0_i32, %c0_i32_0, %c0_i32_1 : i32, i32, i32
  }
  func.func @transform_2(%arg0: i32) -> (i32, i32) {
    %c0_i32 = arith.constant 0 : i32
    %c0_i32_0 = arith.constant 0 : i32
    %c0_i32_1 = arith.constant 0 : i32
    return %c0_i32, %c0_i32_0 : i32, i32
  }
  func.func @transform_3(%arg0: i32) -> (i32, i32) {
    %c0_i32 = arith.constant 0 : i32
    %c0_i32_0 = arith.constant 0 : i32
    %c0_i32_1 = arith.constant 0 : i32
    return %c0_i32, %c0_i32_0 : i32, i32
  }
  func.func @transform_4(%arg0: i32) -> (i32, i32) {
    %c0_i32 = arith.constant 0 : i32
    %c0_i32_0 = arith.constant 0 : i32
    %c0_i32_1 = arith.constant 0 : i32
    return %c0_i32, %c0_i32_0 : i32, i32
  }
  func.func @transform_5(%arg0: i32) -> (i32, i32) {
    %c0_i32 = arith.constant 0 : i32
    %c0_i32_0 = arith.constant 0 : i32
    %c0_i32_1 = arith.constant 0 : i32
    return %c0_i32, %c0_i32_0 : i32, i32
  }
  func.func @transform_6(%arg0: i32) -> (i32, i32) {
    %c0_i32 = arith.constant 0 : i32
    %c0_i32_0 = arith.constant 0 : i32
    %c0_i32_1 = arith.constant 0 : i32
    return %c0_i32, %c0_i32_0 : i32, i32
  }
  func.func @transform_7(%arg0: i32) -> (i32, i32) {
    %c0_i32 = arith.constant 0 : i32
    %c0_i32_0 = arith.constant 0 : i32
    %c0_i32_1 = arith.constant 0 : i32
    return %c0_i32, %c0_i32_0 : i32, i32
  }
  func.func @transform_8(%arg0: i32) -> (i32, i32) {
    %c0_i32 = arith.constant 0 : i32
    %c0_i32_0 = arith.constant 0 : i32
    %c0_i32_1 = arith.constant 0 : i32
    return %c0_i32, %c0_i32_0 : i32, i32
  }
  func.func @transform_9(%arg0: i32) -> (i32, i32, i32, i32) {
    %c0_i32 = arith.constant 0 : i32
    %c0_i32_0 = arith.constant 0 : i32
    %c0_i32_1 = arith.constant 0 : i32
    %c0_i32_2 = arith.constant 0 : i32
    return %arg0, %c0_i32, %c0_i32_0, %c0_i32_1 : i32, i32, i32, i32
  }
}

</mosaic_0001>

<llo_original>
// kernel: tpu_custom_call.1
$region0: #{tpu_custom_call.1}
  #allocation0 [shape = 'u32[]', space=smem, size = 0x4, offset = 0x4, fixed_abs, tag = 'smem constant byte address 0x4 - core index']
  #allocation1 [shape = 'u32[144,128]{1,0:T(1,128)}', space=vmem, size = 0x12000, scoped, tag = 'internal scratch']
  %s0 = inlined_call_operand.vmem [shape: f32[4,14,22,8], index: 0, kind: input, shape index: {}]
  %s1 = inlined_call_operand.vmem [shape: f32[7,7,8], index: 1, kind: input, shape index: {}]
  %s2 = inlined_call_operand.vmem [shape: f32[1,8], index: 2, kind: input, shape index: {}]
  %s3 = inlined_call_operand.vmem [shape: f32[1,8], index: 3, kind: input, shape index: {}]
  %s4 = inlined_call_operand.vmem [shape: f32[1,8], index: 4, kind: input, shape index: {}]
  %s5 = inlined_call_operand.vmem [shape: bf16[8,32], index: 5, kind: input, shape index: {}]
  %s6 = inlined_call_operand.vmem [shape: f32[1,32], index: 6, kind: input, shape index: {}]
  %s7 = inlined_call_operand.vmem [shape: bf16[32,8], index: 7, kind: input, shape index: {}]
  %s8 = inlined_call_operand.vmem [shape: f32[1,8], index: 8, kind: input, shape index: {}]
  %s9 = inlined_call_operand.vmem [shape: f32[4,8,16,8], index: 9, kind: output, shape index: {}]
  %s10 = sld [smem:[#allocation0]]
  $region69: #{tpu_custom_call.1} parent=0
    _
  %s12 = ssub.s32 1, %s10
  %s13 = scalar_select 0, %s12, %s10
  loop: start=0, step=1, limit=6
  $region2: #{tpu_custom_call.1} parent=0 // loop_pre_header
    _
  $region3: #{tpu_custom_call.1} parent=0 // loop_header
    %s15 = sphi 0, %s19
    %p16 = scmp.ge.s32.totalorder %s15, 6
    %s25 = sphi 0, %s27
    %s28 = sphi 0, %s25
    %s29 = sphi 0, %s28
    %s45 = sphi 0, %s29
    %s49 = sphi 0, %s49
    %s51 = sphi 0, %s49
    %s52 = sphi 0, %s51
    %s66 = sphi 0, %s52
    %s70 = sphi 0, %s70
    %s72 = sphi 0, %s70
    %s73 = sphi 0, %s72
    %s87 = sphi 0, %s73
    %s91 = sphi 0, %s91
    %s93 = sphi 0, %s91
    %s94 = sphi 0, %s93
    %s108 = sphi 0, %s94
    %s112 = sphi 0, %s112
    %s114 = sphi 0, %s112
    %s115 = sphi 0, %s114
    %s129 = sphi 0, %s115
    %s133 = sphi 0, %s133
    %s135 = sphi 0, %s133
    %s136 = sphi 0, %s135
    %s150 = sphi 0, %s136
    %s154 = sphi 0, %s154
    %s156 = sphi 0, %s154
    %s157 = sphi 0, %s156
    %s171 = sphi 0, %s157
    %s175 = sphi 0, %s175
    %s177 = sphi 0, %s175
    %s178 = sphi 0, %s177
    %s192 = sphi 0, %s178
    %s196 = sphi 0, %s196
    %s198 = sphi 0, %s196
    %s199 = sphi 0, %s198
    %s213 = sphi 0, %s199
    %s219 = sphi 0, %s221
    %s222 = sphi 0, %s219
    %s223 = sphi 0, %s222
    %s239 = sphi 0, %s223
  $region4: #{tpu_custom_call.1} parent=0 // loop_header_branch
    %18 = sbr.rel (%p16) target = $region8
  $region5: #{tpu_custom_call.1} parent=0 // loop_body
    %s20 = ssub.s32 %s15, 1
    %s21 = ssub.s32 %s15, 2
    %s22 = sadd.s32 %s15, 1
    %s23 = ssub.s32 %s15, %s22
    %p24 = scmp.eq.s32.totalorder %s23, 0
    %s26 = sadd.s32 %s25, 1
    %s27 = scalar_select %p24, %s25, %s26
    %p30 = pneg %p24
    %p31 = scmp.eq.s32.totalorder %s15, 3
    %p32 = por %p30, %p31
    %p33 = scmp.ne.s32.totalorder %s25, %s28
    %p34 = scmp.eq.s32.totalorder %s15, 0
    %p35 = por %p33, %p34
    %p36 = scmp.ne.s32.totalorder %s25, %s28
    %p37 = scmp.eq.s32.totalorder %s20, 3
    %p38 = por %p36, %p37
    %p39 = scmp.ne.s32.totalorder %s28, %s29
    %p40 = scmp.eq.s32.totalorder %s20, 0
    %p41 = por %p39, %p40
    %p42 = scmp.ne.s32.totalorder %s28, %s29
    %p43 = scmp.eq.s32.totalorder %s21, 3
    %p44 = por %p42, %p43
    %p46 = scmp.ne.s32.totalorder %s29, %s45
    %p47 = scmp.eq.s32.totalorder %s21, 0
    %p48 = por %p46, %p47
    %s50 = sadd.s32 %s49, 1
    %p53 = scmp.eq.s32.totalorder %s15, 3
    %p54 = scmp.ne.s32.totalorder %s49, %s51
    %p55 = scmp.eq.s32.totalorder %s15, 0
    %p56 = por %p54, %p55
    %p57 = scmp.ne.s32.totalorder %s49, %s51
    %p58 = scmp.eq.s32.totalorder %s20, 3
    %p59 = por %p57, %p58
    %p60 = scmp.ne.s32.totalorder %s51, %s52
    %p61 = scmp.eq.s32.totalorder %s20, 0
    %p62 = por %p60, %p61
    %p63 = scmp.ne.s32.totalorder %s51, %s52
    %p64 = scmp.eq.s32.totalorder %s21, 3
    %p65 = por %p63, %p64
    %p67 = scmp.ne.s32.totalorder %s52, %s66
    %p68 = scmp.eq.s32.totalorder %s21, 0
    %p69 = por %p67, %p68
    %s71 = sadd.s32 %s70, 1
    %p74 = scmp.eq.s32.totalorder %s15, 3
    %p75 = scmp.ne.s32.totalorder %s70, %s72
    %p76 = scmp.eq.s32.totalorder %s15, 0
    %p77 = por %p75, %p76
    %p78 = scmp.ne.s32.totalorder %s70, %s72
    %p79 = scmp.eq.s32.totalorder %s20, 3
    %p80 = por %p78, %p79
    %p81 = scmp.ne.s32.totalorder %s72, %s73
    %p82 = scmp.eq.s32.totalorder %s20, 0
    %p83 = por %p81, %p82
    %p84 = scmp.ne.s32.totalorder %s72, %s73
    %p85 = scmp.eq.s32.totalorder %s21, 3
    %p86 = por %p84, %p85
    %p88 = scmp.ne.s32.totalorder %s73, %s87
    %p89 = scmp.eq.s32.totalorder %s21, 0
    %p90 = por %p88, %p89
    %s92 = sadd.s32 %s91, 1
    %p95 = scmp.eq.s32.totalorder %s15, 3
    %p96 = scmp.ne.s32.totalorder %s91, %s93
    %p97 = scmp.eq.s32.totalorder %s15, 0
    %p98 = por %p96, %p97
    %p99 = scmp.ne.s32.totalorder %s91, %s93
    %p100 = scmp.eq.s32.totalorder %s20, 3
    %p101 = por %p99, %p100
    %p102 = scmp.ne.s32.totalorder %s93, %s94
    %p103 = scmp.eq.s32.totalorder %s20, 0
    %p104 = por %p102, %p103
    %p105 = scmp.ne.s32.totalorder %s93, %s94
    %p106 = scmp.eq.s32.totalorder %s21, 3
    %p107 = por %p105, %p106
    %p109 = scmp.ne.s32.totalorder %s94, %s108
    %p110 = scmp.eq.s32.totalorder %s21, 0
    %p111 = por %p109, %p110
    %s113 = sadd.s32 %s112, 1
    %p116 = scmp.eq.s32.totalorder %s15, 3
    %p117 = scmp.ne.s32.totalorder %s112, %s114
    %p118 = scmp.eq.s32.totalorder %s15, 0
    %p119 = por %p117, %p118
    %p120 = scmp.ne.s32.totalorder %s112, %s114
    %p121 = scmp.eq.s32.totalorder %s20, 3
    %p122 = por %p120, %p121
    %p123 = scmp.ne.s32.totalorder %s114, %s115
    %p124 = scmp.eq.s32.totalorder %s20, 0
    %p125 = por %p123, %p124
    %p126 = scmp.ne.s32.totalorder %s114, %s115
    %p127 = scmp.eq.s32.totalorder %s21, 3
    %p128 = por %p126, %p127
    %p130 = scmp.ne.s32.totalorder %s115, %s129
    %p131 = scmp.eq.s32.totalorder %s21, 0
    %p132 = por %p130, %p131
    %s134 = sadd.s32 %s133, 1
    %p137 = scmp.eq.s32.totalorder %s15, 3
    %p138 = scmp.ne.s32.totalorder %s133, %s135
    %p139 = scmp.eq.s32.totalorder %s15, 0
    %p140 = por %p138, %p139
    %p141 = scmp.ne.s32.totalorder %s133, %s135
    %p142 = scmp.eq.s32.totalorder %s20, 3
    %p143 = por %p141, %p142
    %p144 = scmp.ne.s32.totalorder %s135, %s136
    %p145 = scmp.eq.s32.totalorder %s20, 0
    %p146 = por %p144, %p145
    %p147 = scmp.ne.s32.totalorder %s135, %s136
    %p148 = scmp.eq.s32.totalorder %s21, 3
    %p149 = por %p147, %p148
    %p151 = scmp.ne.s32.totalorder %s136, %s150
    %p152 = scmp.eq.s32.totalorder %s21, 0
    %p153 = por %p151, %p152
    %s155 = sadd.s32 %s154, 1
    %p158 = scmp.eq.s32.totalorder %s15, 3
    %p159 = scmp.ne.s32.totalorder %s154, %s156
    %p160 = scmp.eq.s32.totalorder %s15, 0
    %p161 = por %p159, %p160
    %p162 = scmp.ne.s32.totalorder %s154, %s156
    %p163 = scmp.eq.s32.totalorder %s20, 3
    %p164 = por %p162, %p163
    %p165 = scmp.ne.s32.totalorder %s156, %s157
    %p166 = scmp.eq.s32.totalorder %s20, 0
    %p167 = por %p165, %p166
    %p168 = scmp.ne.s32.totalorder %s156, %s157
    %p169 = scmp.eq.s32.totalorder %s21, 3
    %p170 = por %p168, %p169
    %p172 = scmp.ne.s32.totalorder %s157, %s171
    %p173 = scmp.eq.s32.totalorder %s21, 0
    %p174 = por %p172, %p173
    %s176 = sadd.s32 %s175, 1
    %p179 = scmp.eq.s32.totalorder %s15, 3
    %p180 = scmp.ne.s32.totalorder %s175, %s177
    %p181 = scmp.eq.s32.totalorder %s15, 0
    %p182 = por %p180, %p181
    %p183 = scmp.ne.s32.totalorder %s175, %s177
    %p184 = scmp.eq.s32.totalorder %s20, 3
    %p185 = por %p183, %p184
    %p186 = scmp.ne.s32.totalorder %s177, %s178
    %p187 = scmp.eq.s32.totalorder %s20, 0
    %p188 = por %p186, %p187
    %p189 = scmp.ne.s32.totalorder %s177, %s178
    %p190 = scmp.eq.s32.totalorder %s21, 3
    %p191 = por %p189, %p190
    %p193 = scmp.ne.s32.totalorder %s178, %s192
    %p194 = scmp.eq.s32.totalorder %s21, 0
    %p195 = por %p193, %p194
    %s197 = sadd.s32 %s196, 1
    %p200 = scmp.eq.s32.totalorder %s15, 3
    %p201 = scmp.ne.s32.totalorder %s196, %s198
    %p202 = scmp.eq.s32.totalorder %s15, 0
    %p203 = por %p201, %p202
    %p204 = scmp.ne.s32.totalorder %s196, %s198
    %p205 = scmp.eq.s32.totalorder %s20, 3
    %p206 = por %p204, %p205
    %p207 = scmp.ne.s32.totalorder %s198, %s199
    %p208 = scmp.eq.s32.totalorder %s20, 0
    %p209 = por %p207, %p208
    %p210 = scmp.ne.s32.totalorder %s198, %s199
    %p211 = scmp.eq.s32.totalorder %s21, 3
    %p212 = por %p210, %p211
    %p214 = scmp.ne.s32.totalorder %s199, %s213
    %p215 = scmp.eq.s32.totalorder %s21, 0
    %p216 = por %p214, %p215
    %s217 = ssub.s32 %s15, %s22
    %p218 = scmp.eq.s32.totalorder %s217, 0
    %s220 = sadd.s32 %s219, 1
    %s221 = scalar_select %p218, %s219, %s220
    %p224 = pneg %p218
    %p225 = scmp.eq.s32.totalorder %s15, 3
    %p226 = por %p224, %p225
    %p227 = scmp.ne.s32.totalorder %s219, %s222
    %p228 = scmp.eq.s32.totalorder %s15, 0
    %p229 = por %p227, %p228
    %p230 = scmp.ne.s32.totalorder %s219, %s222
    %p231 = scmp.eq.s32.totalorder %s20, 3
    %p232 = por %p230, %p231
    %p233 = scmp.ne.s32.totalorder %s222, %s223
    %p234 = scmp.eq.s32.totalorder %s20, 0
    %p235 = por %p233, %p234
    %p236 = scmp.ne.s32.totalorder %s222, %s223
    %p237 = scmp.eq.s32.totalorder %s21, 3
    %p238 = por %p236, %p237
    %p240 = scmp.ne.s32.totalorder %s223, %s239
    %p241 = scmp.eq.s32.totalorder %s21, 0
    %p242 = por %p240, %p241
    %p243 = scmp.le.s32.totalorder 1, %s15
    %p244 = scmp.lt.s32.totalorder %s15, 5
    %p245 = pnand %p243, %p244
    %p246 = pneg %p245
    // Predicated region
    $region9: #{tpu_custom_call.1} parent=5 // pred_check
      _
    $region10: #{tpu_custom_call.1} parent=5 // pred_check_branch
      %248 = sbr.rel (%p245) target = $region12
    $region11: #{tpu_custom_call.1} parent=5 // pred_region
      %s249 = ssub.s32 %s15, 1
      // Predicated region
      $region13: #{tpu_custom_call.1} parent=11 // pred_check
        %p250 = pneg %p62
      $region14: #{tpu_custom_call.1} parent=11 // pred_check_branch
        %252 = sbr.rel (%p250) target = $region16
      $region15: #{tpu_custom_call.1} parent=11 // pred_region
        _
      $region16: #{tpu_custom_call.1} parent=11 // pred_fallthru
        _
      // Predicated region
      $region17: #{tpu_custom_call.1} parent=11 // pred_check
        %p253 = pneg %p83
      $region18: #{tpu_custom_call.1} parent=11 // pred_check_branch
        %255 = sbr.rel (%p253) target = $region20
      $region19: #{tpu_custom_call.1} parent=11 // pred_region
        _
      $region20: #{tpu_custom_call.1} parent=11 // pred_fallthru
        _
      // Predicated region
      $region21: #{tpu_custom_call.1} parent=11 // pred_check
        %p256 = pneg %p104
      $region22: #{tpu_custom_call.1} parent=11 // pred_check_branch
        %258 = sbr.rel (%p256) target = $region24
      $region23: #{tpu_custom_call.1} parent=11 // pred_region
        _
      $region24: #{tpu_custom_call.1} parent=11 // pred_fallthru
        _
      // Predicated region
      $region25: #{tpu_custom_call.1} parent=11 // pred_check
        %p259 = pneg %p125
      $region26: #{tpu_custom_call.1} parent=11 // pred_check_branch
        %261 = sbr.rel (%p259) target = $region28
      $region27: #{tpu_custom_call.1} parent=11 // pred_region
        _
      $region28: #{tpu_custom_call.1} parent=11 // pred_fallthru
        _
      // Predicated region
      $region29: #{tpu_custom_call.1} parent=11 // pred_check
        %p262 = pneg %p146
      $region30: #{tpu_custom_call.1} parent=11 // pred_check_branch
        %264 = sbr.rel (%p262) target = $region32
      $region31: #{tpu_custom_call.1} parent=11 // pred_region
        _
      $region32: #{tpu_custom_call.1} parent=11 // pred_fallthru
        _
      // Predicated region
      $region33: #{tpu_custom_call.1} parent=11 // pred_check
        %p265 = pneg %p167
      $region34: #{tpu_custom_call.1} parent=11 // pred_check_branch
        %267 = sbr.rel (%p265) target = $region36
      $region35: #{tpu_custom_call.1} parent=11 // pred_region
        _
      $region36: #{tpu_custom_call.1} parent=11 // pred_fallthru
        _
      // Predicated region
      $region37: #{tpu_custom_call.1} parent=11 // pred_check
        %p268 = pneg %p188
      $region38: #{tpu_custom_call.1} parent=11 // pred_check_branch
        %270 = sbr.rel (%p268) target = $region40
      $region39: #{tpu_custom_call.1} parent=11 // pred_region
        _
      $region40: #{tpu_custom_call.1} parent=11 // pred_fallthru
        _
      // Predicated region
      $region41: #{tpu_custom_call.1} parent=11 // pred_check
        %p271 = pneg %p209
      $region42: #{tpu_custom_call.1} parent=11 // pred_check_branch
        %273 = sbr.rel (%p271) target = $region44
      $region43: #{tpu_custom_call.1} parent=11 // pred_region
        _
      $region44: #{tpu_custom_call.1} parent=11 // pred_fallthru
        _
    $region12: #{tpu_custom_call.1} parent=5 // pred_fallthru
      _
    %p274 = scmp.lt.s32.totalorder %s15, 4
    // Predicated region
    $region45: #{tpu_custom_call.1} parent=5 // pred_check
      %p275 = pneg %p274
    $region46: #{tpu_custom_call.1} parent=5 // pred_check_branch
      %277 = sbr.rel (%p275) target = $region48
    $region47: #{tpu_custom_call.1} parent=5 // pred_region
      // Predicated region
      $region49: #{tpu_custom_call.1} parent=47 // pred_check
        %p278 = pneg %p35
      $region50: #{tpu_custom_call.1} parent=47 // pred_check_branch
        %280 = sbr.rel (%p278) target = $region52
      $region51: #{tpu_custom_call.1} parent=47 // pred_region
        %p281 = scmp.lt.s32.totalorder %s15, 3
        %s282 = scalar_select %p281, %s15, 3
        %s283 = smul.addr %s282, 42
        %s284 = smul.addr %s283, 8
        %s285 = scalar_lea.vmem %s0, %s284
      $region52: #{tpu_custom_call.1} parent=47 // pred_fallthru
        _
    $region48: #{tpu_custom_call.1} parent=5 // pred_fallthru
      _
    %p286 = scmp.le.s32.totalorder 1, %s15
    %p287 = scmp.lt.s32.totalorder %s15, 5
    %p288 = pnand %p286, %p287
    %p289 = pneg %p288
    // Predicated region
    $region53: #{tpu_custom_call.1} parent=5 // pred_check
      _
    $region54: #{tpu_custom_call.1} parent=5 // pred_check_branch
      %291 = sbr.rel (%p288) target = $region56
    $region55: #{tpu_custom_call.1} parent=5 // pred_region
      %s292 = ssub.s32 %s15, 1
      %p293 = scmp.lt.s32.totalorder %s20, 3
      %s294 = scalar_select %p293, %s20, 3
      %s295 = smul.addr %s294, 42
      %s296 = smul.addr %s295, 8
      %s297 = scalar_lea.vmem %s0, %s296
      %p298 = pneg %p41
      %p299 = pneg %p38
      %p300 = pneg %p62
      %p301 = pneg %p59
      %p302 = pneg %p83
      %p303 = pneg %p80
      %p304 = pneg %p104
      %p305 = pneg %p101
      %p306 = pneg %p125
      %p307 = pneg %p122
      %p308 = pneg %p146
      %p309 = pneg %p143
      %p310 = pneg %p167
      %p311 = pneg %p164
      %p312 = pneg %p188
      %p313 = pneg %p185
      %p314 = pneg %p209
      %p315 = pneg %p206
      %p316 = pneg %p235
      %p317 = pneg %p232
      %p318 = scmp.lt.s32.totalorder %s20, 3
      %s319 = scalar_select %p318, %s20, 3
      %s320 = smul.addr %s319, 16
      %s321 = smul.addr %s320, 8
      %s322 = scalar_lea.vmem %s9, %s321
      %p323 = scmp.lt.s32.totalorder %s20, 3
      %s324 = scalar_select %p323, %s20, 3
      %s325 = smul.addr %s324, 42
      %s326 = smul.addr %s325, 8
      %s327 = scalar_lea.vmem %s0, %s326
      %p328 = scmp.lt.s32.totalorder %s20, 3
      %s329 = scalar_select %p328, %s20, 3
      %s330 = smul.addr %s329, 16
      %s331 = smul.addr %s330, 8
      %s332 = scalar_lea.vmem %s9, %s331
      %v334 = vld [vmem:[%s327] sm:$0xff]
      %v335 = vld [vmem:[%s327 + $0x8] sm:$0xff]
      %v336 = vld [vmem:[%s327 + $0x10] sm:$0x3f]
      %v337 = vld [vmem:[%s327 + $0x18] sm:$0xff]
      %v338 = vld [vmem:[%s327 + $0x20] sm:$0xff]
      %v339 = vld [vmem:[%s327 + $0x28] sm:$0x3f]
      %v340 = vld [vmem:[%s327 + $0x30] sm:$0xff]
      %v341 = vld [vmem:[%s327 + $0x38] sm:$0xff]
      %v342 = vld [vmem:[%s327 + $0x40] sm:$0x3f]
      %v343 = vld [vmem:[%s327 + $0x48] sm:$0xff]
      %v344 = vld [vmem:[%s327 + $0x50] sm:$0xff]
      %v345 = vld [vmem:[%s327 + $0x58] sm:$0x3f]
      %v346 = vld [vmem:[%s327 + $0x60] sm:$0xff]
      %v347 = vld [vmem:[%s327 + $0x68] sm:$0xff]
      %v348 = vld [vmem:[%s327 + $0x70] sm:$0x3f]
      %v349 = vld [vmem:[%s327 + $0x78] sm:$0xff]
      %v350 = vld [vmem:[%s327 + $0x80] sm:$0xff]
      %v351 = vld [vmem:[%s327 + $0x88] sm:$0x3f]
      %v352 = vld [vmem:[%s327 + $0x90] sm:$0xff]
      %v353 = vld [vmem:[%s327 + $0x98] sm:$0xff]
      %v354 = vld [vmem:[%s327 + $0xa0] sm:$0x3f]
      %v355 = vld [vmem:[%s327 + $0xa8] sm:$0xff]
      %v356 = vld [vmem:[%s327 + $0xb0] sm:$0xff]
      %v357 = vld [vmem:[%s327 + $0xb8] sm:$0x3f]
      %v358 = vld [vmem:[%s327 + $0xc0] sm:$0xff]
      %v359 = vld [vmem:[%s327 + $0xc8] sm:$0xff]
      %v360 = vld [vmem:[%s327 + $0xd0] sm:$0x3f]
      %v361 = vld [vmem:[%s327 + $0xd8] sm:$0xff]
      %v362 = vld [vmem:[%s327 + $0xe0] sm:$0xff]
      %v363 = vld [vmem:[%s327 + $0xe8] sm:$0x3f]
      %v364 = vld [vmem:[%s327 + $0xf0] sm:$0xff]
      %v365 = vld [vmem:[%s327 + $0xf8] sm:$0xff]
      %v366 = vld [vmem:[%s327 + $0x100] sm:$0x3f]
      %v367 = vld [vmem:[%s327 + $0x108] sm:$0xff]
      %v368 = vld [vmem:[%s327 + $0x110] sm:$0xff]
      %v369 = vld [vmem:[%s327 + $0x118] sm:$0x3f]
      %v370 = vld [vmem:[%s327 + $0x120] sm:$0xff]
      %v371 = vld [vmem:[%s327 + $0x128] sm:$0xff]
      %v372 = vld [vmem:[%s327 + $0x130] sm:$0x3f]
      %v373 = vld [vmem:[%s327 + $0x138] sm:$0xff]
      %v374 = vld [vmem:[%s327 + $0x140] sm:$0xff]
      %v375 = vld [vmem:[%s327 + $0x148] sm:$0x3f]
      %v376 = vld [vmem:[%s1] sm:$0x7f]
      %v377 = vld [vmem:[%s1 + $0x8] sm:$0x7f]
      %v378 = vld [vmem:[%s1 + $0x10] sm:$0x7f]
      %v379 = vld [vmem:[%s1 + $0x18] sm:$0x7f]
      %v380 = vld [vmem:[%s1 + $0x20] sm:$0x7f]
      %v381 = vld [vmem:[%s1 + $0x28] sm:$0x7f]
      %v382 = vld [vmem:[%s1 + $0x30] sm:$0x7f]
      %v383 = vlaneseq
      %v384 = vshrl.u32 %v383, 7
      %v385 = vsub.s32 0, %v384
      %v386 = vrot.slane %v376, %v385
      %v387 = vmul.f32 %v334, %v386
      %v388 = vmul.f32 %v335, %v386
      %v389 = vmul.f32 %v337, %v386
      %v390 = vmul.f32 %v338, %v386
      %v391 = vmul.f32 %v340, %v386
      %v392 = vmul.f32 %v341, %v386
      %v393 = vmul.f32 %v343, %v386
      %v394 = vmul.f32 %v344, %v386
      %v395 = vmul.f32 %v346, %v386
      %v396 = vmul.f32 %v347, %v386
      %v397 = vmul.f32 %v349, %v386
      %v398 = vmul.f32 %v350, %v386
      %v399 = vmul.f32 %v352, %v386
      %v400 = vmul.f32 %v353, %v386
      %v401 = vmul.f32 %v355, %v386
      %v402 = vmul.f32 %v356, %v386
      %v403 = vadd.f32 %v387, 0.0
      %v404 = vadd.f32 %v388, 0.0
      %v405 = vadd.f32 %v389, 0.0
      %v406 = vadd.f32 %v390, 0.0
      %v407 = vadd.f32 %v391, 0.0
      %v408 = vadd.f32 %v392, 0.0
      %v409 = vadd.f32 %v393, 0.0
      %v410 = vadd.f32 %v394, 0.0
      %v411 = vadd.f32 %v395, 0.0
      %v412 = vadd.f32 %v396, 0.0
      %v413 = vadd.f32 %v397, 0.0
      %v414 = vadd.f32 %v398, 0.0
      %v415 = vadd.f32 %v399, 0.0
      %v416 = vadd.f32 %v400, 0.0
      %v417 = vadd.f32 %v401, 0.0
      %v418 = vadd.f32 %v402, 0.0
      %v419 = vlaneseq
      %v420 = vshrl.u32 %v419, 7
      %v421 = vsub.s32 0, %v420
      %v422 = vrot.slane %v377, %v421
      %v423 = vmul.f32 %v337, %v422
      %v424 = vmul.f32 %v338, %v422
      %v425 = vmul.f32 %v340, %v422
      %v426 = vmul.f32 %v341, %v422
      %v427 = vmul.f32 %v343, %v422
      %v428 = vmul.f32 %v344, %v422
      %v429 = vmul.f32 %v346, %v422
      %v430 = vmul.f32 %v347, %v422
      %v431 = vmul.f32 %v349, %v422
      %v432 = vmul.f32 %v350, %v422
      %v433 = vmul.f32 %v352, %v422
      %v434 = vmul.f32 %v353, %v422
      %v435 = vmul.f32 %v355, %v422
      %v436 = vmul.f32 %v356, %v422
      %v437 = vmul.f32 %v358, %v422
      %v438 = vmul.f32 %v359, %v422
      %v439 = vadd.f32 %v403, %v423
      %v440 = vadd.f32 %v404, %v424
      %v441 = vadd.f32 %v405, %v425
      %v442 = vadd.f32 %v406, %v426
      %v443 = vadd.f32 %v407, %v427
      %v444 = vadd.f32 %v408, %v428
      %v445 = vadd.f32 %v409, %v429
      %v446 = vadd.f32 %v410, %v430
      %v447 = vadd.f32 %v411, %v431
      %v448 = vadd.f32 %v412, %v432
      %v449 = vadd.f32 %v413, %v433
      %v450 = vadd.f32 %v414, %v434
      %v451 = vadd.f32 %v415, %v435
      %v452 = vadd.f32 %v416, %v436
      %v453 = vadd.f32 %v417, %v437
      %v454 = vadd.f32 %v418, %v438
      %v455 = vlaneseq
      %v456 = vshrl.u32 %v455, 7
      %v457 = vsub.s32 0, %v456
      %v458 = vrot.slane %v378, %v457
      %v459 = vmul.f32 %v340, %v458
      %v460 = vmul.f32 %v341, %v458
      %v461 = vmul.f32 %v343, %v458
      %v462 = vmul.f32 %v344, %v458
      %v463 = vmul.f32 %v346, %v458
      %v464 = vmul.f32 %v347, %v458
      %v465 = vmul.f32 %v349, %v458
      %v466 = vmul.f32 %v350, %v458
      %v467 = vmul.f32 %v352, %v458
      %v468 = vmul.f32 %v353, %v458
      %v469 = vmul.f32 %v355, %v458
      %v470 = vmul.f32 %v356, %v458
      %v471 = vmul.f32 %v358, %v458
      %v472 = vmul.f32 %v359, %v458
      %v473 = vmul.f32 %v361, %v458
      %v474 = vmul.f32 %v362, %v458
      %v475 = vadd.f32 %v439, %v459
      %v476 = vadd.f32 %v440, %v460
      %v477 = vadd.f32 %v441, %v461
      %v478 = vadd.f32 %v442, %v462
      %v479 = vadd.f32 %v443, %v463
      %v480 = vadd.f32 %v444, %v464
      %v481 = vadd.f32 %v445, %v465
      %v482 = vadd.f32 %v446, %v466
      %v483 = vadd.f32 %v447, %v467
      %v484 = vadd.f32 %v448, %v468
      %v485 = vadd.f32 %v449, %v469
      %v486 = vadd.f32 %v450, %v470
      %v487 = vadd.f32 %v451, %v471
      %v488 = vadd.f32 %v452, %v472
      %v489 = vadd.f32 %v453, %v473
      %v490 = vadd.f32 %v454, %v474
      %v491 = vlaneseq
      %v492 = vshrl.u32 %v491, 7
      %v493 = vsub.s32 0, %v492
      %v494 = vrot.slane %v379, %v493
      %v495 = vmul.f32 %v343, %v494
      %v496 = vmul.f32 %v344, %v494
      %v497 = vmul.f32 %v346, %v494
      %v498 = vmul.f32 %v347, %v494
      %v499 = vmul.f32 %v349, %v494
      %v500 = vmul.f32 %v350, %v494
      %v501 = vmul.f32 %v352, %v494
      %v502 = vmul.f32 %v353, %v494
      %v503 = vmul.f32 %v355, %v494
      %v504 = vmul.f32 %v356, %v494
      %v505 = vmul.f32 %v358, %v494
      %v506 = vmul.f32 %v359, %v494
      %v507 = vmul.f32 %v361, %v494
      %v508 = vmul.f32 %v362, %v494
      %v509 = vmul.f32 %v364, %v494
      %v510 = vmul.f32 %v365, %v494
      %v511 = vadd.f32 %v475, %v495
      %v512 = vadd.f32 %v476, %v496
      %v513 = vadd.f32 %v477, %v497
      %v514 = vadd.f32 %v478, %v498
      %v515 = vadd.f32 %v479, %v499
      %v516 = vadd.f32 %v480, %v500
      %v517 = vadd.f32 %v481, %v501
      %v518 = vadd.f32 %v482, %v502
      %v519 = vadd.f32 %v483, %v503
      %v520 = vadd.f32 %v484, %v504
      %v521 = vadd.f32 %v485, %v505
      %v522 = vadd.f32 %v486, %v506
      %v523 = vadd.f32 %v487, %v507
      %v524 = vadd.f32 %v488, %v508
      %v525 = vadd.f32 %v489, %v509
      %v526 = vadd.f32 %v490, %v510
      %v527 = vlaneseq
      %v528 = vshrl.u32 %v527, 7
      %v529 = vsub.s32 0, %v528
      %v530 = vrot.slane %v380, %v529
      %v531 = vmul.f32 %v346, %v530
      %v532 = vmul.f32 %v347, %v530
      %v533 = vmul.f32 %v349, %v530
      %v534 = vmul.f32 %v350, %v530
      %v535 = vmul.f32 %v352, %v530
      %v536 = vmul.f32 %v353, %v530
      %v537 = vmul.f32 %v355, %v530
      %v538 = vmul.f32 %v356, %v530
      %v539 = vmul.f32 %v358, %v530
      %v540 = vmul.f32 %v359, %v530
      %v541 = vmul.f32 %v361, %v530
      %v542 = vmul.f32 %v362, %v530
      %v543 = vmul.f32 %v364, %v530
      %v544 = vmul.f32 %v365, %v530
      %v545 = vmul.f32 %v367, %v530
      %v546 = vmul.f32 %v368, %v530
      %v547 = vadd.f32 %v511, %v531
      %v548 = vadd.f32 %v512, %v532
      %v549 = vadd.f32 %v513, %v533
      %v550 = vadd.f32 %v514, %v534
      %v551 = vadd.f32 %v515, %v535
      %v552 = vadd.f32 %v516, %v536
      %v553 = vadd.f32 %v517, %v537
      %v554 = vadd.f32 %v518, %v538
      %v555 = vadd.f32 %v519, %v539
      %v556 = vadd.f32 %v520, %v540
      %v557 = vadd.f32 %v521, %v541
      %v558 = vadd.f32 %v522, %v542
      %v559 = vadd.f32 %v523, %v543
      %v560 = vadd.f32 %v524, %v544
      %v561 = vadd.f32 %v525, %v545
      %v562 = vadd.f32 %v526, %v546
      %v563 = vlaneseq
      %v564 = vshrl.u32 %v563, 7
      %v565 = vsub.s32 0, %v564
      %v566 = vrot.slane %v381, %v565
      %v567 = vmul.f32 %v349, %v566
      %v568 = vmul.f32 %v350, %v566
      %v569 = vmul.f32 %v352, %v566
      %v570 = vmul.f32 %v353, %v566
      %v571 = vmul.f32 %v355, %v566
      %v572 = vmul.f32 %v356, %v566
      %v573 = vmul.f32 %v358, %v566
      %v574 = vmul.f32 %v359, %v566
      %v575 = vmul.f32 %v361, %v566
      %v576 = vmul.f32 %v362, %v566
      %v577 = vmul.f32 %v364, %v566
      %v578 = vmul.f32 %v365, %v566
      %v579 = vmul.f32 %v367, %v566
      %v580 = vmul.f32 %v368, %v566
      %v581 = vmul.f32 %v370, %v566
      %v582 = vmul.f32 %v371, %v566
      %v583 = vadd.f32 %v547, %v567
      %v584 = vadd.f32 %v548, %v568
      %v585 = vadd.f32 %v549, %v569
      %v586 = vadd.f32 %v550, %v570
      %v587 = vadd.f32 %v551, %v571
      %v588 = vadd.f32 %v552, %v572
      %v589 = vadd.f32 %v553, %v573
      %v590 = vadd.f32 %v554, %v574
      %v591 = vadd.f32 %v555, %v575
      %v592 = vadd.f32 %v556, %v576
      %v593 = vadd.f32 %v557, %v577
      %v594 = vadd.f32 %v558, %v578
      %v595 = vadd.f32 %v559, %v579
      %v596 = vadd.f32 %v560, %v580
      %v597 = vadd.f32 %v561, %v581
      %v598 = vadd.f32 %v562, %v582
      %v599 = vlaneseq
      %v600 = vshrl.u32 %v599, 7
      %v601 = vsub.s32 0, %v600
      %v602 = vrot.slane %v382, %v601
      %v603 = vmul.f32 %v352, %v602
      %v604 = vmul.f32 %v353, %v602
      %v605 = vmul.f32 %v355, %v602
      %v606 = vmul.f32 %v356, %v602
      %v607 = vmul.f32 %v358, %v602
      %v608 = vmul.f32 %v359, %v602
      %v609 = vmul.f32 %v361, %v602
      %v610 = vmul.f32 %v362, %v602
      %v611 = vmul.f32 %v364, %v602
      %v612 = vmul.f32 %v365, %v602
      %v613 = vmul.f32 %v367, %v602
      %v614 = vmul.f32 %v368, %v602
      %v615 = vmul.f32 %v370, %v602
      %v616 = vmul.f32 %v371, %v602
      %v617 = vmul.f32 %v373, %v602
      %v618 = vmul.f32 %v374, %v602
      %v619 = vadd.f32 %v583, %v603
      %v620 = vadd.f32 %v584, %v604
      %v621 = vadd.f32 %v585, %v605
      %v622 = vadd.f32 %v586, %v606
      %v623 = vadd.f32 %v587, %v607
      %v624 = vadd.f32 %v588, %v608
      %v625 = vadd.f32 %v589, %v609
      %v626 = vadd.f32 %v590, %v610
      %v627 = vadd.f32 %v591, %v611
      %v628 = vadd.f32 %v592, %v612
      %v629 = vadd.f32 %v593, %v613
      %v630 = vadd.f32 %v594, %v614
      %v631 = vadd.f32 %v595, %v615
      %v632 = vadd.f32 %v596, %v616
      %v633 = vadd.f32 %v597, %v617
      %v634 = vadd.f32 %v598, %v618
      %v635 = vlaneseq
      %v636 = vshrl.u32 %v635, 7
      %v637 = vsub.s32 1, %v636
      %v638 = vrot.slane %v376, %v637
      %v639 = vmul.f32 %v334, %v638
      %v640 = vmul.f32 %v335, %v638
      %v641 = vmul.f32 %v336, %v638
      %v642 = vmul.f32 %v337, %v638
      %v643 = vmul.f32 %v338, %v638
      %v644 = vmul.f32 %v339, %v638
      %v645 = vmul.f32 %v340, %v638
      %v646 = vmul.f32 %v341, %v638
      %v647 = vmul.f32 %v342, %v638
      %v648 = vmul.f32 %v343, %v638
      %v649 = vmul.f32 %v344, %v638
      %v650 = vmul.f32 %v345, %v638
      %v651 = vmul.f32 %v346, %v638
      %v652 = vmul.f32 %v347, %v638
      %v653 = vmul.f32 %v348, %v638
      %v654 = vmul.f32 %v349, %v638
      %v655 = vmul.f32 %v350, %v638
      %v656 = vmul.f32 %v351, %v638
      %v657 = vmul.f32 %v352, %v638
      %v658 = vmul.f32 %v353, %v638
      %v659 = vmul.f32 %v354, %v638
      %v660 = vmul.f32 %v355, %v638
      %v661 = vmul.f32 %v356, %v638
      %v662 = vmul.f32 %v357, %v638
      %vm687 = vcmask 1046528
      %v688 = vrot.slane %v639, 1
      %v689 = vrot.slane %v640, 1
      %v690 = vsel %vm687, %v688, %v689
      %v691 = vrot.slane %v641, 1
      %v692 = vsel %vm687, %v689, %v691
      %v693 = vrot.slane %v642, 1
      %v694 = vrot.slane %v643, 1
      %v695 = vsel %vm687, %v693, %v694
      %v696 = vrot.slane %v644, 1
      %v697 = vsel %vm687, %v694, %v696
      %v698 = vrot.slane %v645, 1
      %v699 = vrot.slane %v646, 1
      %v700 = vsel %vm687, %v698, %v699
      %v701 = vrot.slane %v647, 1
      %v702 = vsel %vm687, %v699, %v701
      %v703 = vrot.slane %v648, 1
      %v704 = vrot.slane %v649, 1
      %v705 = vsel %vm687, %v703, %v704
      %v706 = vrot.slane %v650, 1
      %v707 = vsel %vm687, %v704, %v706
      %v708 = vrot.slane %v651, 1
      %v709 = vrot.slane %v652, 1
      %v710 = vsel %vm687, %v708, %v709
      %v711 = vrot.slane %v653, 1
      %v712 = vsel %vm687, %v709, %v711
      %v713 = vrot.slane %v654, 1
      %v714 = vrot.slane %v655, 1
      %v715 = vsel %vm687, %v713, %v714
      %v716 = vrot.slane %v656, 1
      %v717 = vsel %vm687, %v714, %v716
      %v718 = vrot.slane %v657, 1
      %v719 = vrot.slane %v658, 1
      %v720 = vsel %vm687, %v718, %v719
      %v721 = vrot.slane %v659, 1
      %v722 = vsel %vm687, %v719, %v721
      %v723 = vrot.slane %v660, 1
      %v724 = vrot.slane %v661, 1
      %v725 = vsel %vm687, %v723, %v724
      %v726 = vrot.slane %v662, 1
      %v727 = vsel %vm687, %v724, %v726
      %v744 = vadd.f32 %v619, %v690
      %v745 = vadd.f32 %v620, %v692
      %v746 = vadd.f32 %v621, %v695
      %v747 = vadd.f32 %v622, %v697
      %v748 = vadd.f32 %v623, %v700
      %v749 = vadd.f32 %v624, %v702
      %v750 = vadd.f32 %v625, %v705
      %v751 = vadd.f32 %v626, %v707
      %v752 = vadd.f32 %v627, %v710
      %v753 = vadd.f32 %v628, %v712
      %v754 = vadd.f32 %v629, %v715
      %v755 = vadd.f32 %v630, %v717
      %v756 = vadd.f32 %v631, %v720
      %v757 = vadd.f32 %v632, %v722
      %v758 = vadd.f32 %v633, %v725
      %v759 = vadd.f32 %v634, %v727
      %v760 = vlaneseq
      %v761 = vshrl.u32 %v760, 7
      %v762 = vsub.s32 1, %v761
      %v763 = vrot.slane %v377, %v762
      %v764 = vmul.f32 %v337, %v763
      %v765 = vmul.f32 %v338, %v763
      %v766 = vmul.f32 %v339, %v763
      %v767 = vmul.f32 %v340, %v763
      %v768 = vmul.f32 %v341, %v763
      %v769 = vmul.f32 %v342, %v763
      %v770 = vmul.f32 %v343, %v763
      %v771 = vmul.f32 %v344, %v763
      %v772 = vmul.f32 %v345, %v763
      %v773 = vmul.f32 %v346, %v763
      %v774 = vmul.f32 %v347, %v763
      %v775 = vmul.f32 %v348, %v763
      %v776 = vmul.f32 %v349, %v763
      %v777 = vmul.f32 %v350, %v763
      %v778 = vmul.f32 %v351, %v763
      %v779 = vmul.f32 %v352, %v763
      %v780 = vmul.f32 %v353, %v763
      %v781 = vmul.f32 %v354, %v763
      %v782 = vmul.f32 %v355, %v763
      %v783 = vmul.f32 %v356, %v763
      %v784 = vmul.f32 %v357, %v763
      %v785 = vmul.f32 %v358, %v763
      %v786 = vmul.f32 %v359, %v763
      %v787 = vmul.f32 %v360, %v763
      %v812 = vrot.slane %v764, 1
      %v813 = vrot.slane %v765, 1
      %v814 = vsel %vm687, %v812, %v813
      %v815 = vrot.slane %v766, 1
      %v816 = vsel %vm687, %v813, %v815
      %v817 = vrot.slane %v767, 1
      %v818 = vrot.slane %v768, 1
      %v819 = vsel %vm687, %v817, %v818
      %v820 = vrot.slane %v769, 1
      %v821 = vsel %vm687, %v818, %v820
      %v822 = vrot.slane %v770, 1
      %v823 = vrot.slane %v771, 1
      %v824 = vsel %vm687, %v822, %v823
      %v825 = vrot.slane %v772, 1
      %v826 = vsel %vm687, %v823, %v825
      %v827 = vrot.slane %v773, 1
      %v828 = vrot.slane %v774, 1
      %v829 = vsel %vm687, %v827, %v828
      %v830 = vrot.slane %v775, 1
      %v831 = vsel %vm687, %v828, %v830
      %v832 = vrot.slane %v776, 1
      %v833 = vrot.slane %v777, 1
      %v834 = vsel %vm687, %v832, %v833
      %v835 = vrot.slane %v778, 1
      %v836 = vsel %vm687, %v833, %v835
      %v837 = vrot.slane %v779, 1
      %v838 = vrot.slane %v780, 1
      %v839 = vsel %vm687, %v837, %v838
      %v840 = vrot.slane %v781, 1
      %v841 = vsel %vm687, %v838, %v840
      %v842 = vrot.slane %v782, 1
      %v843 = vrot.slane %v783, 1
      %v844 = vsel %vm687, %v842, %v843
      %v845 = vrot.slane %v784, 1
      %v846 = vsel %vm687, %v843, %v845
      %v847 = vrot.slane %v785, 1
      %v848 = vrot.slane %v786, 1
      %v849 = vsel %vm687, %v847, %v848
      %v850 = vrot.slane %v787, 1
      %v851 = vsel %vm687, %v848, %v850
      %v868 = vadd.f32 %v744, %v814
      %v869 = vadd.f32 %v745, %v816
      %v870 = vadd.f32 %v746, %v819
      %v871 = vadd.f32 %v747, %v821
      %v872 = vadd.f32 %v748, %v824
      %v873 = vadd.f32 %v749, %v826
      %v874 = vadd.f32 %v750, %v829
      %v875 = vadd.f32 %v751, %v831
      %v876 = vadd.f32 %v752, %v834
      %v877 = vadd.f32 %v753, %v836
      %v878 = vadd.f32 %v754, %v839
      %v879 = vadd.f32 %v755, %v841
      %v880 = vadd.f32 %v756, %v844
      %v881 = vadd.f32 %v757, %v846
      %v882 = vadd.f32 %v758, %v849
      %v883 = vadd.f32 %v759, %v851
      %v884 = vlaneseq
      %v885 = vshrl.u32 %v884, 7
      %v886 = vsub.s32 1, %v885
      %v887 = vrot.slane %v378, %v886
      %v888 = vmul.f32 %v340, %v887
      %v889 = vmul.f32 %v341, %v887
      %v890 = vmul.f32 %v342, %v887
      %v891 = vmul.f32 %v343, %v887
      %v892 = vmul.f32 %v344, %v887
      %v893 = vmul.f32 %v345, %v887
      %v894 = vmul.f32 %v346, %v887
      %v895 = vmul.f32 %v347, %v887
      %v896 = vmul.f32 %v348, %v887
      %v897 = vmul.f32 %v349, %v887
      %v898 = vmul.f32 %v350, %v887
      %v899 = vmul.f32 %v351, %v887
      %v900 = vmul.f32 %v352, %v887
      %v901 = vmul.f32 %v353, %v887
      %v902 = vmul.f32 %v354, %v887
      %v903 = vmul.f32 %v355, %v887
      %v904 = vmul.f32 %v356, %v887
      %v905 = vmul.f32 %v357, %v887
      %v906 = vmul.f32 %v358, %v887
      %v907 = vmul.f32 %v359, %v887
      %v908 = vmul.f32 %v360, %v887
      %v909 = vmul.f32 %v361, %v887
      %v910 = vmul.f32 %v362, %v887
      %v911 = vmul.f32 %v363, %v887
      %v936 = vrot.slane %v888, 1
      %v937 = vrot.slane %v889, 1
      %v938 = vsel %vm687, %v936, %v937
      %v939 = vrot.slane %v890, 1
      %v940 = vsel %vm687, %v937, %v939
      %v941 = vrot.slane %v891, 1
      %v942 = vrot.slane %v892, 1
      %v943 = vsel %vm687, %v941, %v942
      %v944 = vrot.slane %v893, 1
      %v945 = vsel %vm687, %v942, %v944
      %v946 = vrot.slane %v894, 1
      %v947 = vrot.slane %v895, 1
      %v948 = vsel %vm687, %v946, %v947
      %v949 = vrot.slane %v896, 1
      %v950 = vsel %vm687, %v947, %v949
      %v951 = vrot.slane %v897, 1
      %v952 = vrot.slane %v898, 1
      %v953 = vsel %vm687, %v951, %v952
      %v954 = vrot.slane %v899, 1
      %v955 = vsel %vm687, %v952, %v954
      %v956 = vrot.slane %v900, 1
      %v957 = vrot.slane %v901, 1
      %v958 = vsel %vm687, %v956, %v957
      %v959 = vrot.slane %v902, 1
      %v960 = vsel %vm687, %v957, %v959
      %v961 = vrot.slane %v903, 1
      %v962 = vrot.slane %v904, 1
      %v963 = vsel %vm687, %v961, %v962
      %v964 = vrot.slane %v905, 1
      %v965 = vsel %vm687, %v962, %v964
      %v966 = vrot.slane %v906, 1
      %v967 = vrot.slane %v907, 1
      %v968 = vsel %vm687, %v966, %v967
      %v969 = vrot.slane %v908, 1
      %v970 = vsel %vm687, %v967, %v969
      %v971 = vrot.slane %v909, 1
      %v972 = vrot.slane %v910, 1
      %v973 = vsel %vm687, %v971, %v972
      %v974 = vrot.slane %v911, 1
      %v975 = vsel %vm687, %v972, %v974
      %v992 = vadd.f32 %v868, %v938
      %v993 = vadd.f32 %v869, %v940
      %v994 = vadd.f32 %v870, %v943
      %v995 = vadd.f32 %v871, %v945
      %v996 = vadd.f32 %v872, %v948
      %v997 = vadd.f32 %v873, %v950
      %v998 = vadd.f32 %v874, %v953
      %v999 = vadd.f32 %v875, %v955
      %v1000 = vadd.f32 %v876, %v958
      %v1001 = vadd.f32 %v877, %v960
      %v1002 = vadd.f32 %v878, %v963
      %v1003 = vadd.f32 %v879, %v965
      %v1004 = vadd.f32 %v880, %v968
      %v1005 = vadd.f32 %v881, %v970
      %v1006 = vadd.f32 %v882, %v973
      %v1007 = vadd.f32 %v883, %v975
      %v1008 = vlaneseq
      %v1009 = vshrl.u32 %v1008, 7
      %v1010 = vsub.s32 1, %v1009
      %v1011 = vrot.slane %v379, %v1010
      %v1012 = vmul.f32 %v343, %v1011
      %v1013 = vmul.f32 %v344, %v1011
      %v1014 = vmul.f32 %v345, %v1011
      %v1015 = vmul.f32 %v346, %v1011
      %v1016 = vmul.f32 %v347, %v1011
      %v1017 = vmul.f32 %v348, %v1011
      %v1018 = vmul.f32 %v349, %v1011
      %v1019 = vmul.f32 %v350, %v1011
      %v1020 = vmul.f32 %v351, %v1011
      %v1021 = vmul.f32 %v352, %v1011
      %v1022 = vmul.f32 %v353, %v1011
      %v1023 = vmul.f32 %v354, %v1011
      %v1024 = vmul.f32 %v355, %v1011
      %v1025 = vmul.f32 %v356, %v1011
      %v1026 = vmul.f32 %v357, %v1011
      %v1027 = vmul.f32 %v358, %v1011
      %v1028 = vmul.f32 %v359, %v1011
      %v1029 = vmul.f32 %v360, %v1011
      %v1030 = vmul.f32 %v361, %v1011
      %v1031 = vmul.f32 %v362, %v1011
      %v1032 = vmul.f32 %v363, %v1011
      %v1033 = vmul.f32 %v364, %v1011
      %v1034 = vmul.f32 %v365, %v1011
      %v1035 = vmul.f32 %v366, %v1011
      %v1060 = vrot.slane %v1012, 1
      %v1061 = vrot.slane %v1013, 1
      %v1062 = vsel %vm687, %v1060, %v1061
      %v1063 = vrot.slane %v1014, 1
      %v1064 = vsel %vm687, %v1061, %v1063
      %v1065 = vrot.slane %v1015, 1
      %v1066 = vrot.slane %v1016, 1
      %v1067 = vsel %vm687, %v1065, %v1066
      %v1068 = vrot.slane %v1017, 1
      %v1069 = vsel %vm687, %v1066, %v1068
      %v1070 = vrot.slane %v1018, 1
      %v1071 = vrot.slane %v1019, 1
      %v1072 = vsel %vm687, %v1070, %v1071
      %v1073 = vrot.slane %v1020, 1
      %v1074 = vsel %vm687, %v1071, %v1073
      %v1075 = vrot.slane %v1021, 1
      %v1076 = vrot.slane %v1022, 1
      %v1077 = vsel %vm687, %v1075, %v1076
      %v1078 = vrot.slane %v1023, 1
      %v1079 = vsel %vm687, %v1076, %v1078
      %v1080 = vrot.slane %v1024, 1
      %v1081 = vrot.slane %v1025, 1
      %v1082 = vsel %vm687, %v1080, %v1081
      %v1083 = vrot.slane %v1026, 1
      %v1084 = vsel %vm687, %v1081, %v1083
      %v1085 = vrot.slane %v1027, 1
      %v1086 = vrot.slane %v1028, 1
      %v1087 = vsel %vm687, %v1085, %v1086
      %v1088 = vrot.slane %v1029, 1
      %v1089 = vsel %vm687, %v1086, %v1088
      %v1090 = vrot.slane %v1030, 1
      %v1091 = vrot.slane %v1031, 1
      %v1092 = vsel %vm687, %v1090, %v1091
      %v1093 = vrot.slane %v1032, 1
      %v1094 = vsel %vm687, %v1091, %v1093
      %v1095 = vrot.slane %v1033, 1
      %v1096 = vrot.slane %v1034, 1
      %v1097 = vsel %vm687, %v1095, %v1096
      %v1098 = vrot.slane %v1035, 1
      %v1099 = vsel %vm687, %v1096, %v1098
      %v1116 = vadd.f32 %v992, %v1062
      %v1117 = vadd.f32 %v993, %v1064
      %v1118 = vadd.f32 %v994, %v1067
      %v1119 = vadd.f32 %v995, %v1069
      %v1120 = vadd.f32 %v996, %v1072
      %v1121 = vadd.f32 %v997, %v1074
      %v1122 = vadd.f32 %v998, %v1077
      %v1123 = vadd.f32 %v999, %v1079
      %v1124 = vadd.f32 %v1000, %v1082
      %v1125 = vadd.f32 %v1001, %v1084
      %v1126 = vadd.f32 %v1002, %v1087
      %v1127 = vadd.f32 %v1003, %v1089
      %v1128 = vadd.f32 %v1004, %v1092
      %v1129 = vadd.f32 %v1005, %v1094
      %v1130 = vadd.f32 %v1006, %v1097
      %v1131 = vadd.f32 %v1007, %v1099
      %v1132 = vlaneseq
      %v1133 = vshrl.u32 %v1132, 7
      %v1134 = vsub.s32 1, %v1133
      %v1135 = vrot.slane %v380, %v1134
      %v1136 = vmul.f32 %v346, %v1135
      %v1137 = vmul.f32 %v347, %v1135
      %v1138 = vmul.f32 %v348, %v1135
      %v1139 = vmul.f32 %v349, %v1135
      %v1140 = vmul.f32 %v350, %v1135
      %v1141 = vmul.f32 %v351, %v1135
      %v1142 = vmul.f32 %v352, %v1135
      %v1143 = vmul.f32 %v353, %v1135
      %v1144 = vmul.f32 %v354, %v1135
      %v1145 = vmul.f32 %v355, %v1135
      %v1146 = vmul.f32 %v356, %v1135
      %v1147 = vmul.f32 %v357, %v1135
      %v1148 = vmul.f32 %v358, %v1135
      %v1149 = vmul.f32 %v359, %v1135
      %v1150 = vmul.f32 %v360, %v1135
      %v1151 = vmul.f32 %v361, %v1135
      %v1152 = vmul.f32 %v362, %v1135
      %v1153 = vmul.f32 %v363, %v1135
      %v1154 = vmul.f32 %v364, %v1135
      %v1155 = vmul.f32 %v365, %v1135
      %v1156 = vmul.f32 %v366, %v1135
      %v1157 = vmul.f32 %v367, %v1135
      %v1158 = vmul.f32 %v368, %v1135
      %v1159 = vmul.f32 %v369, %v1135
      %v1184 = vrot.slane %v1136, 1
      %v1185 = vrot.slane %v1137, 1
      %v1186 = vsel %vm687, %v1184, %v1185
      %v1187 = vrot.slane %v1138, 1
      %v1188 = vsel %vm687, %v1185, %v1187
      %v1189 = vrot.slane %v1139, 1
      %v1190 = vrot.slane %v1140, 1
      %v1191 = vsel %vm687, %v1189, %v1190
      %v1192 = vrot.slane %v1141, 1
      %v1193 = vsel %vm687, %v1190, %v1192
      %v1194 = vrot.slane %v1142, 1
      %v1195 = vrot.slane %v1143, 1
      %v1196 = vsel %vm687, %v1194, %v1195
      %v1197 = vrot.slane %v1144, 1
      %v1198 = vsel %vm687, %v1195, %v1197
      %v1199 = vrot.slane %v1145, 1
      %v1200 = vrot.slane %v1146, 1
      %v1201 = vsel %vm687, %v1199, %v1200
      %v1202 = vrot.slane %v1147, 1
      %v1203 = vsel %vm687, %v1200, %v1202
      %v1204 = vrot.slane %v1148, 1
      %v1205 = vrot.slane %v1149, 1
      %v1206 = vsel %vm687, %v1204, %v1205
      %v1207 = vrot.slane %v1150, 1
      %v1208 = vsel %vm687, %v1205, %v1207
      %v1209 = vrot.slane %v1151, 1
      %v1210 = vrot.slane %v1152, 1
      %v1211 = vsel %vm687, %v1209, %v1210
      %v1212 = vrot.slane %v1153, 1
      %v1213 = vsel %vm687, %v1210, %v1212
      %v1214 = vrot.slane %v1154, 1
      %v1215 = vrot.slane %v1155, 1
      %v1216 = vsel %vm687, %v1214, %v1215
      %v1217 = vrot.slane %v1156, 1
      %v1218 = vsel %vm687, %v1215, %v1217
      %v1219 = vrot.slane %v1157, 1
      %v1220 = vrot.slane %v1158, 1
      %v1221 = vsel %vm687, %v1219, %v1220
      %v1222 = vrot.slane %v1159, 1
      %v1223 = vsel %vm687, %v1220, %v1222
      %v1240 = vadd.f32 %v1116, %v1186
      %v1241 = vadd.f32 %v1117, %v1188
      %v1242 = vadd.f32 %v1118, %v1191
      %v1243 = vadd.f32 %v1119, %v1193
      %v1244 = vadd.f32 %v1120, %v1196
      %v1245 = vadd.f32 %v1121, %v1198
      %v1246 = vadd.f32 %v1122, %v1201
      %v1247 = vadd.f32 %v1123, %v1203
      %v1248 = vadd.f32 %v1124, %v1206
      %v1249 = vadd.f32 %v1125, %v1208
      %v1250 = vadd.f32 %v1126, %v1211
      %v1251 = vadd.f32 %v1127, %v1213
      %v1252 = vadd.f32 %v1128, %v1216
      %v1253 = vadd.f32 %v1129, %v1218
      %v1254 = vadd.f32 %v1130, %v1221
      %v1255 = vadd.f32 %v1131, %v1223
      %v1256 = vlaneseq
      %v1257 = vshrl.u32 %v1256, 7
      %v1258 = vsub.s32 1, %v1257
      %v1259 = vrot.slane %v381, %v1258
      %v1260 = vmul.f32 %v349, %v1259
      %v1261 = vmul.f32 %v350, %v1259
      %v1262 = vmul.f32 %v351, %v1259
      %v1263 = vmul.f32 %v352, %v1259
      %v1264 = vmul.f32 %v353, %v1259
      %v1265 = vmul.f32 %v354, %v1259
      %v1266 = vmul.f32 %v355, %v1259
      %v1267 = vmul.f32 %v356, %v1259
      %v1268 = vmul.f32 %v357, %v1259
      %v1269 = vmul.f32 %v358, %v1259
      %v1270 = vmul.f32 %v359, %v1259
      %v1271 = vmul.f32 %v360, %v1259
      %v1272 = vmul.f32 %v361, %v1259
      %v1273 = vmul.f32 %v362, %v1259
      %v1274 = vmul.f32 %v363, %v1259
      %v1275 = vmul.f32 %v364, %v1259
      %v1276 = vmul.f32 %v365, %v1259
      %v1277 = vmul.f32 %v366, %v1259
      %v1278 = vmul.f32 %v367, %v1259
      %v1279 = vmul.f32 %v368, %v1259
      %v1280 = vmul.f32 %v369, %v1259
      %v1281 = vmul.f32 %v370, %v1259
      %v1282 = vmul.f32 %v371, %v1259
      %v1283 = vmul.f32 %v372, %v1259
      %v1308 = vrot.slane %v1260, 1
      %v1309 = vrot.slane %v1261, 1
      %v1310 = vsel %vm687, %v1308, %v1309
      %v1311 = vrot.slane %v1262, 1
      %v1312 = vsel %vm687, %v1309, %v1311
      %v1313 = vrot.slane %v1263, 1
      %v1314 = vrot.slane %v1264, 1
      %v1315 = vsel %vm687, %v1313, %v1314
      %v1316 = vrot.slane %v1265, 1
      %v1317 = vsel %vm687, %v1314, %v1316
      %v1318 = vrot.slane %v1266, 1
      %v1319 = vrot.slane %v1267, 1
      %v1320 = vsel %vm687, %v1318, %v1319
      %v1321 = vrot.slane %v1268, 1
      %v1322 = vsel %vm687, %v1319, %v1321
      %v1323 = vrot.slane %v1269, 1
      %v1324 = vrot.slane %v1270, 1
      %v1325 = vsel %vm687, %v1323, %v1324
      %v1326 = vrot.slane %v1271, 1
      %v1327 = vsel %vm687, %v1324, %v1326
      %v1328 = vrot.slane %v1272, 1
      %v1329 = vrot.slane %v1273, 1
      %v1330 = vsel %vm687, %v1328, %v1329
      %v1331 = vrot.slane %v1274, 1
      %v1332 = vsel %vm687, %v1329, %v1331
      %v1333 = vrot.slane %v1275, 1
      %v1334 = vrot.slane %v1276, 1
      %v1335 = vsel %vm687, %v1333, %v1334
      %v1336 = vrot.slane %v1277, 1
      %v1337 = vsel %vm687, %v1334, %v1336
      %v1338 = vrot.slane %v1278, 1
      %v1339 = vrot.slane %v1279, 1
      %v1340 = vsel %vm687, %v1338, %v1339
      %v1341 = vrot.slane %v1280, 1
      %v1342 = vsel %vm687, %v1339, %v1341
      %v1343 = vrot.slane %v1281, 1
      %v1344 = vrot.slane %v1282, 1
      %v1345 = vsel %vm687, %v1343, %v1344
      %v1346 = vrot.slane %v1283, 1
      %v1347 = vsel %vm687, %v1344, %v1346
      %v1364 = vadd.f32 %v1240, %v1310
      %v1365 = vadd.f32 %v1241, %v1312
      %v1366 = vadd.f32 %v1242, %v1315
      %v1367 = vadd.f32 %v1243, %v1317
      %v1368 = vadd.f32 %v1244, %v1320
      %v1369 = vadd.f32 %v1245, %v1322
      %v1370 = vadd.f32 %v1246, %v1325
      %v1371 = vadd.f32 %v1247, %v1327
      %v1372 = vadd.f32 %v1248, %v1330
      %v1373 = vadd.f32 %v1249, %v1332
      %v1374 = vadd.f32 %v1250, %v1335
      %v1375 = vadd.f32 %v1251, %v1337
      %v1376 = vadd.f32 %v1252, %v1340
      %v1377 = vadd.f32 %v1253, %v1342
      %v1378 = vadd.f32 %v1254, %v1345
      %v1379 = vadd.f32 %v1255, %v1347
      %v1380 = vlaneseq
      %v1381 = vshrl.u32 %v1380, 7
      %v1382 = vsub.s32 1, %v1381
      %v1383 = vrot.slane %v382, %v1382
      %v1384 = vmul.f32 %v352, %v1383
      %v1385 = vmul.f32 %v353, %v1383
      %v1386 = vmul.f32 %v354, %v1383
      %v1387 = vmul.f32 %v355, %v1383
      %v1388 = vmul.f32 %v356, %v1383
      %v1389 = vmul.f32 %v357, %v1383
      %v1390 = vmul.f32 %v358, %v1383
      %v1391 = vmul.f32 %v359, %v1383
      %v1392 = vmul.f32 %v360, %v1383
      %v1393 = vmul.f32 %v361, %v1383
      %v1394 = vmul.f32 %v362, %v1383
      %v1395 = vmul.f32 %v363, %v1383
      %v1396 = vmul.f32 %v364, %v1383
      %v1397 = vmul.f32 %v365, %v1383
      %v1398 = vmul.f32 %v366, %v1383
      %v1399 = vmul.f32 %v367, %v1383
      %v1400 = vmul.f32 %v368, %v1383
      %v1401 = vmul.f32 %v369, %v1383
      %v1402 = vmul.f32 %v370, %v1383
      %v1403 = vmul.f32 %v371, %v1383
      %v1404 = vmul.f32 %v372, %v1383
      %v1405 = vmul.f32 %v373, %v1383
      %v1406 = vmul.f32 %v374, %v1383
      %v1407 = vmul.f32 %v375, %v1383
      %v1432 = vrot.slane %v1384, 1
      %v1433 = vrot.slane %v1385, 1
      %v1434 = vsel %vm687, %v1432, %v1433
      %v1435 = vrot.slane %v1386, 1
      %v1436 = vsel %vm687, %v1433, %v1435
      %v1437 = vrot.slane %v1387, 1
      %v1438 = vrot.slane %v1388, 1
      %v1439 = vsel %vm687, %v1437, %v1438
      %v1440 = vrot.slane %v1389, 1
      %v1441 = vsel %vm687, %v1438, %v1440
      %v1442 = vrot.slane %v1390, 1
      %v1443 = vrot.slane %v1391, 1
      %v1444 = vsel %vm687, %v1442, %v1443
      %v1445 = vrot.slane %v1392, 1
      %v1446 = vsel %vm687, %v1443, %v1445
      %v1447 = vrot.slane %v1393, 1
      %v1448 = vrot.slane %v1394, 1
      %v1449 = vsel %vm687, %v1447, %v1448
      %v1450 = vrot.slane %v1395, 1
      %v1451 = vsel %vm687, %v1448, %v1450
      %v1452 = vrot.slane %v1396, 1
      %v1453 = vrot.slane %v1397, 1
      %v1454 = vsel %vm687, %v1452, %v1453
      %v1455 = vrot.slane %v1398, 1
      %v1456 = vsel %vm687, %v1453, %v1455
      %v1457 = vrot.slane %v1399, 1
      %v1458 = vrot.slane %v1400, 1
      %v1459 = vsel %vm687, %v1457, %v1458
      %v1460 = vrot.slane %v1401, 1
      %v1461 = vsel %vm687, %v1458, %v1460
      %v1462 = vrot.slane %v1402, 1
      %v1463 = vrot.slane %v1403, 1
      %v1464 = vsel %vm687, %v1462, %v1463
      %v1465 = vrot.slane %v1404, 1
      %v1466 = vsel %vm687, %v1463, %v1465
      %v1467 = vrot.slane %v1405, 1
      %v1468 = vrot.slane %v1406, 1
      %v1469 = vsel %vm687, %v1467, %v1468
      %v1470 = vrot.slane %v1407, 1
      %v1471 = vsel %vm687, %v1468, %v1470
      %v1488 = vadd.f32 %v1364, %v1434
      %v1489 = vadd.f32 %v1365, %v1436
      %v1490 = vadd.f32 %v1366, %v1439
      %v1491 = vadd.f32 %v1367, %v1441
      %v1492 = vadd.f32 %v1368, %v1444
      %v1493 = vadd.f32 %v1369, %v1446
      %v1494 = vadd.f32 %v1370, %v1449
      %v1495 = vadd.f32 %v1371, %v1451
      %v1496 = vadd.f32 %v1372, %v1454
      %v1497 = vadd.f32 %v1373, %v1456
      %v1498 = vadd.f32 %v1374, %v1459
      %v1499 = vadd.f32 %v1375, %v1461
      %v1500 = vadd.f32 %v1376, %v1464
      %v1501 = vadd.f32 %v1377, %v1466
      %v1502 = vadd.f32 %v1378, %v1469
      %v1503 = vadd.f32 %v1379, %v1471
      %v1504 = vlaneseq
      %v1505 = vshrl.u32 %v1504, 7
      %v1506 = vsub.s32 2, %v1505
      %v1507 = vrot.slane %v376, %v1506
      %v1508 = vmul.f32 %v334, %v1507
      %v1509 = vmul.f32 %v335, %v1507
      %v1510 = vmul.f32 %v336, %v1507
      %v1511 = vmul.f32 %v337, %v1507
      %v1512 = vmul.f32 %v338, %v1507
      %v1513 = vmul.f32 %v339, %v1507
      %v1514 = vmul.f32 %v340, %v1507
      %v1515 = vmul.f32 %v341, %v1507
      %v1516 = vmul.f32 %v342, %v1507
      %v1517 = vmul.f32 %v343, %v1507
      %v1518 = vmul.f32 %v344, %v1507
      %v1519 = vmul.f32 %v345, %v1507
      %v1520 = vmul.f32 %v346, %v1507
      %v1521 = vmul.f32 %v347, %v1507
      %v1522 = vmul.f32 %v348, %v1507
      %v1523 = vmul.f32 %v349, %v1507
      %v1524 = vmul.f32 %v350, %v1507
      %v1525 = vmul.f32 %v351, %v1507
      %v1526 = vmul.f32 %v352, %v1507
      %v1527 = vmul.f32 %v353, %v1507
      %v1528 = vmul.f32 %v354, %v1507
      %v1529 = vmul.f32 %v355, %v1507
      %v1530 = vmul.f32 %v356, %v1507
      %v1531 = vmul.f32 %v357, %v1507
      %vm1556 = vcmask 1045504
      %v1557 = vrot.slane %v1508, 2
      %v1558 = vrot.slane %v1509, 2
      %v1559 = vsel %vm1556, %v1557, %v1558
      %v1560 = vrot.slane %v1510, 2
      %v1561 = vsel %vm1556, %v1558, %v1560
      %v1562 = vrot.slane %v1511, 2
      %v1563 = vrot.slane %v1512, 2
      %v1564 = vsel %vm1556, %v1562, %v1563
      %v1565 = vrot.slane %v1513, 2
      %v1566 = vsel %vm1556, %v1563, %v1565
      %v1567 = vrot.slane %v1514, 2
      %v1568 = vrot.slane %v1515, 2
      %v1569 = vsel %vm1556, %v1567, %v1568
      %v1570 = vrot.slane %v1516, 2
      %v1571 = vsel %vm1556, %v1568, %v1570
      %v1572 = vrot.slane %v1517, 2
      %v1573 = vrot.slane %v1518, 2
      %v1574 = vsel %vm1556, %v1572, %v1573
      %v1575 = vrot.slane %v1519, 2
      %v1576 = vsel %vm1556, %v1573, %v1575
      %v1577 = vrot.slane %v1520, 2
      %v1578 = vrot.slane %v1521, 2
      %v1579 = vsel %vm1556, %v1577, %v1578
      %v1580 = vrot.slane %v1522, 2
      %v1581 = vsel %vm1556, %v1578, %v1580
      %v1582 = vrot.slane %v1523, 2
      %v1583 = vrot.slane %v1524, 2
      %v1584 = vsel %vm1556, %v1582, %v1583
      %v1585 = vrot.slane %v1525, 2
      %v1586 = vsel %vm1556, %v1583, %v1585
      %v1587 = vrot.slane %v1526, 2
      %v1588 = vrot.slane %v1527, 2
      %v1589 = vsel %vm1556, %v1587, %v1588
      %v1590 = vrot.slane %v1528, 2
      %v1591 = vsel %vm1556, %v1588, %v1590
      %v1592 = vrot.slane %v1529, 2
      %v1593 = vrot.slane %v1530, 2
      %v1594 = vsel %vm1556, %v1592, %v1593
      %v1595 = vrot.slane %v1531, 2
      %v1596 = vsel %vm1556, %v1593, %v1595
      %v1613 = vadd.f32 %v1488, %v1559
      %v1614 = vadd.f32 %v1489, %v1561
      %v1615 = vadd.f32 %v1490, %v1564
      %v1616 = vadd.f32 %v1491, %v1566
      %v1617 = vadd.f32 %v1492, %v1569
      %v1618 = vadd.f32 %v1493, %v1571
      %v1619 = vadd.f32 %v1494, %v1574
      %v1620 = vadd.f32 %v1495, %v1576
      %v1621 = vadd.f32 %v1496, %v1579
      %v1622 = vadd.f32 %v1497, %v1581
      %v1623 = vadd.f32 %v1498, %v1584
      %v1624 = vadd.f32 %v1499, %v1586
      %v1625 = vadd.f32 %v1500, %v1589
      %v1626 = vadd.f32 %v1501, %v1591
      %v1627 = vadd.f32 %v1502, %v1594
      %v1628 = vadd.f32 %v1503, %v1596
      %v1629 = vlaneseq
      %v1630 = vshrl.u32 %v1629, 7
      %v1631 = vsub.s32 2, %v1630
      %v1632 = vrot.slane %v377, %v1631
      %v1633 = vmul.f32 %v337, %v1632
      %v1634 = vmul.f32 %v338, %v1632
      %v1635 = vmul.f32 %v339, %v1632
      %v1636 = vmul.f32 %v340, %v1632
      %v1637 = vmul.f32 %v341, %v1632
      %v1638 = vmul.f32 %v342, %v1632
      %v1639 = vmul.f32 %v343, %v1632
      %v1640 = vmul.f32 %v344, %v1632
      %v1641 = vmul.f32 %v345, %v1632
      %v1642 = vmul.f32 %v346, %v1632
      %v1643 = vmul.f32 %v347, %v1632
      %v1644 = vmul.f32 %v348, %v1632
      %v1645 = vmul.f32 %v349, %v1632
      %v1646 = vmul.f32 %v350, %v1632
      %v1647 = vmul.f32 %v351, %v1632
      %v1648 = vmul.f32 %v352, %v1632
      %v1649 = vmul.f32 %v353, %v1632
      %v1650 = vmul.f32 %v354, %v1632
      %v1651 = vmul.f32 %v355, %v1632
      %v1652 = vmul.f32 %v356, %v1632
      %v1653 = vmul.f32 %v357, %v1632
      %v1654 = vmul.f32 %v358, %v1632
      %v1655 = vmul.f32 %v359, %v1632
      %v1656 = vmul.f32 %v360, %v1632
      %v1681 = vrot.slane %v1633, 2
      %v1682 = vrot.slane %v1634, 2
      %v1683 = vsel %vm1556, %v1681, %v1682
      %v1684 = vrot.slane %v1635, 2
      %v1685 = vsel %vm1556, %v1682, %v1684
      %v1686 = vrot.slane %v1636, 2
      %v1687 = vrot.slane %v1637, 2
      %v1688 = vsel %vm1556, %v1686, %v1687
      %v1689 = vrot.slane %v1638, 2
      %v1690 = vsel %vm1556, %v1687, %v1689
      %v1691 = vrot.slane %v1639, 2
      %v1692 = vrot.slane %v1640, 2
      %v1693 = vsel %vm1556, %v1691, %v1692
      %v1694 = vrot.slane %v1641, 2
      %v1695 = vsel %vm1556, %v1692, %v1694
      %v1696 = vrot.slane %v1642, 2
      %v1697 = vrot.slane %v1643, 2
      %v1698 = vsel %vm1556, %v1696, %v1697
      %v1699 = vrot.slane %v1644, 2
      %v1700 = vsel %vm1556, %v1697, %v1699
      %v1701 = vrot.slane %v1645, 2
      %v1702 = vrot.slane %v1646, 2
      %v1703 = vsel %vm1556, %v1701, %v1702
      %v1704 = vrot.slane %v1647, 2
      %v1705 = vsel %vm1556, %v1702, %v1704
      %v1706 = vrot.slane %v1648, 2
      %v1707 = vrot.slane %v1649, 2
      %v1708 = vsel %vm1556, %v1706, %v1707
      %v1709 = vrot.slane %v1650, 2
      %v1710 = vsel %vm1556, %v1707, %v1709
      %v1711 = vrot.slane %v1651, 2
      %v1712 = vrot.slane %v1652, 2
      %v1713 = vsel %vm1556, %v1711, %v1712
      %v1714 = vrot.slane %v1653, 2
      %v1715 = vsel %vm1556, %v1712, %v1714
      %v1716 = vrot.slane %v1654, 2
      %v1717 = vrot.slane %v1655, 2
      %v1718 = vsel %vm1556, %v1716, %v1717
      %v1719 = vrot.slane %v1656, 2
      %v1720 = vsel %vm1556, %v1717, %v1719
      %v1737 = vadd.f32 %v1613, %v1683
      %v1738 = vadd.f32 %v1614, %v1685
      %v1739 = vadd.f32 %v1615, %v1688
      %v1740 = vadd.f32 %v1616, %v1690
      %v1741 = vadd.f32 %v1617, %v1693
      %v1742 = vadd.f32 %v1618, %v1695
      %v1743 = vadd.f32 %v1619, %v1698
      %v1744 = vadd.f32 %v1620, %v1700
      %v1745 = vadd.f32 %v1621, %v1703
      %v1746 = vadd.f32 %v1622, %v1705
      %v1747 = vadd.f32 %v1623, %v1708
      %v1748 = vadd.f32 %v1624, %v1710
      %v1749 = vadd.f32 %v1625, %v1713
      %v1750 = vadd.f32 %v1626, %v1715
      %v1751 = vadd.f32 %v1627, %v1718
      %v1752 = vadd.f32 %v1628, %v1720
      %v1753 = vlaneseq
      %v1754 = vshrl.u32 %v1753, 7
      %v1755 = vsub.s32 2, %v1754
      %v1756 = vrot.slane %v378, %v1755
      %v1757 = vmul.f32 %v340, %v1756
      %v1758 = vmul.f32 %v341, %v1756
      %v1759 = vmul.f32 %v342, %v1756
      %v1760 = vmul.f32 %v343, %v1756
      %v1761 = vmul.f32 %v344, %v1756
      %v1762 = vmul.f32 %v345, %v1756
      %v1763 = vmul.f32 %v346, %v1756
      %v1764 = vmul.f32 %v347, %v1756
      %v1765 = vmul.f32 %v348, %v1756
      %v1766 = vmul.f32 %v349, %v1756
      %v1767 = vmul.f32 %v350, %v1756
      %v1768 = vmul.f32 %v351, %v1756
      %v1769 = vmul.f32 %v352, %v1756
      %v1770 = vmul.f32 %v353, %v1756
      %v1771 = vmul.f32 %v354, %v1756
      %v1772 = vmul.f32 %v355, %v1756
      %v1773 = vmul.f32 %v356, %v1756
      %v1774 = vmul.f32 %v357, %v1756
      %v1775 = vmul.f32 %v358, %v1756
      %v1776 = vmul.f32 %v359, %v1756
      %v1777 = vmul.f32 %v360, %v1756
      %v1778 = vmul.f32 %v361, %v1756
      %v1779 = vmul.f32 %v362, %v1756
      %v1780 = vmul.f32 %v363, %v1756
      %v1805 = vrot.slane %v1757, 2
      %v1806 = vrot.slane %v1758, 2
      %v1807 = vsel %vm1556, %v1805, %v1806
      %v1808 = vrot.slane %v1759, 2
      %v1809 = vsel %vm1556, %v1806, %v1808
      %v1810 = vrot.slane %v1760, 2
      %v1811 = vrot.slane %v1761, 2
      %v1812 = vsel %vm1556, %v1810, %v1811
      %v1813 = vrot.slane %v1762, 2
      %v1814 = vsel %vm1556, %v1811, %v1813
      %v1815 = vrot.slane %v1763, 2
      %v1816 = vrot.slane %v1764, 2
      %v1817 = vsel %vm1556, %v1815, %v1816
      %v1818 = vrot.slane %v1765, 2
      %v1819 = vsel %vm1556, %v1816, %v1818
      %v1820 = vrot.slane %v1766, 2
      %v1821 = vrot.slane %v1767, 2
      %v1822 = vsel %vm1556, %v1820, %v1821
      %v1823 = vrot.slane %v1768, 2
      %v1824 = vsel %vm1556, %v1821, %v1823
      %v1825 = vrot.slane %v1769, 2
      %v1826 = vrot.slane %v1770, 2
      %v1827 = vsel %vm1556, %v1825, %v1826
      %v1828 = vrot.slane %v1771, 2
      %v1829 = vsel %vm1556, %v1826, %v1828
      %v1830 = vrot.slane %v1772, 2
      %v1831 = vrot.slane %v1773, 2
      %v1832 = vsel %vm1556, %v1830, %v1831
      %v1833 = vrot.slane %v1774, 2
      %v1834 = vsel %vm1556, %v1831, %v1833
      %v1835 = vrot.slane %v1775, 2
      %v1836 = vrot.slane %v1776, 2
      %v1837 = vsel %vm1556, %v1835, %v1836
      %v1838 = vrot.slane %v1777, 2
      %v1839 = vsel %vm1556, %v1836, %v1838
      %v1840 = vrot.slane %v1778, 2
      %v1841 = vrot.slane %v1779, 2
      %v1842 = vsel %vm1556, %v1840, %v1841
      %v1843 = vrot.slane %v1780, 2
      %v1844 = vsel %vm1556, %v1841, %v1843
      %v1861 = vadd.f32 %v1737, %v1807
      %v1862 = vadd.f32 %v1738, %v1809
      %v1863 = vadd.f32 %v1739, %v1812
      %v1864 = vadd.f32 %v1740, %v1814
      %v1865 = vadd.f32 %v1741, %v1817
      %v1866 = vadd.f32 %v1742, %v1819
      %v1867 = vadd.f32 %v1743, %v1822
      %v1868 = vadd.f32 %v1744, %v1824
      %v1869 = vadd.f32 %v1745, %v1827
      %v1870 = vadd.f32 %v1746, %v1829
      %v1871 = vadd.f32 %v1747, %v1832
      %v1872 = vadd.f32 %v1748, %v1834
      %v1873 = vadd.f32 %v1749, %v1837
      %v1874 = vadd.f32 %v1750, %v1839
      %v1875 = vadd.f32 %v1751, %v1842
      %v1876 = vadd.f32 %v1752, %v1844
      %v1877 = vlaneseq
      %v1878 = vshrl.u32 %v1877, 7
      %v1879 = vsub.s32 2, %v1878
      %v1880 = vrot.slane %v379, %v1879
      %v1881 = vmul.f32 %v343, %v1880
      %v1882 = vmul.f32 %v344, %v1880
      %v1883 = vmul.f32 %v345, %v1880
      %v1884 = vmul.f32 %v346, %v1880
      %v1885 = vmul.f32 %v347, %v1880
      %v1886 = vmul.f32 %v348, %v1880
      %v1887 = vmul.f32 %v349, %v1880
      %v1888 = vmul.f32 %v350, %v1880
      %v1889 = vmul.f32 %v351, %v1880
      %v1890 = vmul.f32 %v352, %v1880
      %v1891 = vmul.f32 %v353, %v1880
      %v1892 = vmul.f32 %v354, %v1880
      %v1893 = vmul.f32 %v355, %v1880
      %v1894 = vmul.f32 %v356, %v1880
      %v1895 = vmul.f32 %v357, %v1880
      %v1896 = vmul.f32 %v358, %v1880
      %v1897 = vmul.f32 %v359, %v1880
      %v1898 = vmul.f32 %v360, %v1880
      %v1899 = vmul.f32 %v361, %v1880
      %v1900 = vmul.f32 %v362, %v1880
      %v1901 = vmul.f32 %v363, %v1880
      %v1902 = vmul.f32 %v364, %v1880
      %v1903 = vmul.f32 %v365, %v1880
      %v1904 = vmul.f32 %v366, %v1880
      %v1929 = vrot.slane %v1881, 2
      %v1930 = vrot.slane %v1882, 2
      %v1931 = vsel %vm1556, %v1929, %v1930
      %v1932 = vrot.slane %v1883, 2
      %v1933 = vsel %vm1556, %v1930, %v1932
      %v1934 = vrot.slane %v1884, 2
      %v1935 = vrot.slane %v1885, 2
      %v1936 = vsel %vm1556, %v1934, %v1935
      %v1937 = vrot.slane %v1886, 2
      %v1938 = vsel %vm1556, %v1935, %v1937
      %v1939 = vrot.slane %v1887, 2
      %v1940 = vrot.slane %v1888, 2
      %v1941 = vsel %vm1556, %v1939, %v1940
      %v1942 = vrot.slane %v1889, 2
      %v1943 = vsel %vm1556, %v1940, %v1942
      %v1944 = vrot.slane %v1890, 2
      %v1945 = vrot.slane %v1891, 2
      %v1946 = vsel %vm1556, %v1944, %v1945
      %v1947 = vrot.slane %v1892, 2
      %v1948 = vsel %vm1556, %v1945, %v1947
      %v1949 = vrot.slane %v1893, 2
      %v1950 = vrot.slane %v1894, 2
      %v1951 = vsel %vm1556, %v1949, %v1950
      %v1952 = vrot.slane %v1895, 2
      %v1953 = vsel %vm1556, %v1950, %v1952
      %v1954 = vrot.slane %v1896, 2
      %v1955 = vrot.slane %v1897, 2
      %v1956 = vsel %vm1556, %v1954, %v1955
      %v1957 = vrot.slane %v1898, 2
      %v1958 = vsel %vm1556, %v1955, %v1957
      %v1959 = vrot.slane %v1899, 2
      %v1960 = vrot.slane %v1900, 2
      %v1961 = vsel %vm1556, %v1959, %v1960
      %v1962 = vrot.slane %v1901, 2
      %v1963 = vsel %vm1556, %v1960, %v1962
      %v1964 = vrot.slane %v1902, 2
      %v1965 = vrot.slane %v1903, 2
      %v1966 = vsel %vm1556, %v1964, %v1965
      %v1967 = vrot.slane %v1904, 2
      %v1968 = vsel %vm1556, %v1965, %v1967
      %v1985 = vadd.f32 %v1861, %v1931
      %v1986 = vadd.f32 %v1862, %v1933
      %v1987 = vadd.f32 %v1863, %v1936
      %v1988 = vadd.f32 %v1864, %v1938
      %v1989 = vadd.f32 %v1865, %v1941
      %v1990 = vadd.f32 %v1866, %v1943
      %v1991 = vadd.f32 %v1867, %v1946
      %v1992 = vadd.f32 %v1868, %v1948
      %v1993 = vadd.f32 %v1869, %v1951
      %v1994 = vadd.f32 %v1870, %v1953
      %v1995 = vadd.f32 %v1871, %v1956
      %v1996 = vadd.f32 %v1872, %v1958
      %v1997 = vadd.f32 %v1873, %v1961
      %v1998 = vadd.f32 %v1874, %v1963
      %v1999 = vadd.f32 %v1875, %v1966
      %v2000 = vadd.f32 %v1876, %v1968
      %v2001 = vlaneseq
      %v2002 = vshrl.u32 %v2001, 7
      %v2003 = vsub.s32 2, %v2002
      %v2004 = vrot.slane %v380, %v2003
      %v2005 = vmul.f32 %v346, %v2004
      %v2006 = vmul.f32 %v347, %v2004
      %v2007 = vmul.f32 %v348, %v2004
      %v2008 = vmul.f32 %v349, %v2004
      %v2009 = vmul.f32 %v350, %v2004
      %v2010 = vmul.f32 %v351, %v2004
      %v2011 = vmul.f32 %v352, %v2004
      %v2012 = vmul.f32 %v353, %v2004
      %v2013 = vmul.f32 %v354, %v2004
      %v2014 = vmul.f32 %v355, %v2004
      %v2015 = vmul.f32 %v356, %v2004
      %v2016 = vmul.f32 %v357, %v2004
      %v2017 = vmul.f32 %v358, %v2004
      %v2018 = vmul.f32 %v359, %v2004
      %v2019 = vmul.f32 %v360, %v2004
      %v2020 = vmul.f32 %v361, %v2004
      %v2021 = vmul.f32 %v362, %v2004
      %v2022 = vmul.f32 %v363, %v2004
      %v2023 = vmul.f32 %v364, %v2004
      %v2024 = vmul.f32 %v365, %v2004
      %v2025 = vmul.f32 %v366, %v2004
      %v2026 = vmul.f32 %v367, %v2004
      %v2027 = vmul.f32 %v368, %v2004
      %v2028 = vmul.f32 %v369, %v2004
      %v2053 = vrot.slane %v2005, 2
      %v2054 = vrot.slane %v2006, 2
      %v2055 = vsel %vm1556, %v2053, %v2054
      %v2056 = vrot.slane %v2007, 2
      %v2057 = vsel %vm1556, %v2054, %v2056
      %v2058 = vrot.slane %v2008, 2
      %v2059 = vrot.slane %v2009, 2
      %v2060 = vsel %vm1556, %v2058, %v2059
      %v2061 = vrot.slane %v2010, 2
      %v2062 = vsel %vm1556, %v2059, %v2061
      %v2063 = vrot.slane %v2011, 2
      %v2064 = vrot.slane %v2012, 2
      %v2065 = vsel %vm1556, %v2063, %v2064
      %v2066 = vrot.slane %v2013, 2
      %v2067 = vsel %vm1556, %v2064, %v2066
      %v2068 = vrot.slane %v2014, 2
      %v2069 = vrot.slane %v2015, 2
      %v2070 = vsel %vm1556, %v2068, %v2069
      %v2071 = vrot.slane %v2016, 2
      %v2072 = vsel %vm1556, %v2069, %v2071
      %v2073 = vrot.slane %v2017, 2
      %v2074 = vrot.slane %v2018, 2
      %v2075 = vsel %vm1556, %v2073, %v2074
      %v2076 = vrot.slane %v2019, 2
      %v2077 = vsel %vm1556, %v2074, %v2076
      %v2078 = vrot.slane %v2020, 2
      %v2079 = vrot.slane %v2021, 2
      %v2080 = vsel %vm1556, %v2078, %v2079
      %v2081 = vrot.slane %v2022, 2
      %v2082 = vsel %vm1556, %v2079, %v2081
      %v2083 = vrot.slane %v2023, 2
      %v2084 = vrot.slane %v2024, 2
      %v2085 = vsel %vm1556, %v2083, %v2084
      %v2086 = vrot.slane %v2025, 2
      %v2087 = vsel %vm1556, %v2084, %v2086
      %v2088 = vrot.slane %v2026, 2
      %v2089 = vrot.slane %v2027, 2
      %v2090 = vsel %vm1556, %v2088, %v2089
      %v2091 = vrot.slane %v2028, 2
      %v2092 = vsel %vm1556, %v2089, %v2091
      %v2109 = vadd.f32 %v1985, %v2055
      %v2110 = vadd.f32 %v1986, %v2057
      %v2111 = vadd.f32 %v1987, %v2060
      %v2112 = vadd.f32 %v1988, %v2062
      %v2113 = vadd.f32 %v1989, %v2065
      %v2114 = vadd.f32 %v1990, %v2067
      %v2115 = vadd.f32 %v1991, %v2070
      %v2116 = vadd.f32 %v1992, %v2072
      %v2117 = vadd.f32 %v1993, %v2075
      %v2118 = vadd.f32 %v1994, %v2077
      %v2119 = vadd.f32 %v1995, %v2080
      %v2120 = vadd.f32 %v1996, %v2082
      %v2121 = vadd.f32 %v1997, %v2085
      %v2122 = vadd.f32 %v1998, %v2087
      %v2123 = vadd.f32 %v1999, %v2090
      %v2124 = vadd.f32 %v2000, %v2092
      %v2125 = vlaneseq
      %v2126 = vshrl.u32 %v2125, 7
      %v2127 = vsub.s32 2, %v2126
      %v2128 = vrot.slane %v381, %v2127
      %v2129 = vmul.f32 %v349, %v2128
      %v2130 = vmul.f32 %v350, %v2128
      %v2131 = vmul.f32 %v351, %v2128
      %v2132 = vmul.f32 %v352, %v2128
      %v2133 = vmul.f32 %v353, %v2128
      %v2134 = vmul.f32 %v354, %v2128
      %v2135 = vmul.f32 %v355, %v2128
      %v2136 = vmul.f32 %v356, %v2128
      %v2137 = vmul.f32 %v357, %v2128
      %v2138 = vmul.f32 %v358, %v2128
      %v2139 = vmul.f32 %v359, %v2128
      %v2140 = vmul.f32 %v360, %v2128
      %v2141 = vmul.f32 %v361, %v2128
      %v2142 = vmul.f32 %v362, %v2128
      %v2143 = vmul.f32 %v363, %v2128
      %v2144 = vmul.f32 %v364, %v2128
      %v2145 = vmul.f32 %v365, %v2128
      %v2146 = vmul.f32 %v366, %v2128
      %v2147 = vmul.f32 %v367, %v2128
      %v2148 = vmul.f32 %v368, %v2128
      %v2149 = vmul.f32 %v369, %v2128
      %v2150 = vmul.f32 %v370, %v2128
      %v2151 = vmul.f32 %v371, %v2128
      %v2152 = vmul.f32 %v372, %v2128
      %v2177 = vrot.slane %v2129, 2
      %v2178 = vrot.slane %v2130, 2
      %v2179 = vsel %vm1556, %v2177, %v2178
      %v2180 = vrot.slane %v2131, 2
      %v2181 = vsel %vm1556, %v2178, %v2180
      %v2182 = vrot.slane %v2132, 2
      %v2183 = vrot.slane %v2133, 2
      %v2184 = vsel %vm1556, %v2182, %v2183
      %v2185 = vrot.slane %v2134, 2
      %v2186 = vsel %vm1556, %v2183, %v2185
      %v2187 = vrot.slane %v2135, 2
      %v2188 = vrot.slane %v2136, 2
      %v2189 = vsel %vm1556, %v2187, %v2188
      %v2190 = vrot.slane %v2137, 2
      %v2191 = vsel %vm1556, %v2188, %v2190
      %v2192 = vrot.slane %v2138, 2
      %v2193 = vrot.slane %v2139, 2
      %v2194 = vsel %vm1556, %v2192, %v2193
      %v2195 = vrot.slane %v2140, 2
      %v2196 = vsel %vm1556, %v2193, %v2195
      %v2197 = vrot.slane %v2141, 2
      %v2198 = vrot.slane %v2142, 2
      %v2199 = vsel %vm1556, %v2197, %v2198
      %v2200 = vrot.slane %v2143, 2
      %v2201 = vsel %vm1556, %v2198, %v2200
      %v2202 = vrot.slane %v2144, 2
      %v2203 = vrot.slane %v2145, 2
      %v2204 = vsel %vm1556, %v2202, %v2203
      %v2205 = vrot.slane %v2146, 2
      %v2206 = vsel %vm1556, %v2203, %v2205
      %v2207 = vrot.slane %v2147, 2
      %v2208 = vrot.slane %v2148, 2
      %v2209 = vsel %vm1556, %v2207, %v2208
      %v2210 = vrot.slane %v2149, 2
      %v2211 = vsel %vm1556, %v2208, %v2210
      %v2212 = vrot.slane %v2150, 2
      %v2213 = vrot.slane %v2151, 2
      %v2214 = vsel %vm1556, %v2212, %v2213
      %v2215 = vrot.slane %v2152, 2
      %v2216 = vsel %vm1556, %v2213, %v2215
      %v2233 = vadd.f32 %v2109, %v2179
      %v2234 = vadd.f32 %v2110, %v2181
      %v2235 = vadd.f32 %v2111, %v2184
      %v2236 = vadd.f32 %v2112, %v2186
      %v2237 = vadd.f32 %v2113, %v2189
      %v2238 = vadd.f32 %v2114, %v2191
      %v2239 = vadd.f32 %v2115, %v2194
      %v2240 = vadd.f32 %v2116, %v2196
      %v2241 = vadd.f32 %v2117, %v2199
      %v2242 = vadd.f32 %v2118, %v2201
      %v2243 = vadd.f32 %v2119, %v2204
      %v2244 = vadd.f32 %v2120, %v2206
      %v2245 = vadd.f32 %v2121, %v2209
      %v2246 = vadd.f32 %v2122, %v2211
      %v2247 = vadd.f32 %v2123, %v2214
      %v2248 = vadd.f32 %v2124, %v2216
      %v2249 = vlaneseq
      %v2250 = vshrl.u32 %v2249, 7
      %v2251 = vsub.s32 2, %v2250
      %v2252 = vrot.slane %v382, %v2251
      %v2253 = vmul.f32 %v352, %v2252
      %v2254 = vmul.f32 %v353, %v2252
      %v2255 = vmul.f32 %v354, %v2252
      %v2256 = vmul.f32 %v355, %v2252
      %v2257 = vmul.f32 %v356, %v2252
      %v2258 = vmul.f32 %v357, %v2252
      %v2259 = vmul.f32 %v358, %v2252
      %v2260 = vmul.f32 %v359, %v2252
      %v2261 = vmul.f32 %v360, %v2252
      %v2262 = vmul.f32 %v361, %v2252
      %v2263 = vmul.f32 %v362, %v2252
      %v2264 = vmul.f32 %v363, %v2252
      %v2265 = vmul.f32 %v364, %v2252
      %v2266 = vmul.f32 %v365, %v2252
      %v2267 = vmul.f32 %v366, %v2252
      %v2268 = vmul.f32 %v367, %v2252
      %v2269 = vmul.f32 %v368, %v2252
      %v2270 = vmul.f32 %v369, %v2252
      %v2271 = vmul.f32 %v370, %v2252
      %v2272 = vmul.f32 %v371, %v2252
      %v2273 = vmul.f32 %v372, %v2252
      %v2274 = vmul.f32 %v373, %v2252
      %v2275 = vmul.f32 %v374, %v2252
      %v2276 = vmul.f32 %v375, %v2252
      %v2301 = vrot.slane %v2253, 2
      %v2302 = vrot.slane %v2254, 2
      %v2303 = vsel %vm1556, %v2301, %v2302
      %v2304 = vrot.slane %v2255, 2
      %v2305 = vsel %vm1556, %v2302, %v2304
      %v2306 = vrot.slane %v2256, 2
      %v2307 = vrot.slane %v2257, 2
      %v2308 = vsel %vm1556, %v2306, %v2307
      %v2309 = vrot.slane %v2258, 2
      %v2310 = vsel %vm1556, %v2307, %v2309
      %v2311 = vrot.slane %v2259, 2
      %v2312 = vrot.slane %v2260, 2
      %v2313 = vsel %vm1556, %v2311, %v2312
      %v2314 = vrot.slane %v2261, 2
      %v2315 = vsel %vm1556, %v2312, %v2314
      %v2316 = vrot.slane %v2262, 2
      %v2317 = vrot.slane %v2263, 2
      %v2318 = vsel %vm1556, %v2316, %v2317
      %v2319 = vrot.slane %v2264, 2
      %v2320 = vsel %vm1556, %v2317, %v2319
      %v2321 = vrot.slane %v2265, 2
      %v2322 = vrot.slane %v2266, 2
      %v2323 = vsel %vm1556, %v2321, %v2322
      %v2324 = vrot.slane %v2267, 2
      %v2325 = vsel %vm1556, %v2322, %v2324
      %v2326 = vrot.slane %v2268, 2
      %v2327 = vrot.slane %v2269, 2
      %v2328 = vsel %vm1556, %v2326, %v2327
      %v2329 = vrot.slane %v2270, 2
      %v2330 = vsel %vm1556, %v2327, %v2329
      %v2331 = vrot.slane %v2271, 2
      %v2332 = vrot.slane %v2272, 2
      %v2333 = vsel %vm1556, %v2331, %v2332
      %v2334 = vrot.slane %v2273, 2
      %v2335 = vsel %vm1556, %v2332, %v2334
      %v2336 = vrot.slane %v2274, 2
      %v2337 = vrot.slane %v2275, 2
      %v2338 = vsel %vm1556, %v2336, %v2337
      %v2339 = vrot.slane %v2276, 2
      %v2340 = vsel %vm1556, %v2337, %v2339
      %v2357 = vadd.f32 %v2233, %v2303
      %v2358 = vadd.f32 %v2234, %v2305
      %v2359 = vadd.f32 %v2235, %v2308
      %v2360 = vadd.f32 %v2236, %v2310
      %v2361 = vadd.f32 %v2237, %v2313
      %v2362 = vadd.f32 %v2238, %v2315
      %v2363 = vadd.f32 %v2239, %v2318
      %v2364 = vadd.f32 %v2240, %v2320
      %v2365 = vadd.f32 %v2241, %v2323
      %v2366 = vadd.f32 %v2242, %v2325
      %v2367 = vadd.f32 %v2243, %v2328
      %v2368 = vadd.f32 %v2244, %v2330
      %v2369 = vadd.f32 %v2245, %v2333
      %v2370 = vadd.f32 %v2246, %v2335
      %v2371 = vadd.f32 %v2247, %v2338
      %v2372 = vadd.f32 %v2248, %v2340
      %v2373 = vlaneseq
      %v2374 = vshrl.u32 %v2373, 7
      %v2375 = vsub.s32 3, %v2374
      %v2376 = vrot.slane %v376, %v2375
      %v2377 = vmul.f32 %v334, %v2376
      %v2378 = vmul.f32 %v335, %v2376
      %v2379 = vmul.f32 %v336, %v2376
      %v2380 = vmul.f32 %v337, %v2376
      %v2381 = vmul.f32 %v338, %v2376
      %v2382 = vmul.f32 %v339, %v2376
      %v2383 = vmul.f32 %v340, %v2376
      %v2384 = vmul.f32 %v341, %v2376
      %v2385 = vmul.f32 %v342, %v2376
      %v2386 = vmul.f32 %v343, %v2376
      %v2387 = vmul.f32 %v344, %v2376
      %v2388 = vmul.f32 %v345, %v2376
      %v2389 = vmul.f32 %v346, %v2376
      %v2390 = vmul.f32 %v347, %v2376
      %v2391 = vmul.f32 %v348, %v2376
      %v2392 = vmul.f32 %v349, %v2376
      %v2393 = vmul.f32 %v350, %v2376
      %v2394 = vmul.f32 %v351, %v2376
      %v2395 = vmul.f32 %v352, %v2376
      %v2396 = vmul.f32 %v353, %v2376
      %v2397 = vmul.f32 %v354, %v2376
      %v2398 = vmul.f32 %v355, %v2376
      %v2399 = vmul.f32 %v356, %v2376
      %v2400 = vmul.f32 %v357, %v2376
      %vm2425 = vcmask 1044480
      %v2426 = vrot.slane %v2377, 3
      %v2427 = vrot.slane %v2378, 3
      %v2428 = vsel %vm2425, %v2426, %v2427
      %v2429 = vrot.slane %v2379, 3
      %v2430 = vsel %vm2425, %v2427, %v2429
      %v2431 = vrot.slane %v2380, 3
      %v2432 = vrot.slane %v2381, 3
      %v2433 = vsel %vm2425, %v2431, %v2432
      %v2434 = vrot.slane %v2382, 3
      %v2435 = vsel %vm2425, %v2432, %v2434
      %v2436 = vrot.slane %v2383, 3
      %v2437 = vrot.slane %v2384, 3
      %v2438 = vsel %vm2425, %v2436, %v2437
      %v2439 = vrot.slane %v2385, 3
      %v2440 = vsel %vm2425, %v2437, %v2439
      %v2441 = vrot.slane %v2386, 3
      %v2442 = vrot.slane %v2387, 3
      %v2443 = vsel %vm2425, %v2441, %v2442
      %v2444 = vrot.slane %v2388, 3
      %v2445 = vsel %vm2425, %v2442, %v2444
      %v2446 = vrot.slane %v2389, 3
      %v2447 = vrot.slane %v2390, 3
      %v2448 = vsel %vm2425, %v2446, %v2447
      %v2449 = vrot.slane %v2391, 3
      %v2450 = vsel %vm2425, %v2447, %v2449
      %v2451 = vrot.slane %v2392, 3
      %v2452 = vrot.slane %v2393, 3
      %v2453 = vsel %vm2425, %v2451, %v2452
      %v2454 = vrot.slane %v2394, 3
      %v2455 = vsel %vm2425, %v2452, %v2454
      %v2456 = vrot.slane %v2395, 3
      %v2457 = vrot.slane %v2396, 3
      %v2458 = vsel %vm2425, %v2456, %v2457
      %v2459 = vrot.slane %v2397, 3
      %v2460 = vsel %vm2425, %v2457, %v2459
      %v2461 = vrot.slane %v2398, 3
      %v2462 = vrot.slane %v2399, 3
      %v2463 = vsel %vm2425, %v2461, %v2462
      %v2464 = vrot.slane %v2400, 3
      %v2465 = vsel %vm2425, %v2462, %v2464
      %v2482 = vadd.f32 %v2357, %v2428
      %v2483 = vadd.f32 %v2358, %v2430
      %v2484 = vadd.f32 %v2359, %v2433
      %v2485 = vadd.f32 %v2360, %v2435
      %v2486 = vadd.f32 %v2361, %v2438
      %v2487 = vadd.f32 %v2362, %v2440
      %v2488 = vadd.f32 %v2363, %v2443
      %v2489 = vadd.f32 %v2364, %v2445
      %v2490 = vadd.f32 %v2365, %v2448
      %v2491 = vadd.f32 %v2366, %v2450
      %v2492 = vadd.f32 %v2367, %v2453
      %v2493 = vadd.f32 %v2368, %v2455
      %v2494 = vadd.f32 %v2369, %v2458
      %v2495 = vadd.f32 %v2370, %v2460
      %v2496 = vadd.f32 %v2371, %v2463
      %v2497 = vadd.f32 %v2372, %v2465
      %v2498 = vlaneseq
      %v2499 = vshrl.u32 %v2498, 7
      %v2500 = vsub.s32 3, %v2499
      %v2501 = vrot.slane %v377, %v2500
      %v2502 = vmul.f32 %v337, %v2501
      %v2503 = vmul.f32 %v338, %v2501
      %v2504 = vmul.f32 %v339, %v2501
      %v2505 = vmul.f32 %v340, %v2501
      %v2506 = vmul.f32 %v341, %v2501
      %v2507 = vmul.f32 %v342, %v2501
      %v2508 = vmul.f32 %v343, %v2501
      %v2509 = vmul.f32 %v344, %v2501
      %v2510 = vmul.f32 %v345, %v2501
      %v2511 = vmul.f32 %v346, %v2501
      %v2512 = vmul.f32 %v347, %v2501
      %v2513 = vmul.f32 %v348, %v2501
      %v2514 = vmul.f32 %v349, %v2501
      %v2515 = vmul.f32 %v350, %v2501
      %v2516 = vmul.f32 %v351, %v2501
      %v2517 = vmul.f32 %v352, %v2501
      %v2518 = vmul.f32 %v353, %v2501
      %v2519 = vmul.f32 %v354, %v2501
      %v2520 = vmul.f32 %v355, %v2501
      %v2521 = vmul.f32 %v356, %v2501
      %v2522 = vmul.f32 %v357, %v2501
      %v2523 = vmul.f32 %v358, %v2501
      %v2524 = vmul.f32 %v359, %v2501
      %v2525 = vmul.f32 %v360, %v2501
      %v2550 = vrot.slane %v2502, 3
      %v2551 = vrot.slane %v2503, 3
      %v2552 = vsel %vm2425, %v2550, %v2551
      %v2553 = vrot.slane %v2504, 3
      %v2554 = vsel %vm2425, %v2551, %v2553
      %v2555 = vrot.slane %v2505, 3
      %v2556 = vrot.slane %v2506, 3
      %v2557 = vsel %vm2425, %v2555, %v2556
      %v2558 = vrot.slane %v2507, 3
      %v2559 = vsel %vm2425, %v2556, %v2558
      %v2560 = vrot.slane %v2508, 3
      %v2561 = vrot.slane %v2509, 3
      %v2562 = vsel %vm2425, %v2560, %v2561
      %v2563 = vrot.slane %v2510, 3
      %v2564 = vsel %vm2425, %v2561, %v2563
      %v2565 = vrot.slane %v2511, 3
      %v2566 = vrot.slane %v2512, 3
      %v2567 = vsel %vm2425, %v2565, %v2566
      %v2568 = vrot.slane %v2513, 3
      %v2569 = vsel %vm2425, %v2566, %v2568
      %v2570 = vrot.slane %v2514, 3
      %v2571 = vrot.slane %v2515, 3
      %v2572 = vsel %vm2425, %v2570, %v2571
      %v2573 = vrot.slane %v2516, 3
      %v2574 = vsel %vm2425, %v2571, %v2573
      %v2575 = vrot.slane %v2517, 3
      %v2576 = vrot.slane %v2518, 3
      %v2577 = vsel %vm2425, %v2575, %v2576
      %v2578 = vrot.slane %v2519, 3
      %v2579 = vsel %vm2425, %v2576, %v2578
      %v2580 = vrot.slane %v2520, 3
      %v2581 = vrot.slane %v2521, 3
      %v2582 = vsel %vm2425, %v2580, %v2581
      %v2583 = vrot.slane %v2522, 3
      %v2584 = vsel %vm2425, %v2581, %v2583
      %v2585 = vrot.slane %v2523, 3
      %v2586 = vrot.slane %v2524, 3
      %v2587 = vsel %vm2425, %v2585, %v2586
      %v2588 = vrot.slane %v2525, 3
      %v2589 = vsel %vm2425, %v2586, %v2588
      %v2606 = vadd.f32 %v2482, %v2552
      %v2607 = vadd.f32 %v2483, %v2554
      %v2608 = vadd.f32 %v2484, %v2557
      %v2609 = vadd.f32 %v2485, %v2559
      %v2610 = vadd.f32 %v2486, %v2562
      %v2611 = vadd.f32 %v2487, %v2564
      %v2612 = vadd.f32 %v2488, %v2567
      %v2613 = vadd.f32 %v2489, %v2569
      %v2614 = vadd.f32 %v2490, %v2572
      %v2615 = vadd.f32 %v2491, %v2574
      %v2616 = vadd.f32 %v2492, %v2577
      %v2617 = vadd.f32 %v2493, %v2579
      %v2618 = vadd.f32 %v2494, %v2582
      %v2619 = vadd.f32 %v2495, %v2584
      %v2620 = vadd.f32 %v2496, %v2587
      %v2621 = vadd.f32 %v2497, %v2589
      %v2622 = vlaneseq
      %v2623 = vshrl.u32 %v2622, 7
      %v2624 = vsub.s32 3, %v2623
      %v2625 = vrot.slane %v378, %v2624
      %v2626 = vmul.f32 %v340, %v2625
      %v2627 = vmul.f32 %v341, %v2625
      %v2628 = vmul.f32 %v342, %v2625
      %v2629 = vmul.f32 %v343, %v2625
      %v2630 = vmul.f32 %v344, %v2625
      %v2631 = vmul.f32 %v345, %v2625
      %v2632 = vmul.f32 %v346, %v2625
      %v2633 = vmul.f32 %v347, %v2625
      %v2634 = vmul.f32 %v348, %v2625
      %v2635 = vmul.f32 %v349, %v2625
      %v2636 = vmul.f32 %v350, %v2625
      %v2637 = vmul.f32 %v351, %v2625
      %v2638 = vmul.f32 %v352, %v2625
      %v2639 = vmul.f32 %v353, %v2625
      %v2640 = vmul.f32 %v354, %v2625
      %v2641 = vmul.f32 %v355, %v2625
      %v2642 = vmul.f32 %v356, %v2625
      %v2643 = vmul.f32 %v357, %v2625
      %v2644 = vmul.f32 %v358, %v2625
      %v2645 = vmul.f32 %v359, %v2625
      %v2646 = vmul.f32 %v360, %v2625
      %v2647 = vmul.f32 %v361, %v2625
      %v2648 = vmul.f32 %v362, %v2625
      %v2649 = vmul.f32 %v363, %v2625
      %v2674 = vrot.slane %v2626, 3
      %v2675 = vrot.slane %v2627, 3
      %v2676 = vsel %vm2425, %v2674, %v2675
      %v2677 = vrot.slane %v2628, 3
      %v2678 = vsel %vm2425, %v2675, %v2677
      %v2679 = vrot.slane %v2629, 3
      %v2680 = vrot.slane %v2630, 3
      %v2681 = vsel %vm2425, %v2679, %v2680
      %v2682 = vrot.slane %v2631, 3
      %v2683 = vsel %vm2425, %v2680, %v2682
      %v2684 = vrot.slane %v2632, 3
      %v2685 = vrot.slane %v2633, 3
      %v2686 = vsel %vm2425, %v2684, %v2685
      %v2687 = vrot.slane %v2634, 3
      %v2688 = vsel %vm2425, %v2685, %v2687
      %v2689 = vrot.slane %v2635, 3
      %v2690 = vrot.slane %v2636, 3
      %v2691 = vsel %vm2425, %v2689, %v2690
      %v2692 = vrot.slane %v2637, 3
      %v2693 = vsel %vm2425, %v2690, %v2692
      %v2694 = vrot.slane %v2638, 3
      %v2695 = vrot.slane %v2639, 3
      %v2696 = vsel %vm2425, %v2694, %v2695
      %v2697 = vrot.slane %v2640, 3
      %v2698 = vsel %vm2425, %v2695, %v2697
      %v2699 = vrot.slane %v2641, 3
      %v2700 = vrot.slane %v2642, 3
      %v2701 = vsel %vm2425, %v2699, %v2700
      %v2702 = vrot.slane %v2643, 3
      %v2703 = vsel %vm2425, %v2700, %v2702
      %v2704 = vrot.slane %v2644, 3
      %v2705 = vrot.slane %v2645, 3
      %v2706 = vsel %vm2425, %v2704, %v2705
      %v2707 = vrot.slane %v2646, 3
      %v2708 = vsel %vm2425, %v2705, %v2707
      %v2709 = vrot.slane %v2647, 3
      %v2710 = vrot.slane %v2648, 3
      %v2711 = vsel %vm2425, %v2709, %v2710
      %v2712 = vrot.slane %v2649, 3
      %v2713 = vsel %vm2425, %v2710, %v2712
      %v2730 = vadd.f32 %v2606, %v2676
      %v2731 = vadd.f32 %v2607, %v2678
      %v2732 = vadd.f32 %v2608, %v2681
      %v2733 = vadd.f32 %v2609, %v2683
      %v2734 = vadd.f32 %v2610, %v2686
      %v2735 = vadd.f32 %v2611, %v2688
      %v2736 = vadd.f32 %v2612, %v2691
      %v2737 = vadd.f32 %v2613, %v2693
      %v2738 = vadd.f32 %v2614, %v2696
      %v2739 = vadd.f32 %v2615, %v2698
      %v2740 = vadd.f32 %v2616, %v2701
      %v2741 = vadd.f32 %v2617, %v2703
      %v2742 = vadd.f32 %v2618, %v2706
      %v2743 = vadd.f32 %v2619, %v2708
      %v2744 = vadd.f32 %v2620, %v2711
      %v2745 = vadd.f32 %v2621, %v2713
      %v2746 = vlaneseq
      %v2747 = vshrl.u32 %v2746, 7
      %v2748 = vsub.s32 3, %v2747
      %v2749 = vrot.slane %v379, %v2748
      %v2750 = vmul.f32 %v343, %v2749
      %v2751 = vmul.f32 %v344, %v2749
      %v2752 = vmul.f32 %v345, %v2749
      %v2753 = vmul.f32 %v346, %v2749
      %v2754 = vmul.f32 %v347, %v2749
      %v2755 = vmul.f32 %v348, %v2749
      %v2756 = vmul.f32 %v349, %v2749
      %v2757 = vmul.f32 %v350, %v2749
      %v2758 = vmul.f32 %v351, %v2749
      %v2759 = vmul.f32 %v352, %v2749
      %v2760 = vmul.f32 %v353, %v2749
      %v2761 = vmul.f32 %v354, %v2749
      %v2762 = vmul.f32 %v355, %v2749
      %v2763 = vmul.f32 %v356, %v2749
      %v2764 = vmul.f32 %v357, %v2749
      %v2765 = vmul.f32 %v358, %v2749
      %v2766 = vmul.f32 %v359, %v2749
      %v2767 = vmul.f32 %v360, %v2749
      %v2768 = vmul.f32 %v361, %v2749
      %v2769 = vmul.f32 %v362, %v2749
      %v2770 = vmul.f32 %v363, %v2749
      %v2771 = vmul.f32 %v364, %v2749
      %v2772 = vmul.f32 %v365, %v2749
      %v2773 = vmul.f32 %v366, %v2749
      %v2798 = vrot.slane %v2750, 3
      %v2799 = vrot.slane %v2751, 3
      %v2800 = vsel %vm2425, %v2798, %v2799
      %v2801 = vrot.slane %v2752, 3
      %v2802 = vsel %vm2425, %v2799, %v2801
      %v2803 = vrot.slane %v2753, 3
      %v2804 = vrot.slane %v2754, 3
      %v2805 = vsel %vm2425, %v2803, %v2804
      %v2806 = vrot.slane %v2755, 3
      %v2807 = vsel %vm2425, %v2804, %v2806
      %v2808 = vrot.slane %v2756, 3
      %v2809 = vrot.slane %v2757, 3
      %v2810 = vsel %vm2425, %v2808, %v2809
      %v2811 = vrot.slane %v2758, 3
      %v2812 = vsel %vm2425, %v2809, %v2811
      %v2813 = vrot.slane %v2759, 3
      %v2814 = vrot.slane %v2760, 3
      %v2815 = vsel %vm2425, %v2813, %v2814
      %v2816 = vrot.slane %v2761, 3
      %v2817 = vsel %vm2425, %v2814, %v2816
      %v2818 = vrot.slane %v2762, 3
      %v2819 = vrot.slane %v2763, 3
      %v2820 = vsel %vm2425, %v2818, %v2819
      %v2821 = vrot.slane %v2764, 3
      %v2822 = vsel %vm2425, %v2819, %v2821
      %v2823 = vrot.slane %v2765, 3
      %v2824 = vrot.slane %v2766, 3
      %v2825 = vsel %vm2425, %v2823, %v2824
      %v2826 = vrot.slane %v2767, 3
      %v2827 = vsel %vm2425, %v2824, %v2826
      %v2828 = vrot.slane %v2768, 3
      %v2829 = vrot.slane %v2769, 3
      %v2830 = vsel %vm2425, %v2828, %v2829
      %v2831 = vrot.slane %v2770, 3
      %v2832 = vsel %vm2425, %v2829, %v2831
      %v2833 = vrot.slane %v2771, 3
      %v2834 = vrot.slane %v2772, 3
      %v2835 = vsel %vm2425, %v2833, %v2834
      %v2836 = vrot.slane %v2773, 3
      %v2837 = vsel %vm2425, %v2834, %v2836
      %v2854 = vadd.f32 %v2730, %v2800
      %v2855 = vadd.f32 %v2731, %v2802
      %v2856 = vadd.f32 %v2732, %v2805
      %v2857 = vadd.f32 %v2733, %v2807
      %v2858 = vadd.f32 %v2734, %v2810
      %v2859 = vadd.f32 %v2735, %v2812
      %v2860 = vadd.f32 %v2736, %v2815
      %v2861 = vadd.f32 %v2737, %v2817
      %v2862 = vadd.f32 %v2738, %v2820
      %v2863 = vadd.f32 %v2739, %v2822
      %v2864 = vadd.f32 %v2740, %v2825
      %v2865 = vadd.f32 %v2741, %v2827
      %v2866 = vadd.f32 %v2742, %v2830
      %v2867 = vadd.f32 %v2743, %v2832
      %v2868 = vadd.f32 %v2744, %v2835
      %v2869 = vadd.f32 %v2745, %v2837
      %v2870 = vlaneseq
      %v2871 = vshrl.u32 %v2870, 7
      %v2872 = vsub.s32 3, %v2871
      %v2873 = vrot.slane %v380, %v2872
      %v2874 = vmul.f32 %v346, %v2873
      %v2875 = vmul.f32 %v347, %v2873
      %v2876 = vmul.f32 %v348, %v2873
      %v2877 = vmul.f32 %v349, %v2873
      %v2878 = vmul.f32 %v350, %v2873
      %v2879 = vmul.f32 %v351, %v2873
      %v2880 = vmul.f32 %v352, %v2873
      %v2881 = vmul.f32 %v353, %v2873
      %v2882 = vmul.f32 %v354, %v2873
      %v2883 = vmul.f32 %v355, %v2873
      %v2884 = vmul.f32 %v356, %v2873
      %v2885 = vmul.f32 %v357, %v2873
      %v2886 = vmul.f32 %v358, %v2873
      %v2887 = vmul.f32 %v359, %v2873
      %v2888 = vmul.f32 %v360, %v2873
      %v2889 = vmul.f32 %v361, %v2873
      %v2890 = vmul.f32 %v362, %v2873
      %v2891 = vmul.f32 %v363, %v2873
      %v2892 = vmul.f32 %v364, %v2873
      %v2893 = vmul.f32 %v365, %v2873
      %v2894 = vmul.f32 %v366, %v2873
      %v2895 = vmul.f32 %v367, %v2873
      %v2896 = vmul.f32 %v368, %v2873
      %v2897 = vmul.f32 %v369, %v2873
      %v2922 = vrot.slane %v2874, 3
      %v2923 = vrot.slane %v2875, 3
      %v2924 = vsel %vm2425, %v2922, %v2923
      %v2925 = vrot.slane %v2876, 3
      %v2926 = vsel %vm2425, %v2923, %v2925
      %v2927 = vrot.slane %v2877, 3
      %v2928 = vrot.slane %v2878, 3
      %v2929 = vsel %vm2425, %v2927, %v2928
      %v2930 = vrot.slane %v2879, 3
      %v2931 = vsel %vm2425, %v2928, %v2930
      %v2932 = vrot.slane %v2880, 3
      %v2933 = vrot.slane %v2881, 3
      %v2934 = vsel %vm2425, %v2932, %v2933
      %v2935 = vrot.slane %v2882, 3
      %v2936 = vsel %vm2425, %v2933, %v2935
      %v2937 = vrot.slane %v2883, 3
      %v2938 = vrot.slane %v2884, 3
      %v2939 = vsel %vm2425, %v2937, %v2938
      %v2940 = vrot.slane %v2885, 3
      %v2941 = vsel %vm2425, %v2938, %v2940
      %v2942 = vrot.slane %v2886, 3
      %v2943 = vrot.slane %v2887, 3
      %v2944 = vsel %vm2425, %v2942, %v2943
      %v2945 = vrot.slane %v2888, 3
      %v2946 = vsel %vm2425, %v2943, %v2945
      %v2947 = vrot.slane %v2889, 3
      %v2948 = vrot.slane %v2890, 3
      %v2949 = vsel %vm2425, %v2947, %v2948
      %v2950 = vrot.slane %v2891, 3
      %v2951 = vsel %vm2425, %v2948, %v2950
      %v2952 = vrot.slane %v2892, 3
      %v2953 = vrot.slane %v2893, 3
      %v2954 = vsel %vm2425, %v2952, %v2953
      %v2955 = vrot.slane %v2894, 3
      %v2956 = vsel %vm2425, %v2953, %v2955
      %v2957 = vrot.slane %v2895, 3
      %v2958 = vrot.slane %v2896, 3
      %v2959 = vsel %vm2425, %v2957, %v2958
      %v2960 = vrot.slane %v2897, 3
      %v2961 = vsel %vm2425, %v2958, %v2960
      %v2978 = vadd.f32 %v2854, %v2924
      %v2979 = vadd.f32 %v2855, %v2926
      %v2980 = vadd.f32 %v2856, %v2929
      %v2981 = vadd.f32 %v2857, %v2931
      %v2982 = vadd.f32 %v2858, %v2934
      %v2983 = vadd.f32 %v2859, %v2936
      %v2984 = vadd.f32 %v2860, %v2939
      %v2985 = vadd.f32 %v2861, %v2941
      %v2986 = vadd.f32 %v2862, %v2944
      %v2987 = vadd.f32 %v2863, %v2946
      %v2988 = vadd.f32 %v2864, %v2949
      %v2989 = vadd.f32 %v2865, %v2951
      %v2990 = vadd.f32 %v2866, %v2954
      %v2991 = vadd.f32 %v2867, %v2956
      %v2992 = vadd.f32 %v2868, %v2959
      %v2993 = vadd.f32 %v2869, %v2961
      %v2994 = vlaneseq
      %v2995 = vshrl.u32 %v2994, 7
      %v2996 = vsub.s32 3, %v2995
      %v2997 = vrot.slane %v381, %v2996
      %v2998 = vmul.f32 %v349, %v2997
      %v2999 = vmul.f32 %v350, %v2997
      %v3000 = vmul.f32 %v351, %v2997
      %v3001 = vmul.f32 %v352, %v2997
      %v3002 = vmul.f32 %v353, %v2997
      %v3003 = vmul.f32 %v354, %v2997
      %v3004 = vmul.f32 %v355, %v2997
      %v3005 = vmul.f32 %v356, %v2997
      %v3006 = vmul.f32 %v357, %v2997
      %v3007 = vmul.f32 %v358, %v2997
      %v3008 = vmul.f32 %v359, %v2997
      %v3009 = vmul.f32 %v360, %v2997
      %v3010 = vmul.f32 %v361, %v2997
      %v3011 = vmul.f32 %v362, %v2997
      %v3012 = vmul.f32 %v363, %v2997
      %v3013 = vmul.f32 %v364, %v2997
      %v3014 = vmul.f32 %v365, %v2997
      %v3015 = vmul.f32 %v366, %v2997
      %v3016 = vmul.f32 %v367, %v2997
      %v3017 = vmul.f32 %v368, %v2997
      %v3018 = vmul.f32 %v369, %v2997
      %v3019 = vmul.f32 %v370, %v2997
      %v3020 = vmul.f32 %v371, %v2997
      %v3021 = vmul.f32 %v372, %v2997
      %v3046 = vrot.slane %v2998, 3
      %v3047 = vrot.slane %v2999, 3
      %v3048 = vsel %vm2425, %v3046, %v3047
      %v3049 = vrot.slane %v3000, 3
      %v3050 = vsel %vm2425, %v3047, %v3049
      %v3051 = vrot.slane %v3001, 3
      %v3052 = vrot.slane %v3002, 3
      %v3053 = vsel %vm2425, %v3051, %v3052
      %v3054 = vrot.slane %v3003, 3
      %v3055 = vsel %vm2425, %v3052, %v3054
      %v3056 = vrot.slane %v3004, 3
      %v3057 = vrot.slane %v3005, 3
      %v3058 = vsel %vm2425, %v3056, %v3057
      %v3059 = vrot.slane %v3006, 3
      %v3060 = vsel %vm2425, %v3057, %v3059
      %v3061 = vrot.slane %v3007, 3
      %v3062 = vrot.slane %v3008, 3
      %v3063 = vsel %vm2425, %v3061, %v3062
      %v3064 = vrot.slane %v3009, 3
      %v3065 = vsel %vm2425, %v3062, %v3064
      %v3066 = vrot.slane %v3010, 3
      %v3067 = vrot.slane %v3011, 3
      %v3068 = vsel %vm2425, %v3066, %v3067
      %v3069 = vrot.slane %v3012, 3
      %v3070 = vsel %vm2425, %v3067, %v3069
      %v3071 = vrot.slane %v3013, 3
      %v3072 = vrot.slane %v3014, 3
      %v3073 = vsel %vm2425, %v3071, %v3072
      %v3074 = vrot.slane %v3015, 3
      %v3075 = vsel %vm2425, %v3072, %v3074
      %v3076 = vrot.slane %v3016, 3
      %v3077 = vrot.slane %v3017, 3
      %v3078 = vsel %vm2425, %v3076, %v3077
      %v3079 = vrot.slane %v3018, 3
      %v3080 = vsel %vm2425, %v3077, %v3079
      %v3081 = vrot.slane %v3019, 3
      %v3082 = vrot.slane %v3020, 3
      %v3083 = vsel %vm2425, %v3081, %v3082
      %v3084 = vrot.slane %v3021, 3
      %v3085 = vsel %vm2425, %v3082, %v3084
      %v3102 = vadd.f32 %v2978, %v3048
      %v3103 = vadd.f32 %v2979, %v3050
      %v3104 = vadd.f32 %v2980, %v3053
      %v3105 = vadd.f32 %v2981, %v3055
      %v3106 = vadd.f32 %v2982, %v3058
      %v3107 = vadd.f32 %v2983, %v3060
      %v3108 = vadd.f32 %v2984, %v3063
      %v3109 = vadd.f32 %v2985, %v3065
      %v3110 = vadd.f32 %v2986, %v3068
      %v3111 = vadd.f32 %v2987, %v3070
      %v3112 = vadd.f32 %v2988, %v3073
      %v3113 = vadd.f32 %v2989, %v3075
      %v3114 = vadd.f32 %v2990, %v3078
      %v3115 = vadd.f32 %v2991, %v3080
      %v3116 = vadd.f32 %v2992, %v3083
      %v3117 = vadd.f32 %v2993, %v3085
      %v3118 = vlaneseq
      %v3119 = vshrl.u32 %v3118, 7
      %v3120 = vsub.s32 3, %v3119
      %v3121 = vrot.slane %v382, %v3120
      %v3122 = vmul.f32 %v352, %v3121
      %v3123 = vmul.f32 %v353, %v3121
      %v3124 = vmul.f32 %v354, %v3121
      %v3125 = vmul.f32 %v355, %v3121
      %v3126 = vmul.f32 %v356, %v3121
      %v3127 = vmul.f32 %v357, %v3121
      %v3128 = vmul.f32 %v358, %v3121
      %v3129 = vmul.f32 %v359, %v3121
      %v3130 = vmul.f32 %v360, %v3121
      %v3131 = vmul.f32 %v361, %v3121
      %v3132 = vmul.f32 %v362, %v3121
      %v3133 = vmul.f32 %v363, %v3121
      %v3134 = vmul.f32 %v364, %v3121
      %v3135 = vmul.f32 %v365, %v3121
      %v3136 = vmul.f32 %v366, %v3121
      %v3137 = vmul.f32 %v367, %v3121
      %v3138 = vmul.f32 %v368, %v3121
      %v3139 = vmul.f32 %v369, %v3121
      %v3140 = vmul.f32 %v370, %v3121
      %v3141 = vmul.f32 %v371, %v3121
      %v3142 = vmul.f32 %v372, %v3121
      %v3143 = vmul.f32 %v373, %v3121
      %v3144 = vmul.f32 %v374, %v3121
      %v3145 = vmul.f32 %v375, %v3121
      %v3170 = vrot.slane %v3122, 3
      %v3171 = vrot.slane %v3123, 3
      %v3172 = vsel %vm2425, %v3170, %v3171
      %v3173 = vrot.slane %v3124, 3
      %v3174 = vsel %vm2425, %v3171, %v3173
      %v3175 = vrot.slane %v3125, 3
      %v3176 = vrot.slane %v3126, 3
      %v3177 = vsel %vm2425, %v3175, %v3176
      %v3178 = vrot.slane %v3127, 3
      %v3179 = vsel %vm2425, %v3176, %v3178
      %v3180 = vrot.slane %v3128, 3
      %v3181 = vrot.slane %v3129, 3
      %v3182 = vsel %vm2425, %v3180, %v3181
      %v3183 = vrot.slane %v3130, 3
      %v3184 = vsel %vm2425, %v3181, %v3183
      %v3185 = vrot.slane %v3131, 3
      %v3186 = vrot.slane %v3132, 3
      %v3187 = vsel %vm2425, %v3185, %v3186
      %v3188 = vrot.slane %v3133, 3
      %v3189 = vsel %vm2425, %v3186, %v3188
      %v3190 = vrot.slane %v3134, 3
      %v3191 = vrot.slane %v3135, 3
      %v3192 = vsel %vm2425, %v3190, %v3191
      %v3193 = vrot.slane %v3136, 3
      %v3194 = vsel %vm2425, %v3191, %v3193
      %v3195 = vrot.slane %v3137, 3
      %v3196 = vrot.slane %v3138, 3
      %v3197 = vsel %vm2425, %v3195, %v3196
      %v3198 = vrot.slane %v3139, 3
      %v3199 = vsel %vm2425, %v3196, %v3198
      %v3200 = vrot.slane %v3140, 3
      %v3201 = vrot.slane %v3141, 3
      %v3202 = vsel %vm2425, %v3200, %v3201
      %v3203 = vrot.slane %v3142, 3
      %v3204 = vsel %vm2425, %v3201, %v3203
      %v3205 = vrot.slane %v3143, 3
      %v3206 = vrot.slane %v3144, 3
      %v3207 = vsel %vm2425, %v3205, %v3206
      %v3208 = vrot.slane %v3145, 3
      %v3209 = vsel %vm2425, %v3206, %v3208
      %v3226 = vadd.f32 %v3102, %v3172
      %v3227 = vadd.f32 %v3103, %v3174
      %v3228 = vadd.f32 %v3104, %v3177
      %v3229 = vadd.f32 %v3105, %v3179
      %v3230 = vadd.f32 %v3106, %v3182
      %v3231 = vadd.f32 %v3107, %v3184
      %v3232 = vadd.f32 %v3108, %v3187
      %v3233 = vadd.f32 %v3109, %v3189
      %v3234 = vadd.f32 %v3110, %v3192
      %v3235 = vadd.f32 %v3111, %v3194
      %v3236 = vadd.f32 %v3112, %v3197
      %v3237 = vadd.f32 %v3113, %v3199
      %v3238 = vadd.f32 %v3114, %v3202
      %v3239 = vadd.f32 %v3115, %v3204
      %v3240 = vadd.f32 %v3116, %v3207
      %v3241 = vadd.f32 %v3117, %v3209
      %v3242 = vlaneseq
      %v3243 = vshrl.u32 %v3242, 7
      %v3244 = vsub.s32 4, %v3243
      %v3245 = vrot.slane %v376, %v3244
      %v3246 = vmul.f32 %v334, %v3245
      %v3247 = vmul.f32 %v335, %v3245
      %v3248 = vmul.f32 %v336, %v3245
      %v3249 = vmul.f32 %v337, %v3245
      %v3250 = vmul.f32 %v338, %v3245
      %v3251 = vmul.f32 %v339, %v3245
      %v3252 = vmul.f32 %v340, %v3245
      %v3253 = vmul.f32 %v341, %v3245
      %v3254 = vmul.f32 %v342, %v3245
      %v3255 = vmul.f32 %v343, %v3245
      %v3256 = vmul.f32 %v344, %v3245
      %v3257 = vmul.f32 %v345, %v3245
      %v3258 = vmul.f32 %v346, %v3245
      %v3259 = vmul.f32 %v347, %v3245
      %v3260 = vmul.f32 %v348, %v3245
      %v3261 = vmul.f32 %v349, %v3245
      %v3262 = vmul.f32 %v350, %v3245
      %v3263 = vmul.f32 %v351, %v3245
      %v3264 = vmul.f32 %v352, %v3245
      %v3265 = vmul.f32 %v353, %v3245
      %v3266 = vmul.f32 %v354, %v3245
      %v3267 = vmul.f32 %v355, %v3245
      %v3268 = vmul.f32 %v356, %v3245
      %v3269 = vmul.f32 %v357, %v3245
      %vm3294 = vcmask 1043456
      %v3295 = vrot.slane %v3246, 4
      %v3296 = vrot.slane %v3247, 4
      %v3297 = vsel %vm3294, %v3295, %v3296
      %v3298 = vrot.slane %v3248, 4
      %v3299 = vsel %vm3294, %v3296, %v3298
      %v3300 = vrot.slane %v3249, 4
      %v3301 = vrot.slane %v3250, 4
      %v3302 = vsel %vm3294, %v3300, %v3301
      %v3303 = vrot.slane %v3251, 4
      %v3304 = vsel %vm3294, %v3301, %v3303
      %v3305 = vrot.slane %v3252, 4
      %v3306 = vrot.slane %v3253, 4
      %v3307 = vsel %vm3294, %v3305, %v3306
      %v3308 = vrot.slane %v3254, 4
      %v3309 = vsel %vm3294, %v3306, %v3308
      %v3310 = vrot.slane %v3255, 4
      %v3311 = vrot.slane %v3256, 4
      %v3312 = vsel %vm3294, %v3310, %v3311
      %v3313 = vrot.slane %v3257, 4
      %v3314 = vsel %vm3294, %v3311, %v3313
      %v3315 = vrot.slane %v3258, 4
      %v3316 = vrot.slane %v3259, 4
      %v3317 = vsel %vm3294, %v3315, %v3316
      %v3318 = vrot.slane %v3260, 4
      %v3319 = vsel %vm3294, %v3316, %v3318
      %v3320 = vrot.slane %v3261, 4
      %v3321 = vrot.slane %v3262, 4
      %v3322 = vsel %vm3294, %v3320, %v3321
      %v3323 = vrot.slane %v3263, 4
      %v3324 = vsel %vm3294, %v3321, %v3323
      %v3325 = vrot.slane %v3264, 4
      %v3326 = vrot.slane %v3265, 4
      %v3327 = vsel %vm3294, %v3325, %v3326
      %v3328 = vrot.slane %v3266, 4
      %v3329 = vsel %vm3294, %v3326, %v3328
      %v3330 = vrot.slane %v3267, 4
      %v3331 = vrot.slane %v3268, 4
      %v3332 = vsel %vm3294, %v3330, %v3331
      %v3333 = vrot.slane %v3269, 4
      %v3334 = vsel %vm3294, %v3331, %v3333
      %v3351 = vadd.f32 %v3226, %v3297
      %v3352 = vadd.f32 %v3227, %v3299
      %v3353 = vadd.f32 %v3228, %v3302
      %v3354 = vadd.f32 %v3229, %v3304
      %v3355 = vadd.f32 %v3230, %v3307
      %v3356 = vadd.f32 %v3231, %v3309
      %v3357 = vadd.f32 %v3232, %v3312
      %v3358 = vadd.f32 %v3233, %v3314
      %v3359 = vadd.f32 %v3234, %v3317
      %v3360 = vadd.f32 %v3235, %v3319
      %v3361 = vadd.f32 %v3236, %v3322
      %v3362 = vadd.f32 %v3237, %v3324
      %v3363 = vadd.f32 %v3238, %v3327
      %v3364 = vadd.f32 %v3239, %v3329
      %v3365 = vadd.f32 %v3240, %v3332
      %v3366 = vadd.f32 %v3241, %v3334
      %v3367 = vlaneseq
      %v3368 = vshrl.u32 %v3367, 7
      %v3369 = vsub.s32 4, %v3368
      %v3370 = vrot.slane %v377, %v3369
      %v3371 = vmul.f32 %v337, %v3370
      %v3372 = vmul.f32 %v338, %v3370
      %v3373 = vmul.f32 %v339, %v3370
      %v3374 = vmul.f32 %v340, %v3370
      %v3375 = vmul.f32 %v341, %v3370
      %v3376 = vmul.f32 %v342, %v3370
      %v3377 = vmul.f32 %v343, %v3370
      %v3378 = vmul.f32 %v344, %v3370
      %v3379 = vmul.f32 %v345, %v3370
      %v3380 = vmul.f32 %v346, %v3370
      %v3381 = vmul.f32 %v347, %v3370
      %v3382 = vmul.f32 %v348, %v3370
      %v3383 = vmul.f32 %v349, %v3370
      %v3384 = vmul.f32 %v350, %v3370
      %v3385 = vmul.f32 %v351, %v3370
      %v3386 = vmul.f32 %v352, %v3370
      %v3387 = vmul.f32 %v353, %v3370
      %v3388 = vmul.f32 %v354, %v3370
      %v3389 = vmul.f32 %v355, %v3370
      %v3390 = vmul.f32 %v356, %v3370
      %v3391 = vmul.f32 %v357, %v3370
      %v3392 = vmul.f32 %v358, %v3370
      %v3393 = vmul.f32 %v359, %v3370
      %v3394 = vmul.f32 %v360, %v3370
      %v3419 = vrot.slane %v3371, 4
      %v3420 = vrot.slane %v3372, 4
      %v3421 = vsel %vm3294, %v3419, %v3420
      %v3422 = vrot.slane %v3373, 4
      %v3423 = vsel %vm3294, %v3420, %v3422
      %v3424 = vrot.slane %v3374, 4
      %v3425 = vrot.slane %v3375, 4
      %v3426 = vsel %vm3294, %v3424, %v3425
      %v3427 = vrot.slane %v3376, 4
      %v3428 = vsel %vm3294, %v3425, %v3427
      %v3429 = vrot.slane %v3377, 4
      %v3430 = vrot.slane %v3378, 4
      %v3431 = vsel %vm3294, %v3429, %v3430
      %v3432 = vrot.slane %v3379, 4
      %v3433 = vsel %vm3294, %v3430, %v3432
      %v3434 = vrot.slane %v3380, 4
      %v3435 = vrot.slane %v3381, 4
      %v3436 = vsel %vm3294, %v3434, %v3435
      %v3437 = vrot.slane %v3382, 4
      %v3438 = vsel %vm3294, %v3435, %v3437
      %v3439 = vrot.slane %v3383, 4
      %v3440 = vrot.slane %v3384, 4
      %v3441 = vsel %vm3294, %v3439, %v3440
      %v3442 = vrot.slane %v3385, 4
      %v3443 = vsel %vm3294, %v3440, %v3442
      %v3444 = vrot.slane %v3386, 4
      %v3445 = vrot.slane %v3387, 4
      %v3446 = vsel %vm3294, %v3444, %v3445
      %v3447 = vrot.slane %v3388, 4
      %v3448 = vsel %vm3294, %v3445, %v3447
      %v3449 = vrot.slane %v3389, 4
      %v3450 = vrot.slane %v3390, 4
      %v3451 = vsel %vm3294, %v3449, %v3450
      %v3452 = vrot.slane %v3391, 4
      %v3453 = vsel %vm3294, %v3450, %v3452
      %v3454 = vrot.slane %v3392, 4
      %v3455 = vrot.slane %v3393, 4
      %v3456 = vsel %vm3294, %v3454, %v3455
      %v3457 = vrot.slane %v3394, 4
      %v3458 = vsel %vm3294, %v3455, %v3457
      %v3475 = vadd.f32 %v3351, %v3421
      %v3476 = vadd.f32 %v3352, %v3423
      %v3477 = vadd.f32 %v3353, %v3426
      %v3478 = vadd.f32 %v3354, %v3428
      %v3479 = vadd.f32 %v3355, %v3431
      %v3480 = vadd.f32 %v3356, %v3433
      %v3481 = vadd.f32 %v3357, %v3436
      %v3482 = vadd.f32 %v3358, %v3438
      %v3483 = vadd.f32 %v3359, %v3441
      %v3484 = vadd.f32 %v3360, %v3443
      %v3485 = vadd.f32 %v3361, %v3446
      %v3486 = vadd.f32 %v3362, %v3448
      %v3487 = vadd.f32 %v3363, %v3451
      %v3488 = vadd.f32 %v3364, %v3453
      %v3489 = vadd.f32 %v3365, %v3456
      %v3490 = vadd.f32 %v3366, %v3458
      %v3491 = vlaneseq
      %v3492 = vshrl.u32 %v3491, 7
      %v3493 = vsub.s32 4, %v3492
      %v3494 = vrot.slane %v378, %v3493
      %v3495 = vmul.f32 %v340, %v3494
      %v3496 = vmul.f32 %v341, %v3494
      %v3497 = vmul.f32 %v342, %v3494
      %v3498 = vmul.f32 %v343, %v3494
      %v3499 = vmul.f32 %v344, %v3494
      %v3500 = vmul.f32 %v345, %v3494
      %v3501 = vmul.f32 %v346, %v3494
      %v3502 = vmul.f32 %v347, %v3494
      %v3503 = vmul.f32 %v348, %v3494
      %v3504 = vmul.f32 %v349, %v3494
      %v3505 = vmul.f32 %v350, %v3494
      %v3506 = vmul.f32 %v351, %v3494
      %v3507 = vmul.f32 %v352, %v3494
      %v3508 = vmul.f32 %v353, %v3494
      %v3509 = vmul.f32 %v354, %v3494
      %v3510 = vmul.f32 %v355, %v3494
      %v3511 = vmul.f32 %v356, %v3494
      %v3512 = vmul.f32 %v357, %v3494
      %v3513 = vmul.f32 %v358, %v3494
      %v3514 = vmul.f32 %v359, %v3494
      %v3515 = vmul.f32 %v360, %v3494
      %v3516 = vmul.f32 %v361, %v3494
      %v3517 = vmul.f32 %v362, %v3494
      %v3518 = vmul.f32 %v363, %v3494
      %v3543 = vrot.slane %v3495, 4
      %v3544 = vrot.slane %v3496, 4
      %v3545 = vsel %vm3294, %v3543, %v3544
      %v3546 = vrot.slane %v3497, 4
      %v3547 = vsel %vm3294, %v3544, %v3546
      %v3548 = vrot.slane %v3498, 4
      %v3549 = vrot.slane %v3499, 4
      %v3550 = vsel %vm3294, %v3548, %v3549
      %v3551 = vrot.slane %v3500, 4
      %v3552 = vsel %vm3294, %v3549, %v3551
      %v3553 = vrot.slane %v3501, 4
      %v3554 = vrot.slane %v3502, 4
      %v3555 = vsel %vm3294, %v3553, %v3554
      %v3556 = vrot.slane %v3503, 4
      %v3557 = vsel %vm3294, %v3554, %v3556
      %v3558 = vrot.slane %v3504, 4
      %v3559 = vrot.slane %v3505, 4
      %v3560 = vsel %vm3294, %v3558, %v3559
      %v3561 = vrot.slane %v3506, 4
      %v3562 = vsel %vm3294, %v3559, %v3561
      %v3563 = vrot.slane %v3507, 4
      %v3564 = vrot.slane %v3508, 4
      %v3565 = vsel %vm3294, %v3563, %v3564
      %v3566 = vrot.slane %v3509, 4
      %v3567 = vsel %vm3294, %v3564, %v3566
      %v3568 = vrot.slane %v3510, 4
      %v3569 = vrot.slane %v3511, 4
      %v3570 = vsel %vm3294, %v3568, %v3569
      %v3571 = vrot.slane %v3512, 4
      %v3572 = vsel %vm3294, %v3569, %v3571
      %v3573 = vrot.slane %v3513, 4
      %v3574 = vrot.slane %v3514, 4
      %v3575 = vsel %vm3294, %v3573, %v3574
      %v3576 = vrot.slane %v3515, 4
      %v3577 = vsel %vm3294, %v3574, %v3576
      %v3578 = vrot.slane %v3516, 4
      %v3579 = vrot.slane %v3517, 4
      %v3580 = vsel %vm3294, %v3578, %v3579
      %v3581 = vrot.slane %v3518, 4
      %v3582 = vsel %vm3294, %v3579, %v3581
      %v3599 = vadd.f32 %v3475, %v3545
      %v3600 = vadd.f32 %v3476, %v3547
      %v3601 = vadd.f32 %v3477, %v3550
      %v3602 = vadd.f32 %v3478, %v3552
      %v3603 = vadd.f32 %v3479, %v3555
      %v3604 = vadd.f32 %v3480, %v3557
      %v3605 = vadd.f32 %v3481, %v3560
      %v3606 = vadd.f32 %v3482, %v3562
      %v3607 = vadd.f32 %v3483, %v3565
      %v3608 = vadd.f32 %v3484, %v3567
      %v3609 = vadd.f32 %v3485, %v3570
      %v3610 = vadd.f32 %v3486, %v3572
      %v3611 = vadd.f32 %v3487, %v3575
      %v3612 = vadd.f32 %v3488, %v3577
      %v3613 = vadd.f32 %v3489, %v3580
      %v3614 = vadd.f32 %v3490, %v3582
      %v3615 = vlaneseq
      %v3616 = vshrl.u32 %v3615, 7
      %v3617 = vsub.s32 4, %v3616
      %v3618 = vrot.slane %v379, %v3617
      %v3619 = vmul.f32 %v343, %v3618
      %v3620 = vmul.f32 %v344, %v3618
      %v3621 = vmul.f32 %v345, %v3618
      %v3622 = vmul.f32 %v346, %v3618
      %v3623 = vmul.f32 %v347, %v3618
      %v3624 = vmul.f32 %v348, %v3618
      %v3625 = vmul.f32 %v349, %v3618
      %v3626 = vmul.f32 %v350, %v3618
      %v3627 = vmul.f32 %v351, %v3618
      %v3628 = vmul.f32 %v352, %v3618
      %v3629 = vmul.f32 %v353, %v3618
      %v3630 = vmul.f32 %v354, %v3618
      %v3631 = vmul.f32 %v355, %v3618
      %v3632 = vmul.f32 %v356, %v3618
      %v3633 = vmul.f32 %v357, %v3618
      %v3634 = vmul.f32 %v358, %v3618
      %v3635 = vmul.f32 %v359, %v3618
      %v3636 = vmul.f32 %v360, %v3618
      %v3637 = vmul.f32 %v361, %v3618
      %v3638 = vmul.f32 %v362, %v3618
      %v3639 = vmul.f32 %v363, %v3618
      %v3640 = vmul.f32 %v364, %v3618
      %v3641 = vmul.f32 %v365, %v3618
      %v3642 = vmul.f32 %v366, %v3618
      %v3667 = vrot.slane %v3619, 4
      %v3668 = vrot.slane %v3620, 4
      %v3669 = vsel %vm3294, %v3667, %v3668
      %v3670 = vrot.slane %v3621, 4
      %v3671 = vsel %vm3294, %v3668, %v3670
      %v3672 = vrot.slane %v3622, 4
      %v3673 = vrot.slane %v3623, 4
      %v3674 = vsel %vm3294, %v3672, %v3673
      %v3675 = vrot.slane %v3624, 4
      %v3676 = vsel %vm3294, %v3673, %v3675
      %v3677 = vrot.slane %v3625, 4
      %v3678 = vrot.slane %v3626, 4
      %v3679 = vsel %vm3294, %v3677, %v3678
      %v3680 = vrot.slane %v3627, 4
      %v3681 = vsel %vm3294, %v3678, %v3680
      %v3682 = vrot.slane %v3628, 4
      %v3683 = vrot.slane %v3629, 4
      %v3684 = vsel %vm3294, %v3682, %v3683
      %v3685 = vrot.slane %v3630, 4
      %v3686 = vsel %vm3294, %v3683, %v3685
      %v3687 = vrot.slane %v3631, 4
      %v3688 = vrot.slane %v3632, 4
      %v3689 = vsel %vm3294, %v3687, %v3688
      %v3690 = vrot.slane %v3633, 4
      %v3691 = vsel %vm3294, %v3688, %v3690
      %v3692 = vrot.slane %v3634, 4
      %v3693 = vrot.slane %v3635, 4
      %v3694 = vsel %vm3294, %v3692, %v3693
      %v3695 = vrot.slane %v3636, 4
      %v3696 = vsel %vm3294, %v3693, %v3695
      %v3697 = vrot.slane %v3637, 4
      %v3698 = vrot.slane %v3638, 4
      %v3699 = vsel %vm3294, %v3697, %v3698
      %v3700 = vrot.slane %v3639, 4
      %v3701 = vsel %vm3294, %v3698, %v3700
      %v3702 = vrot.slane %v3640, 4
      %v3703 = vrot.slane %v3641, 4
      %v3704 = vsel %vm3294, %v3702, %v3703
      %v3705 = vrot.slane %v3642, 4
      %v3706 = vsel %vm3294, %v3703, %v3705
      %v3723 = vadd.f32 %v3599, %v3669
      %v3724 = vadd.f32 %v3600, %v3671
      %v3725 = vadd.f32 %v3601, %v3674
      %v3726 = vadd.f32 %v3602, %v3676
      %v3727 = vadd.f32 %v3603, %v3679
      %v3728 = vadd.f32 %v3604, %v3681
      %v3729 = vadd.f32 %v3605, %v3684
      %v3730 = vadd.f32 %v3606, %v3686
      %v3731 = vadd.f32 %v3607, %v3689
      %v3732 = vadd.f32 %v3608, %v3691
      %v3733 = vadd.f32 %v3609, %v3694
      %v3734 = vadd.f32 %v3610, %v3696
      %v3735 = vadd.f32 %v3611, %v3699
      %v3736 = vadd.f32 %v3612, %v3701
      %v3737 = vadd.f32 %v3613, %v3704
      %v3738 = vadd.f32 %v3614, %v3706
      %v3739 = vlaneseq
      %v3740 = vshrl.u32 %v3739, 7
      %v3741 = vsub.s32 4, %v3740
      %v3742 = vrot.slane %v380, %v3741
      %v3743 = vmul.f32 %v346, %v3742
      %v3744 = vmul.f32 %v347, %v3742
      %v3745 = vmul.f32 %v348, %v3742
      %v3746 = vmul.f32 %v349, %v3742
      %v3747 = vmul.f32 %v350, %v3742
      %v3748 = vmul.f32 %v351, %v3742
      %v3749 = vmul.f32 %v352, %v3742
      %v3750 = vmul.f32 %v353, %v3742
      %v3751 = vmul.f32 %v354, %v3742
      %v3752 = vmul.f32 %v355, %v3742
      %v3753 = vmul.f32 %v356, %v3742
      %v3754 = vmul.f32 %v357, %v3742
      %v3755 = vmul.f32 %v358, %v3742
      %v3756 = vmul.f32 %v359, %v3742
      %v3757 = vmul.f32 %v360, %v3742
      %v3758 = vmul.f32 %v361, %v3742
      %v3759 = vmul.f32 %v362, %v3742
      %v3760 = vmul.f32 %v363, %v3742
      %v3761 = vmul.f32 %v364, %v3742
      %v3762 = vmul.f32 %v365, %v3742
      %v3763 = vmul.f32 %v366, %v3742
      %v3764 = vmul.f32 %v367, %v3742
      %v3765 = vmul.f32 %v368, %v3742
      %v3766 = vmul.f32 %v369, %v3742
      %v3791 = vrot.slane %v3743, 4
      %v3792 = vrot.slane %v3744, 4
      %v3793 = vsel %vm3294, %v3791, %v3792
      %v3794 = vrot.slane %v3745, 4
      %v3795 = vsel %vm3294, %v3792, %v3794
      %v3796 = vrot.slane %v3746, 4
      %v3797 = vrot.slane %v3747, 4
      %v3798 = vsel %vm3294, %v3796, %v3797
      %v3799 = vrot.slane %v3748, 4
      %v3800 = vsel %vm3294, %v3797, %v3799
      %v3801 = vrot.slane %v3749, 4
      %v3802 = vrot.slane %v3750, 4
      %v3803 = vsel %vm3294, %v3801, %v3802
      %v3804 = vrot.slane %v3751, 4
      %v3805 = vsel %vm3294, %v3802, %v3804
      %v3806 = vrot.slane %v3752, 4
      %v3807 = vrot.slane %v3753, 4
      %v3808 = vsel %vm3294, %v3806, %v3807
      %v3809 = vrot.slane %v3754, 4
      %v3810 = vsel %vm3294, %v3807, %v3809
      %v3811 = vrot.slane %v3755, 4
      %v3812 = vrot.slane %v3756, 4
      %v3813 = vsel %vm3294, %v3811, %v3812
      %v3814 = vrot.slane %v3757, 4
      %v3815 = vsel %vm3294, %v3812, %v3814
      %v3816 = vrot.slane %v3758, 4
      %v3817 = vrot.slane %v3759, 4
      %v3818 = vsel %vm3294, %v3816, %v3817
      %v3819 = vrot.slane %v3760, 4
      %v3820 = vsel %vm3294, %v3817, %v3819
      %v3821 = vrot.slane %v3761, 4
      %v3822 = vrot.slane %v3762, 4
      %v3823 = vsel %vm3294, %v3821, %v3822
      %v3824 = vrot.slane %v3763, 4
      %v3825 = vsel %vm3294, %v3822, %v3824
      %v3826 = vrot.slane %v3764, 4
      %v3827 = vrot.slane %v3765, 4
      %v3828 = vsel %vm3294, %v3826, %v3827
      %v3829 = vrot.slane %v3766, 4
      %v3830 = vsel %vm3294, %v3827, %v3829
      %v3847 = vadd.f32 %v3723, %v3793
      %v3848 = vadd.f32 %v3724, %v3795
      %v3849 = vadd.f32 %v3725, %v3798
      %v3850 = vadd.f32 %v3726, %v3800
      %v3851 = vadd.f32 %v3727, %v3803
      %v3852 = vadd.f32 %v3728, %v3805
      %v3853 = vadd.f32 %v3729, %v3808
      %v3854 = vadd.f32 %v3730, %v3810
      %v3855 = vadd.f32 %v3731, %v3813
      %v3856 = vadd.f32 %v3732, %v3815
      %v3857 = vadd.f32 %v3733, %v3818
      %v3858 = vadd.f32 %v3734, %v3820
      %v3859 = vadd.f32 %v3735, %v3823
      %v3860 = vadd.f32 %v3736, %v3825
      %v3861 = vadd.f32 %v3737, %v3828
      %v3862 = vadd.f32 %v3738, %v3830
      %v3863 = vlaneseq
      %v3864 = vshrl.u32 %v3863, 7
      %v3865 = vsub.s32 4, %v3864
      %v3866 = vrot.slane %v381, %v3865
      %v3867 = vmul.f32 %v349, %v3866
      %v3868 = vmul.f32 %v350, %v3866
      %v3869 = vmul.f32 %v351, %v3866
      %v3870 = vmul.f32 %v352, %v3866
      %v3871 = vmul.f32 %v353, %v3866
      %v3872 = vmul.f32 %v354, %v3866
      %v3873 = vmul.f32 %v355, %v3866
      %v3874 = vmul.f32 %v356, %v3866
      %v3875 = vmul.f32 %v357, %v3866
      %v3876 = vmul.f32 %v358, %v3866
      %v3877 = vmul.f32 %v359, %v3866
      %v3878 = vmul.f32 %v360, %v3866
      %v3879 = vmul.f32 %v361, %v3866
      %v3880 = vmul.f32 %v362, %v3866
      %v3881 = vmul.f32 %v363, %v3866
      %v3882 = vmul.f32 %v364, %v3866
      %v3883 = vmul.f32 %v365, %v3866
      %v3884 = vmul.f32 %v366, %v3866
      %v3885 = vmul.f32 %v367, %v3866
      %v3886 = vmul.f32 %v368, %v3866
      %v3887 = vmul.f32 %v369, %v3866
      %v3888 = vmul.f32 %v370, %v3866
      %v3889 = vmul.f32 %v371, %v3866
      %v3890 = vmul.f32 %v372, %v3866
      %v3915 = vrot.slane %v3867, 4
      %v3916 = vrot.slane %v3868, 4
      %v3917 = vsel %vm3294, %v3915, %v3916
      %v3918 = vrot.slane %v3869, 4
      %v3919 = vsel %vm3294, %v3916, %v3918
      %v3920 = vrot.slane %v3870, 4
      %v3921 = vrot.slane %v3871, 4
      %v3922 = vsel %vm3294, %v3920, %v3921
      %v3923 = vrot.slane %v3872, 4
      %v3924 = vsel %vm3294, %v3921, %v3923
      %v3925 = vrot.slane %v3873, 4
      %v3926 = vrot.slane %v3874, 4
      %v3927 = vsel %vm3294, %v3925, %v3926
      %v3928 = vrot.slane %v3875, 4
      %v3929 = vsel %vm3294, %v3926, %v3928
      %v3930 = vrot.slane %v3876, 4
      %v3931 = vrot.slane %v3877, 4
      %v3932 = vsel %vm3294, %v3930, %v3931
      %v3933 = vrot.slane %v3878, 4
      %v3934 = vsel %vm3294, %v3931, %v3933
      %v3935 = vrot.slane %v3879, 4
      %v3936 = vrot.slane %v3880, 4
      %v3937 = vsel %vm3294, %v3935, %v3936
      %v3938 = vrot.slane %v3881, 4
      %v3939 = vsel %vm3294, %v3936, %v3938
      %v3940 = vrot.slane %v3882, 4
      %v3941 = vrot.slane %v3883, 4
      %v3942 = vsel %vm3294, %v3940, %v3941
      %v3943 = vrot.slane %v3884, 4
      %v3944 = vsel %vm3294, %v3941, %v3943
      %v3945 = vrot.slane %v3885, 4
      %v3946 = vrot.slane %v3886, 4
      %v3947 = vsel %vm3294, %v3945, %v3946
      %v3948 = vrot.slane %v3887, 4
      %v3949 = vsel %vm3294, %v3946, %v3948
      %v3950 = vrot.slane %v3888, 4
      %v3951 = vrot.slane %v3889, 4
      %v3952 = vsel %vm3294, %v3950, %v3951
      %v3953 = vrot.slane %v3890, 4
      %v3954 = vsel %vm3294, %v3951, %v3953
      %v3971 = vadd.f32 %v3847, %v3917
      %v3972 = vadd.f32 %v3848, %v3919
      %v3973 = vadd.f32 %v3849, %v3922
      %v3974 = vadd.f32 %v3850, %v3924
      %v3975 = vadd.f32 %v3851, %v3927
      %v3976 = vadd.f32 %v3852, %v3929
      %v3977 = vadd.f32 %v3853, %v3932
      %v3978 = vadd.f32 %v3854, %v3934
      %v3979 = vadd.f32 %v3855, %v3937
      %v3980 = vadd.f32 %v3856, %v3939
      %v3981 = vadd.f32 %v3857, %v3942
      %v3982 = vadd.f32 %v3858, %v3944
      %v3983 = vadd.f32 %v3859, %v3947
      %v3984 = vadd.f32 %v3860, %v3949
      %v3985 = vadd.f32 %v3861, %v3952
      %v3986 = vadd.f32 %v3862, %v3954
      %v3987 = vlaneseq
      %v3988 = vshrl.u32 %v3987, 7
      %v3989 = vsub.s32 4, %v3988
      %v3990 = vrot.slane %v382, %v3989
      %v3991 = vmul.f32 %v352, %v3990
      %v3992 = vmul.f32 %v353, %v3990
      %v3993 = vmul.f32 %v354, %v3990
      %v3994 = vmul.f32 %v355, %v3990
      %v3995 = vmul.f32 %v356, %v3990
      %v3996 = vmul.f32 %v357, %v3990
      %v3997 = vmul.f32 %v358, %v3990
      %v3998 = vmul.f32 %v359, %v3990
      %v3999 = vmul.f32 %v360, %v3990
      %v4000 = vmul.f32 %v361, %v3990
      %v4001 = vmul.f32 %v362, %v3990
      %v4002 = vmul.f32 %v363, %v3990
      %v4003 = vmul.f32 %v364, %v3990
      %v4004 = vmul.f32 %v365, %v3990
      %v4005 = vmul.f32 %v366, %v3990
      %v4006 = vmul.f32 %v367, %v3990
      %v4007 = vmul.f32 %v368, %v3990
      %v4008 = vmul.f32 %v369, %v3990
      %v4009 = vmul.f32 %v370, %v3990
      %v4010 = vmul.f32 %v371, %v3990
      %v4011 = vmul.f32 %v372, %v3990
      %v4012 = vmul.f32 %v373, %v3990
      %v4013 = vmul.f32 %v374, %v3990
      %v4014 = vmul.f32 %v375, %v3990
      %v4039 = vrot.slane %v3991, 4
      %v4040 = vrot.slane %v3992, 4
      %v4041 = vsel %vm3294, %v4039, %v4040
      %v4042 = vrot.slane %v3993, 4
      %v4043 = vsel %vm3294, %v4040, %v4042
      %v4044 = vrot.slane %v3994, 4
      %v4045 = vrot.slane %v3995, 4
      %v4046 = vsel %vm3294, %v4044, %v4045
      %v4047 = vrot.slane %v3996, 4
      %v4048 = vsel %vm3294, %v4045, %v4047
      %v4049 = vrot.slane %v3997, 4
      %v4050 = vrot.slane %v3998, 4
      %v4051 = vsel %vm3294, %v4049, %v4050
      %v4052 = vrot.slane %v3999, 4
      %v4053 = vsel %vm3294, %v4050, %v4052
      %v4054 = vrot.slane %v4000, 4
      %v4055 = vrot.slane %v4001, 4
      %v4056 = vsel %vm3294, %v4054, %v4055
      %v4057 = vrot.slane %v4002, 4
      %v4058 = vsel %vm3294, %v4055, %v4057
      %v4059 = vrot.slane %v4003, 4
      %v4060 = vrot.slane %v4004, 4
      %v4061 = vsel %vm3294, %v4059, %v4060
      %v4062 = vrot.slane %v4005, 4
      %v4063 = vsel %vm3294, %v4060, %v4062
      %v4064 = vrot.slane %v4006, 4
      %v4065 = vrot.slane %v4007, 4
      %v4066 = vsel %vm3294, %v4064, %v4065
      %v4067 = vrot.slane %v4008, 4
      %v4068 = vsel %vm3294, %v4065, %v4067
      %v4069 = vrot.slane %v4009, 4
      %v4070 = vrot.slane %v4010, 4
      %v4071 = vsel %vm3294, %v4069, %v4070
      %v4072 = vrot.slane %v4011, 4
      %v4073 = vsel %vm3294, %v4070, %v4072
      %v4074 = vrot.slane %v4012, 4
      %v4075 = vrot.slane %v4013, 4
      %v4076 = vsel %vm3294, %v4074, %v4075
      %v4077 = vrot.slane %v4014, 4
      %v4078 = vsel %vm3294, %v4075, %v4077
      %v4095 = vadd.f32 %v3971, %v4041
      %v4096 = vadd.f32 %v3972, %v4043
      %v4097 = vadd.f32 %v3973, %v4046
      %v4098 = vadd.f32 %v3974, %v4048
      %v4099 = vadd.f32 %v3975, %v4051
      %v4100 = vadd.f32 %v3976, %v4053
      %v4101 = vadd.f32 %v3977, %v4056
      %v4102 = vadd.f32 %v3978, %v4058
      %v4103 = vadd.f32 %v3979, %v4061
      %v4104 = vadd.f32 %v3980, %v4063
      %v4105 = vadd.f32 %v3981, %v4066
      %v4106 = vadd.f32 %v3982, %v4068
      %v4107 = vadd.f32 %v3983, %v4071
      %v4108 = vadd.f32 %v3984, %v4073
      %v4109 = vadd.f32 %v3985, %v4076
      %v4110 = vadd.f32 %v3986, %v4078
      %v4111 = vlaneseq
      %v4112 = vshrl.u32 %v4111, 7
      %v4113 = vsub.s32 5, %v4112
      %v4114 = vrot.slane %v376, %v4113
      %v4115 = vmul.f32 %v334, %v4114
      %v4116 = vmul.f32 %v335, %v4114
      %v4117 = vmul.f32 %v336, %v4114
      %v4118 = vmul.f32 %v337, %v4114
      %v4119 = vmul.f32 %v338, %v4114
      %v4120 = vmul.f32 %v339, %v4114
      %v4121 = vmul.f32 %v340, %v4114
      %v4122 = vmul.f32 %v341, %v4114
      %v4123 = vmul.f32 %v342, %v4114
      %v4124 = vmul.f32 %v343, %v4114
      %v4125 = vmul.f32 %v344, %v4114
      %v4126 = vmul.f32 %v345, %v4114
      %v4127 = vmul.f32 %v346, %v4114
      %v4128 = vmul.f32 %v347, %v4114
      %v4129 = vmul.f32 %v348, %v4114
      %v4130 = vmul.f32 %v349, %v4114
      %v4131 = vmul.f32 %v350, %v4114
      %v4132 = vmul.f32 %v351, %v4114
      %v4133 = vmul.f32 %v352, %v4114
      %v4134 = vmul.f32 %v353, %v4114
      %v4135 = vmul.f32 %v354, %v4114
      %v4136 = vmul.f32 %v355, %v4114
      %v4137 = vmul.f32 %v356, %v4114
      %v4138 = vmul.f32 %v357, %v4114
      %vm4163 = vcmask 1042432
      %v4164 = vrot.slane %v4115, 5
      %v4165 = vrot.slane %v4116, 5
      %v4166 = vsel %vm4163, %v4164, %v4165
      %v4167 = vrot.slane %v4117, 5
      %v4168 = vsel %vm4163, %v4165, %v4167
      %v4169 = vrot.slane %v4118, 5
      %v4170 = vrot.slane %v4119, 5
      %v4171 = vsel %vm4163, %v4169, %v4170
      %v4172 = vrot.slane %v4120, 5
      %v4173 = vsel %vm4163, %v4170, %v4172
      %v4174 = vrot.slane %v4121, 5
      %v4175 = vrot.slane %v4122, 5
      %v4176 = vsel %vm4163, %v4174, %v4175
      %v4177 = vrot.slane %v4123, 5
      %v4178 = vsel %vm4163, %v4175, %v4177
      %v4179 = vrot.slane %v4124, 5
      %v4180 = vrot.slane %v4125, 5
      %v4181 = vsel %vm4163, %v4179, %v4180
      %v4182 = vrot.slane %v4126, 5
      %v4183 = vsel %vm4163, %v4180, %v4182
      %v4184 = vrot.slane %v4127, 5
      %v4185 = vrot.slane %v4128, 5
      %v4186 = vsel %vm4163, %v4184, %v4185
      %v4187 = vrot.slane %v4129, 5
      %v4188 = vsel %vm4163, %v4185, %v4187
      %v4189 = vrot.slane %v4130, 5
      %v4190 = vrot.slane %v4131, 5
      %v4191 = vsel %vm4163, %v4189, %v4190
      %v4192 = vrot.slane %v4132, 5
      %v4193 = vsel %vm4163, %v4190, %v4192
      %v4194 = vrot.slane %v4133, 5
      %v4195 = vrot.slane %v4134, 5
      %v4196 = vsel %vm4163, %v4194, %v4195
      %v4197 = vrot.slane %v4135, 5
      %v4198 = vsel %vm4163, %v4195, %v4197
      %v4199 = vrot.slane %v4136, 5
      %v4200 = vrot.slane %v4137, 5
      %v4201 = vsel %vm4163, %v4199, %v4200
      %v4202 = vrot.slane %v4138, 5
      %v4203 = vsel %vm4163, %v4200, %v4202
      %v4220 = vadd.f32 %v4095, %v4166
      %v4221 = vadd.f32 %v4096, %v4168
      %v4222 = vadd.f32 %v4097, %v4171
      %v4223 = vadd.f32 %v4098, %v4173
      %v4224 = vadd.f32 %v4099, %v4176
      %v4225 = vadd.f32 %v4100, %v4178
      %v4226 = vadd.f32 %v4101, %v4181
      %v4227 = vadd.f32 %v4102, %v4183
      %v4228 = vadd.f32 %v4103, %v4186
      %v4229 = vadd.f32 %v4104, %v4188
      %v4230 = vadd.f32 %v4105, %v4191
      %v4231 = vadd.f32 %v4106, %v4193
      %v4232 = vadd.f32 %v4107, %v4196
      %v4233 = vadd.f32 %v4108, %v4198
      %v4234 = vadd.f32 %v4109, %v4201
      %v4235 = vadd.f32 %v4110, %v4203
      %v4236 = vlaneseq
      %v4237 = vshrl.u32 %v4236, 7
      %v4238 = vsub.s32 5, %v4237
      %v4239 = vrot.slane %v377, %v4238
      %v4240 = vmul.f32 %v337, %v4239
      %v4241 = vmul.f32 %v338, %v4239
      %v4242 = vmul.f32 %v339, %v4239
      %v4243 = vmul.f32 %v340, %v4239
      %v4244 = vmul.f32 %v341, %v4239
      %v4245 = vmul.f32 %v342, %v4239
      %v4246 = vmul.f32 %v343, %v4239
      %v4247 = vmul.f32 %v344, %v4239
      %v4248 = vmul.f32 %v345, %v4239
      %v4249 = vmul.f32 %v346, %v4239
      %v4250 = vmul.f32 %v347, %v4239
      %v4251 = vmul.f32 %v348, %v4239
      %v4252 = vmul.f32 %v349, %v4239
      %v4253 = vmul.f32 %v350, %v4239
      %v4254 = vmul.f32 %v351, %v4239
      %v4255 = vmul.f32 %v352, %v4239
      %v4256 = vmul.f32 %v353, %v4239
      %v4257 = vmul.f32 %v354, %v4239
      %v4258 = vmul.f32 %v355, %v4239
      %v4259 = vmul.f32 %v356, %v4239
      %v4260 = vmul.f32 %v357, %v4239
      %v4261 = vmul.f32 %v358, %v4239
      %v4262 = vmul.f32 %v359, %v4239
      %v4263 = vmul.f32 %v360, %v4239
      %v4288 = vrot.slane %v4240, 5
      %v4289 = vrot.slane %v4241, 5
      %v4290 = vsel %vm4163, %v4288, %v4289
      %v4291 = vrot.slane %v4242, 5
      %v4292 = vsel %vm4163, %v4289, %v4291
      %v4293 = vrot.slane %v4243, 5
      %v4294 = vrot.slane %v4244, 5
      %v4295 = vsel %vm4163, %v4293, %v4294
      %v4296 = vrot.slane %v4245, 5
      %v4297 = vsel %vm4163, %v4294, %v4296
      %v4298 = vrot.slane %v4246, 5
      %v4299 = vrot.slane %v4247, 5
      %v4300 = vsel %vm4163, %v4298, %v4299
      %v4301 = vrot.slane %v4248, 5
      %v4302 = vsel %vm4163, %v4299, %v4301
      %v4303 = vrot.slane %v4249, 5
      %v4304 = vrot.slane %v4250, 5
      %v4305 = vsel %vm4163, %v4303, %v4304
      %v4306 = vrot.slane %v4251, 5
      %v4307 = vsel %vm4163, %v4304, %v4306
      %v4308 = vrot.slane %v4252, 5
      %v4309 = vrot.slane %v4253, 5
      %v4310 = vsel %vm4163, %v4308, %v4309
      %v4311 = vrot.slane %v4254, 5
      %v4312 = vsel %vm4163, %v4309, %v4311
      %v4313 = vrot.slane %v4255, 5
      %v4314 = vrot.slane %v4256, 5
      %v4315 = vsel %vm4163, %v4313, %v4314
      %v4316 = vrot.slane %v4257, 5
      %v4317 = vsel %vm4163, %v4314, %v4316
      %v4318 = vrot.slane %v4258, 5
      %v4319 = vrot.slane %v4259, 5
      %v4320 = vsel %vm4163, %v4318, %v4319
      %v4321 = vrot.slane %v4260, 5
      %v4322 = vsel %vm4163, %v4319, %v4321
      %v4323 = vrot.slane %v4261, 5
      %v4324 = vrot.slane %v4262, 5
      %v4325 = vsel %vm4163, %v4323, %v4324
      %v4326 = vrot.slane %v4263, 5
      %v4327 = vsel %vm4163, %v4324, %v4326
      %v4344 = vadd.f32 %v4220, %v4290
      %v4345 = vadd.f32 %v4221, %v4292
      %v4346 = vadd.f32 %v4222, %v4295
      %v4347 = vadd.f32 %v4223, %v4297
      %v4348 = vadd.f32 %v4224, %v4300
      %v4349 = vadd.f32 %v4225, %v4302
      %v4350 = vadd.f32 %v4226, %v4305
      %v4351 = vadd.f32 %v4227, %v4307
      %v4352 = vadd.f32 %v4228, %v4310
      %v4353 = vadd.f32 %v4229, %v4312
      %v4354 = vadd.f32 %v4230, %v4315
      %v4355 = vadd.f32 %v4231, %v4317
      %v4356 = vadd.f32 %v4232, %v4320
      %v4357 = vadd.f32 %v4233, %v4322
      %v4358 = vadd.f32 %v4234, %v4325
      %v4359 = vadd.f32 %v4235, %v4327
      %v4360 = vlaneseq
      %v4361 = vshrl.u32 %v4360, 7
      %v4362 = vsub.s32 5, %v4361
      %v4363 = vrot.slane %v378, %v4362
      %v4364 = vmul.f32 %v340, %v4363
      %v4365 = vmul.f32 %v341, %v4363
      %v4366 = vmul.f32 %v342, %v4363
      %v4367 = vmul.f32 %v343, %v4363
      %v4368 = vmul.f32 %v344, %v4363
      %v4369 = vmul.f32 %v345, %v4363
      %v4370 = vmul.f32 %v346, %v4363
      %v4371 = vmul.f32 %v347, %v4363
      %v4372 = vmul.f32 %v348, %v4363
      %v4373 = vmul.f32 %v349, %v4363
      %v4374 = vmul.f32 %v350, %v4363
      %v4375 = vmul.f32 %v351, %v4363
      %v4376 = vmul.f32 %v352, %v4363
      %v4377 = vmul.f32 %v353, %v4363
      %v4378 = vmul.f32 %v354, %v4363
      %v4379 = vmul.f32 %v355, %v4363
      %v4380 = vmul.f32 %v356, %v4363
      %v4381 = vmul.f32 %v357, %v4363
      %v4382 = vmul.f32 %v358, %v4363
      %v4383 = vmul.f32 %v359, %v4363
      %v4384 = vmul.f32 %v360, %v4363
      %v4385 = vmul.f32 %v361, %v4363
      %v4386 = vmul.f32 %v362, %v4363
      %v4387 = vmul.f32 %v363, %v4363
      %v4412 = vrot.slane %v4364, 5
      %v4413 = vrot.slane %v4365, 5
      %v4414 = vsel %vm4163, %v4412, %v4413
      %v4415 = vrot.slane %v4366, 5
      %v4416 = vsel %vm4163, %v4413, %v4415
      %v4417 = vrot.slane %v4367, 5
      %v4418 = vrot.slane %v4368, 5
      %v4419 = vsel %vm4163, %v4417, %v4418
      %v4420 = vrot.slane %v4369, 5
      %v4421 = vsel %vm4163, %v4418, %v4420
      %v4422 = vrot.slane %v4370, 5
      %v4423 = vrot.slane %v4371, 5
      %v4424 = vsel %vm4163, %v4422, %v4423
      %v4425 = vrot.slane %v4372, 5
      %v4426 = vsel %vm4163, %v4423, %v4425
      %v4427 = vrot.slane %v4373, 5
      %v4428 = vrot.slane %v4374, 5
      %v4429 = vsel %vm4163, %v4427, %v4428
      %v4430 = vrot.slane %v4375, 5
      %v4431 = vsel %vm4163, %v4428, %v4430
      %v4432 = vrot.slane %v4376, 5
      %v4433 = vrot.slane %v4377, 5
      %v4434 = vsel %vm4163, %v4432, %v4433
      %v4435 = vrot.slane %v4378, 5
      %v4436 = vsel %vm4163, %v4433, %v4435
      %v4437 = vrot.slane %v4379, 5
      %v4438 = vrot.slane %v4380, 5
      %v4439 = vsel %vm4163, %v4437, %v4438
      %v4440 = vrot.slane %v4381, 5
      %v4441 = vsel %vm4163, %v4438, %v4440
      %v4442 = vrot.slane %v4382, 5
      %v4443 = vrot.slane %v4383, 5
      %v4444 = vsel %vm4163, %v4442, %v4443
      %v4445 = vrot.slane %v4384, 5
      %v4446 = vsel %vm4163, %v4443, %v4445
      %v4447 = vrot.slane %v4385, 5
      %v4448 = vrot.slane %v4386, 5
      %v4449 = vsel %vm4163, %v4447, %v4448
      %v4450 = vrot.slane %v4387, 5
      %v4451 = vsel %vm4163, %v4448, %v4450
      %v4468 = vadd.f32 %v4344, %v4414
      %v4469 = vadd.f32 %v4345, %v4416
      %v4470 = vadd.f32 %v4346, %v4419
      %v4471 = vadd.f32 %v4347, %v4421
      %v4472 = vadd.f32 %v4348, %v4424
      %v4473 = vadd.f32 %v4349, %v4426
      %v4474 = vadd.f32 %v4350, %v4429
      %v4475 = vadd.f32 %v4351, %v4431
      %v4476 = vadd.f32 %v4352, %v4434
      %v4477 = vadd.f32 %v4353, %v4436
      %v4478 = vadd.f32 %v4354, %v4439
      %v4479 = vadd.f32 %v4355, %v4441
      %v4480 = vadd.f32 %v4356, %v4444
      %v4481 = vadd.f32 %v4357, %v4446
      %v4482 = vadd.f32 %v4358, %v4449
      %v4483 = vadd.f32 %v4359, %v4451
      %v4484 = vlaneseq
      %v4485 = vshrl.u32 %v4484, 7
      %v4486 = vsub.s32 5, %v4485
      %v4487 = vrot.slane %v379, %v4486
      %v4488 = vmul.f32 %v343, %v4487
      %v4489 = vmul.f32 %v344, %v4487
      %v4490 = vmul.f32 %v345, %v4487
      %v4491 = vmul.f32 %v346, %v4487
      %v4492 = vmul.f32 %v347, %v4487
      %v4493 = vmul.f32 %v348, %v4487
      %v4494 = vmul.f32 %v349, %v4487
      %v4495 = vmul.f32 %v350, %v4487
      %v4496 = vmul.f32 %v351, %v4487
      %v4497 = vmul.f32 %v352, %v4487
      %v4498 = vmul.f32 %v353, %v4487
      %v4499 = vmul.f32 %v354, %v4487
      %v4500 = vmul.f32 %v355, %v4487
      %v4501 = vmul.f32 %v356, %v4487
      %v4502 = vmul.f32 %v357, %v4487
      %v4503 = vmul.f32 %v358, %v4487
      %v4504 = vmul.f32 %v359, %v4487
      %v4505 = vmul.f32 %v360, %v4487
      %v4506 = vmul.f32 %v361, %v4487
      %v4507 = vmul.f32 %v362, %v4487
      %v4508 = vmul.f32 %v363, %v4487
      %v4509 = vmul.f32 %v364, %v4487
      %v4510 = vmul.f32 %v365, %v4487
      %v4511 = vmul.f32 %v366, %v4487
      %v4536 = vrot.slane %v4488, 5
      %v4537 = vrot.slane %v4489, 5
      %v4538 = vsel %vm4163, %v4536, %v4537
      %v4539 = vrot.slane %v4490, 5
      %v4540 = vsel %vm4163, %v4537, %v4539
      %v4541 = vrot.slane %v4491, 5
      %v4542 = vrot.slane %v4492, 5
      %v4543 = vsel %vm4163, %v4541, %v4542
      %v4544 = vrot.slane %v4493, 5
      %v4545 = vsel %vm4163, %v4542, %v4544
      %v4546 = vrot.slane %v4494, 5
      %v4547 = vrot.slane %v4495, 5
      %v4548 = vsel %vm4163, %v4546, %v4547
      %v4549 = vrot.slane %v4496, 5
      %v4550 = vsel %vm4163, %v4547, %v4549
      %v4551 = vrot.slane %v4497, 5
      %v4552 = vrot.slane %v4498, 5
      %v4553 = vsel %vm4163, %v4551, %v4552
      %v4554 = vrot.slane %v4499, 5
      %v4555 = vsel %vm4163, %v4552, %v4554
      %v4556 = vrot.slane %v4500, 5
      %v4557 = vrot.slane %v4501, 5
      %v4558 = vsel %vm4163, %v4556, %v4557
      %v4559 = vrot.slane %v4502, 5
      %v4560 = vsel %vm4163, %v4557, %v4559
      %v4561 = vrot.slane %v4503, 5
      %v4562 = vrot.slane %v4504, 5
      %v4563 = vsel %vm4163, %v4561, %v4562
      %v4564 = vrot.slane %v4505, 5
      %v4565 = vsel %vm4163, %v4562, %v4564
      %v4566 = vrot.slane %v4506, 5
      %v4567 = vrot.slane %v4507, 5
      %v4568 = vsel %vm4163, %v4566, %v4567
      %v4569 = vrot.slane %v4508, 5
      %v4570 = vsel %vm4163, %v4567, %v4569
      %v4571 = vrot.slane %v4509, 5
      %v4572 = vrot.slane %v4510, 5
      %v4573 = vsel %vm4163, %v4571, %v4572
      %v4574 = vrot.slane %v4511, 5
      %v4575 = vsel %vm4163, %v4572, %v4574
      %v4592 = vadd.f32 %v4468, %v4538
      %v4593 = vadd.f32 %v4469, %v4540
      %v4594 = vadd.f32 %v4470, %v4543
      %v4595 = vadd.f32 %v4471, %v4545
      %v4596 = vadd.f32 %v4472, %v4548
      %v4597 = vadd.f32 %v4473, %v4550
      %v4598 = vadd.f32 %v4474, %v4553
      %v4599 = vadd.f32 %v4475, %v4555
      %v4600 = vadd.f32 %v4476, %v4558
      %v4601 = vadd.f32 %v4477, %v4560
      %v4602 = vadd.f32 %v4478, %v4563
      %v4603 = vadd.f32 %v4479, %v4565
      %v4604 = vadd.f32 %v4480, %v4568
      %v4605 = vadd.f32 %v4481, %v4570
      %v4606 = vadd.f32 %v4482, %v4573
      %v4607 = vadd.f32 %v4483, %v4575
      %v4608 = vlaneseq
      %v4609 = vshrl.u32 %v4608, 7
      %v4610 = vsub.s32 5, %v4609
      %v4611 = vrot.slane %v380, %v4610
      %v4612 = vmul.f32 %v346, %v4611
      %v4613 = vmul.f32 %v347, %v4611
      %v4614 = vmul.f32 %v348, %v4611
      %v4615 = vmul.f32 %v349, %v4611
      %v4616 = vmul.f32 %v350, %v4611
      %v4617 = vmul.f32 %v351, %v4611
      %v4618 = vmul.f32 %v352, %v4611
      %v4619 = vmul.f32 %v353, %v4611
      %v4620 = vmul.f32 %v354, %v4611
      %v4621 = vmul.f32 %v355, %v4611
      %v4622 = vmul.f32 %v356, %v4611
      %v4623 = vmul.f32 %v357, %v4611
      %v4624 = vmul.f32 %v358, %v4611
      %v4625 = vmul.f32 %v359, %v4611
      %v4626 = vmul.f32 %v360, %v4611
      %v4627 = vmul.f32 %v361, %v4611
      %v4628 = vmul.f32 %v362, %v4611
      %v4629 = vmul.f32 %v363, %v4611
      %v4630 = vmul.f32 %v364, %v4611
      %v4631 = vmul.f32 %v365, %v4611
      %v4632 = vmul.f32 %v366, %v4611
      %v4633 = vmul.f32 %v367, %v4611
      %v4634 = vmul.f32 %v368, %v4611
      %v4635 = vmul.f32 %v369, %v4611
      %v4660 = vrot.slane %v4612, 5
      %v4661 = vrot.slane %v4613, 5
      %v4662 = vsel %vm4163, %v4660, %v4661
      %v4663 = vrot.slane %v4614, 5
      %v4664 = vsel %vm4163, %v4661, %v4663
      %v4665 = vrot.slane %v4615, 5
      %v4666 = vrot.slane %v4616, 5
      %v4667 = vsel %vm4163, %v4665, %v4666
      %v4668 = vrot.slane %v4617, 5
      %v4669 = vsel %vm4163, %v4666, %v4668
      %v4670 = vrot.slane %v4618, 5
      %v4671 = vrot.slane %v4619, 5
      %v4672 = vsel %vm4163, %v4670, %v4671
      %v4673 = vrot.slane %v4620, 5
      %v4674 = vsel %vm4163, %v4671, %v4673
      %v4675 = vrot.slane %v4621, 5
      %v4676 = vrot.slane %v4622, 5
      %v4677 = vsel %vm4163, %v4675, %v4676
      %v4678 = vrot.slane %v4623, 5
      %v4679 = vsel %vm4163, %v4676, %v4678
      %v4680 = vrot.slane %v4624, 5
      %v4681 = vrot.slane %v4625, 5
      %v4682 = vsel %vm4163, %v4680, %v4681
      %v4683 = vrot.slane %v4626, 5
      %v4684 = vsel %vm4163, %v4681, %v4683
      %v4685 = vrot.slane %v4627, 5
      %v4686 = vrot.slane %v4628, 5
      %v4687 = vsel %vm4163, %v4685, %v4686
      %v4688 = vrot.slane %v4629, 5
      %v4689 = vsel %vm4163, %v4686, %v4688
      %v4690 = vrot.slane %v4630, 5
      %v4691 = vrot.slane %v4631, 5
      %v4692 = vsel %vm4163, %v4690, %v4691
      %v4693 = vrot.slane %v4632, 5
      %v4694 = vsel %vm4163, %v4691, %v4693
      %v4695 = vrot.slane %v4633, 5
      %v4696 = vrot.slane %v4634, 5
      %v4697 = vsel %vm4163, %v4695, %v4696
      %v4698 = vrot.slane %v4635, 5
      %v4699 = vsel %vm4163, %v4696, %v4698
      %v4716 = vadd.f32 %v4592, %v4662
      %v4717 = vadd.f32 %v4593, %v4664
      %v4718 = vadd.f32 %v4594, %v4667
      %v4719 = vadd.f32 %v4595, %v4669
      %v4720 = vadd.f32 %v4596, %v4672
      %v4721 = vadd.f32 %v4597, %v4674
      %v4722 = vadd.f32 %v4598, %v4677
      %v4723 = vadd.f32 %v4599, %v4679
      %v4724 = vadd.f32 %v4600, %v4682
      %v4725 = vadd.f32 %v4601, %v4684
      %v4726 = vadd.f32 %v4602, %v4687
      %v4727 = vadd.f32 %v4603, %v4689
      %v4728 = vadd.f32 %v4604, %v4692
      %v4729 = vadd.f32 %v4605, %v4694
      %v4730 = vadd.f32 %v4606, %v4697
      %v4731 = vadd.f32 %v4607, %v4699
      %v4732 = vlaneseq
      %v4733 = vshrl.u32 %v4732, 7
      %v4734 = vsub.s32 5, %v4733
      %v4735 = vrot.slane %v381, %v4734
      %v4736 = vmul.f32 %v349, %v4735
      %v4737 = vmul.f32 %v350, %v4735
      %v4738 = vmul.f32 %v351, %v4735
      %v4739 = vmul.f32 %v352, %v4735
      %v4740 = vmul.f32 %v353, %v4735
      %v4741 = vmul.f32 %v354, %v4735
      %v4742 = vmul.f32 %v355, %v4735
      %v4743 = vmul.f32 %v356, %v4735
      %v4744 = vmul.f32 %v357, %v4735
      %v4745 = vmul.f32 %v358, %v4735
      %v4746 = vmul.f32 %v359, %v4735
      %v4747 = vmul.f32 %v360, %v4735
      %v4748 = vmul.f32 %v361, %v4735
      %v4749 = vmul.f32 %v362, %v4735
      %v4750 = vmul.f32 %v363, %v4735
      %v4751 = vmul.f32 %v364, %v4735
      %v4752 = vmul.f32 %v365, %v4735
      %v4753 = vmul.f32 %v366, %v4735
      %v4754 = vmul.f32 %v367, %v4735
      %v4755 = vmul.f32 %v368, %v4735
      %v4756 = vmul.f32 %v369, %v4735
      %v4757 = vmul.f32 %v370, %v4735
      %v4758 = vmul.f32 %v371, %v4735
      %v4759 = vmul.f32 %v372, %v4735
      %v4784 = vrot.slane %v4736, 5
      %v4785 = vrot.slane %v4737, 5
      %v4786 = vsel %vm4163, %v4784, %v4785
      %v4787 = vrot.slane %v4738, 5
      %v4788 = vsel %vm4163, %v4785, %v4787
      %v4789 = vrot.slane %v4739, 5
      %v4790 = vrot.slane %v4740, 5
      %v4791 = vsel %vm4163, %v4789, %v4790
      %v4792 = vrot.slane %v4741, 5
      %v4793 = vsel %vm4163, %v4790, %v4792
      %v4794 = vrot.slane %v4742, 5
      %v4795 = vrot.slane %v4743, 5
      %v4796 = vsel %vm4163, %v4794, %v4795
      %v4797 = vrot.slane %v4744, 5
      %v4798 = vsel %vm4163, %v4795, %v4797
      %v4799 = vrot.slane %v4745, 5
      %v4800 = vrot.slane %v4746, 5
      %v4801 = vsel %vm4163, %v4799, %v4800
      %v4802 = vrot.slane %v4747, 5
      %v4803 = vsel %vm4163, %v4800, %v4802
      %v4804 = vrot.slane %v4748, 5
      %v4805 = vrot.slane %v4749, 5
      %v4806 = vsel %vm4163, %v4804, %v4805
      %v4807 = vrot.slane %v4750, 5
      %v4808 = vsel %vm4163, %v4805, %v4807
      %v4809 = vrot.slane %v4751, 5
      %v4810 = vrot.slane %v4752, 5
      %v4811 = vsel %vm4163, %v4809, %v4810
      %v4812 = vrot.slane %v4753, 5
      %v4813 = vsel %vm4163, %v4810, %v4812
      %v4814 = vrot.slane %v4754, 5
      %v4815 = vrot.slane %v4755, 5
      %v4816 = vsel %vm4163, %v4814, %v4815
      %v4817 = vrot.slane %v4756, 5
      %v4818 = vsel %vm4163, %v4815, %v4817
      %v4819 = vrot.slane %v4757, 5
      %v4820 = vrot.slane %v4758, 5
      %v4821 = vsel %vm4163, %v4819, %v4820
      %v4822 = vrot.slane %v4759, 5
      %v4823 = vsel %vm4163, %v4820, %v4822
      %v4840 = vadd.f32 %v4716, %v4786
      %v4841 = vadd.f32 %v4717, %v4788
      %v4842 = vadd.f32 %v4718, %v4791
      %v4843 = vadd.f32 %v4719, %v4793
      %v4844 = vadd.f32 %v4720, %v4796
      %v4845 = vadd.f32 %v4721, %v4798
      %v4846 = vadd.f32 %v4722, %v4801
      %v4847 = vadd.f32 %v4723, %v4803
      %v4848 = vadd.f32 %v4724, %v4806
      %v4849 = vadd.f32 %v4725, %v4808
      %v4850 = vadd.f32 %v4726, %v4811
      %v4851 = vadd.f32 %v4727, %v4813
      %v4852 = vadd.f32 %v4728, %v4816
      %v4853 = vadd.f32 %v4729, %v4818
      %v4854 = vadd.f32 %v4730, %v4821
      %v4855 = vadd.f32 %v4731, %v4823
      %v4856 = vlaneseq
      %v4857 = vshrl.u32 %v4856, 7
      %v4858 = vsub.s32 5, %v4857
      %v4859 = vrot.slane %v382, %v4858
      %v4860 = vmul.f32 %v352, %v4859
      %v4861 = vmul.f32 %v353, %v4859
      %v4862 = vmul.f32 %v354, %v4859
      %v4863 = vmul.f32 %v355, %v4859
      %v4864 = vmul.f32 %v356, %v4859
      %v4865 = vmul.f32 %v357, %v4859
      %v4866 = vmul.f32 %v358, %v4859
      %v4867 = vmul.f32 %v359, %v4859
      %v4868 = vmul.f32 %v360, %v4859
      %v4869 = vmul.f32 %v361, %v4859
      %v4870 = vmul.f32 %v362, %v4859
      %v4871 = vmul.f32 %v363, %v4859
      %v4872 = vmul.f32 %v364, %v4859
      %v4873 = vmul.f32 %v365, %v4859
      %v4874 = vmul.f32 %v366, %v4859
      %v4875 = vmul.f32 %v367, %v4859
      %v4876 = vmul.f32 %v368, %v4859
      %v4877 = vmul.f32 %v369, %v4859
      %v4878 = vmul.f32 %v370, %v4859
      %v4879 = vmul.f32 %v371, %v4859
      %v4880 = vmul.f32 %v372, %v4859
      %v4881 = vmul.f32 %v373, %v4859
      %v4882 = vmul.f32 %v374, %v4859
      %v4883 = vmul.f32 %v375, %v4859
      %v4908 = vrot.slane %v4860, 5
      %v4909 = vrot.slane %v4861, 5
      %v4910 = vsel %vm4163, %v4908, %v4909
      %v4911 = vrot.slane %v4862, 5
      %v4912 = vsel %vm4163, %v4909, %v4911
      %v4913 = vrot.slane %v4863, 5
      %v4914 = vrot.slane %v4864, 5
      %v4915 = vsel %vm4163, %v4913, %v4914
      %v4916 = vrot.slane %v4865, 5
      %v4917 = vsel %vm4163, %v4914, %v4916
      %v4918 = vrot.slane %v4866, 5
      %v4919 = vrot.slane %v4867, 5
      %v4920 = vsel %vm4163, %v4918, %v4919
      %v4921 = vrot.slane %v4868, 5
      %v4922 = vsel %vm4163, %v4919, %v4921
      %v4923 = vrot.slane %v4869, 5
      %v4924 = vrot.slane %v4870, 5
      %v4925 = vsel %vm4163, %v4923, %v4924
      %v4926 = vrot.slane %v4871, 5
      %v4927 = vsel %vm4163, %v4924, %v4926
      %v4928 = vrot.slane %v4872, 5
      %v4929 = vrot.slane %v4873, 5
      %v4930 = vsel %vm4163, %v4928, %v4929
      %v4931 = vrot.slane %v4874, 5
      %v4932 = vsel %vm4163, %v4929, %v4931
      %v4933 = vrot.slane %v4875, 5
      %v4934 = vrot.slane %v4876, 5
      %v4935 = vsel %vm4163, %v4933, %v4934
      %v4936 = vrot.slane %v4877, 5
      %v4937 = vsel %vm4163, %v4934, %v4936
      %v4938 = vrot.slane %v4878, 5
      %v4939 = vrot.slane %v4879, 5
      %v4940 = vsel %vm4163, %v4938, %v4939
      %v4941 = vrot.slane %v4880, 5
      %v4942 = vsel %vm4163, %v4939, %v4941
      %v4943 = vrot.slane %v4881, 5
      %v4944 = vrot.slane %v4882, 5
      %v4945 = vsel %vm4163, %v4943, %v4944
      %v4946 = vrot.slane %v4883, 5
      %v4947 = vsel %vm4163, %v4944, %v4946
      %v4964 = vadd.f32 %v4840, %v4910
      %v4965 = vadd.f32 %v4841, %v4912
      %v4966 = vadd.f32 %v4842, %v4915
      %v4967 = vadd.f32 %v4843, %v4917
      %v4968 = vadd.f32 %v4844, %v4920
      %v4969 = vadd.f32 %v4845, %v4922
      %v4970 = vadd.f32 %v4846, %v4925
      %v4971 = vadd.f32 %v4847, %v4927
      %v4972 = vadd.f32 %v4848, %v4930
      %v4973 = vadd.f32 %v4849, %v4932
      %v4974 = vadd.f32 %v4850, %v4935
      %v4975 = vadd.f32 %v4851, %v4937
      %v4976 = vadd.f32 %v4852, %v4940
      %v4977 = vadd.f32 %v4853, %v4942
      %v4978 = vadd.f32 %v4854, %v4945
      %v4979 = vadd.f32 %v4855, %v4947
      %v4980 = vlaneseq
      %v4981 = vshrl.u32 %v4980, 7
      %v4982 = vsub.s32 6, %v4981
      %v4983 = vrot.slane %v376, %v4982
      %v4984 = vmul.f32 %v334, %v4983
      %v4985 = vmul.f32 %v335, %v4983
      %v4986 = vmul.f32 %v336, %v4983
      %v4987 = vmul.f32 %v337, %v4983
      %v4988 = vmul.f32 %v338, %v4983
      %v4989 = vmul.f32 %v339, %v4983
      %v4990 = vmul.f32 %v340, %v4983
      %v4991 = vmul.f32 %v341, %v4983
      %v4992 = vmul.f32 %v342, %v4983
      %v4993 = vmul.f32 %v343, %v4983
      %v4994 = vmul.f32 %v344, %v4983
      %v4995 = vmul.f32 %v345, %v4983
      %v4996 = vmul.f32 %v346, %v4983
      %v4997 = vmul.f32 %v347, %v4983
      %v4998 = vmul.f32 %v348, %v4983
      %v4999 = vmul.f32 %v349, %v4983
      %v5000 = vmul.f32 %v350, %v4983
      %v5001 = vmul.f32 %v351, %v4983
      %v5002 = vmul.f32 %v352, %v4983
      %v5003 = vmul.f32 %v353, %v4983
      %v5004 = vmul.f32 %v354, %v4983
      %v5005 = vmul.f32 %v355, %v4983
      %v5006 = vmul.f32 %v356, %v4983
      %v5007 = vmul.f32 %v357, %v4983
      %vm5032 = vcmask 1041408
      %v5033 = vrot.slane %v4984, 6
      %v5034 = vrot.slane %v4985, 6
      %v5035 = vsel %vm5032, %v5033, %v5034
      %v5036 = vrot.slane %v4986, 6
      %v5037 = vsel %vm5032, %v5034, %v5036
      %v5038 = vrot.slane %v4987, 6
      %v5039 = vrot.slane %v4988, 6
      %v5040 = vsel %vm5032, %v5038, %v5039
      %v5041 = vrot.slane %v4989, 6
      %v5042 = vsel %vm5032, %v5039, %v5041
      %v5043 = vrot.slane %v4990, 6
      %v5044 = vrot.slane %v4991, 6
      %v5045 = vsel %vm5032, %v5043, %v5044
      %v5046 = vrot.slane %v4992, 6
      %v5047 = vsel %vm5032, %v5044, %v5046
      %v5048 = vrot.slane %v4993, 6
      %v5049 = vrot.slane %v4994, 6
      %v5050 = vsel %vm5032, %v5048, %v5049
      %v5051 = vrot.slane %v4995, 6
      %v5052 = vsel %vm5032, %v5049, %v5051
      %v5053 = vrot.slane %v4996, 6
      %v5054 = vrot.slane %v4997, 6
      %v5055 = vsel %vm5032, %v5053, %v5054
      %v5056 = vrot.slane %v4998, 6
      %v5057 = vsel %vm5032, %v5054, %v5056
      %v5058 = vrot.slane %v4999, 6
      %v5059 = vrot.slane %v5000, 6
      %v5060 = vsel %vm5032, %v5058, %v5059
      %v5061 = vrot.slane %v5001, 6
      %v5062 = vsel %vm5032, %v5059, %v5061
      %v5063 = vrot.slane %v5002, 6
      %v5064 = vrot.slane %v5003, 6
      %v5065 = vsel %vm5032, %v5063, %v5064
      %v5066 = vrot.slane %v5004, 6
      %v5067 = vsel %vm5032, %v5064, %v5066
      %v5068 = vrot.slane %v5005, 6
      %v5069 = vrot.slane %v5006, 6
      %v5070 = vsel %vm5032, %v5068, %v5069
      %v5071 = vrot.slane %v5007, 6
      %v5072 = vsel %vm5032, %v5069, %v5071
      %v5089 = vadd.f32 %v4964, %v5035
      %v5090 = vadd.f32 %v4965, %v5037
      %v5091 = vadd.f32 %v4966, %v5040
      %v5092 = vadd.f32 %v4967, %v5042
      %v5093 = vadd.f32 %v4968, %v5045
      %v5094 = vadd.f32 %v4969, %v5047
      %v5095 = vadd.f32 %v4970, %v5050
      %v5096 = vadd.f32 %v4971, %v5052
      %v5097 = vadd.f32 %v4972, %v5055
      %v5098 = vadd.f32 %v4973, %v5057
      %v5099 = vadd.f32 %v4974, %v5060
      %v5100 = vadd.f32 %v4975, %v5062
      %v5101 = vadd.f32 %v4976, %v5065
      %v5102 = vadd.f32 %v4977, %v5067
      %v5103 = vadd.f32 %v4978, %v5070
      %v5104 = vadd.f32 %v4979, %v5072
      %v5105 = vlaneseq
      %v5106 = vshrl.u32 %v5105, 7
      %v5107 = vsub.s32 6, %v5106
      %v5108 = vrot.slane %v377, %v5107
      %v5109 = vmul.f32 %v337, %v5108
      %v5110 = vmul.f32 %v338, %v5108
      %v5111 = vmul.f32 %v339, %v5108
      %v5112 = vmul.f32 %v340, %v5108
      %v5113 = vmul.f32 %v341, %v5108
      %v5114 = vmul.f32 %v342, %v5108
      %v5115 = vmul.f32 %v343, %v5108
      %v5116 = vmul.f32 %v344, %v5108
      %v5117 = vmul.f32 %v345, %v5108
      %v5118 = vmul.f32 %v346, %v5108
      %v5119 = vmul.f32 %v347, %v5108
      %v5120 = vmul.f32 %v348, %v5108
      %v5121 = vmul.f32 %v349, %v5108
      %v5122 = vmul.f32 %v350, %v5108
      %v5123 = vmul.f32 %v351, %v5108
      %v5124 = vmul.f32 %v352, %v5108
      %v5125 = vmul.f32 %v353, %v5108
      %v5126 = vmul.f32 %v354, %v5108
      %v5127 = vmul.f32 %v355, %v5108
      %v5128 = vmul.f32 %v356, %v5108
      %v5129 = vmul.f32 %v357, %v5108
      %v5130 = vmul.f32 %v358, %v5108
      %v5131 = vmul.f32 %v359, %v5108
      %v5132 = vmul.f32 %v360, %v5108
      %v5157 = vrot.slane %v5109, 6
      %v5158 = vrot.slane %v5110, 6
      %v5159 = vsel %vm5032, %v5157, %v5158
      %v5160 = vrot.slane %v5111, 6
      %v5161 = vsel %vm5032, %v5158, %v5160
      %v5162 = vrot.slane %v5112, 6
      %v5163 = vrot.slane %v5113, 6
      %v5164 = vsel %vm5032, %v5162, %v5163
      %v5165 = vrot.slane %v5114, 6
      %v5166 = vsel %vm5032, %v5163, %v5165
      %v5167 = vrot.slane %v5115, 6
      %v5168 = vrot.slane %v5116, 6
      %v5169 = vsel %vm5032, %v5167, %v5168
      %v5170 = vrot.slane %v5117, 6
      %v5171 = vsel %vm5032, %v5168, %v5170
      %v5172 = vrot.slane %v5118, 6
      %v5173 = vrot.slane %v5119, 6
      %v5174 = vsel %vm5032, %v5172, %v5173
      %v5175 = vrot.slane %v5120, 6
      %v5176 = vsel %vm5032, %v5173, %v5175
      %v5177 = vrot.slane %v5121, 6
      %v5178 = vrot.slane %v5122, 6
      %v5179 = vsel %vm5032, %v5177, %v5178
      %v5180 = vrot.slane %v5123, 6
      %v5181 = vsel %vm5032, %v5178, %v5180
      %v5182 = vrot.slane %v5124, 6
      %v5183 = vrot.slane %v5125, 6
      %v5184 = vsel %vm5032, %v5182, %v5183
      %v5185 = vrot.slane %v5126, 6
      %v5186 = vsel %vm5032, %v5183, %v5185
      %v5187 = vrot.slane %v5127, 6
      %v5188 = vrot.slane %v5128, 6
      %v5189 = vsel %vm5032, %v5187, %v5188
      %v5190 = vrot.slane %v5129, 6
      %v5191 = vsel %vm5032, %v5188, %v5190
      %v5192 = vrot.slane %v5130, 6
      %v5193 = vrot.slane %v5131, 6
      %v5194 = vsel %vm5032, %v5192, %v5193
      %v5195 = vrot.slane %v5132, 6
      %v5196 = vsel %vm5032, %v5193, %v5195
      %v5213 = vadd.f32 %v5089, %v5159
      %v5214 = vadd.f32 %v5090, %v5161
      %v5215 = vadd.f32 %v5091, %v5164
      %v5216 = vadd.f32 %v5092, %v5166
      %v5217 = vadd.f32 %v5093, %v5169
      %v5218 = vadd.f32 %v5094, %v5171
      %v5219 = vadd.f32 %v5095, %v5174
      %v5220 = vadd.f32 %v5096, %v5176
      %v5221 = vadd.f32 %v5097, %v5179
      %v5222 = vadd.f32 %v5098, %v5181
      %v5223 = vadd.f32 %v5099, %v5184
      %v5224 = vadd.f32 %v5100, %v5186
      %v5225 = vadd.f32 %v5101, %v5189
      %v5226 = vadd.f32 %v5102, %v5191
      %v5227 = vadd.f32 %v5103, %v5194
      %v5228 = vadd.f32 %v5104, %v5196
      %v5229 = vlaneseq
      %v5230 = vshrl.u32 %v5229, 7
      %v5231 = vsub.s32 6, %v5230
      %v5232 = vrot.slane %v378, %v5231
      %v5233 = vmul.f32 %v340, %v5232
      %v5234 = vmul.f32 %v341, %v5232
      %v5235 = vmul.f32 %v342, %v5232
      %v5236 = vmul.f32 %v343, %v5232
      %v5237 = vmul.f32 %v344, %v5232
      %v5238 = vmul.f32 %v345, %v5232
      %v5239 = vmul.f32 %v346, %v5232
      %v5240 = vmul.f32 %v347, %v5232
      %v5241 = vmul.f32 %v348, %v5232
      %v5242 = vmul.f32 %v349, %v5232
      %v5243 = vmul.f32 %v350, %v5232
      %v5244 = vmul.f32 %v351, %v5232
      %v5245 = vmul.f32 %v352, %v5232
      %v5246 = vmul.f32 %v353, %v5232
      %v5247 = vmul.f32 %v354, %v5232
      %v5248 = vmul.f32 %v355, %v5232
      %v5249 = vmul.f32 %v356, %v5232
      %v5250 = vmul.f32 %v357, %v5232
      %v5251 = vmul.f32 %v358, %v5232
      %v5252 = vmul.f32 %v359, %v5232
      %v5253 = vmul.f32 %v360, %v5232
      %v5254 = vmul.f32 %v361, %v5232
      %v5255 = vmul.f32 %v362, %v5232
      %v5256 = vmul.f32 %v363, %v5232
      %v5281 = vrot.slane %v5233, 6
      %v5282 = vrot.slane %v5234, 6
      %v5283 = vsel %vm5032, %v5281, %v5282
      %v5284 = vrot.slane %v5235, 6
      %v5285 = vsel %vm5032, %v5282, %v5284
      %v5286 = vrot.slane %v5236, 6
      %v5287 = vrot.slane %v5237, 6
      %v5288 = vsel %vm5032, %v5286, %v5287
      %v5289 = vrot.slane %v5238, 6
      %v5290 = vsel %vm5032, %v5287, %v5289
      %v5291 = vrot.slane %v5239, 6
      %v5292 = vrot.slane %v5240, 6
      %v5293 = vsel %vm5032, %v5291, %v5292
      %v5294 = vrot.slane %v5241, 6
      %v5295 = vsel %vm5032, %v5292, %v5294
      %v5296 = vrot.slane %v5242, 6
      %v5297 = vrot.slane %v5243, 6
      %v5298 = vsel %vm5032, %v5296, %v5297
      %v5299 = vrot.slane %v5244, 6
      %v5300 = vsel %vm5032, %v5297, %v5299
      %v5301 = vrot.slane %v5245, 6
      %v5302 = vrot.slane %v5246, 6
      %v5303 = vsel %vm5032, %v5301, %v5302
      %v5304 = vrot.slane %v5247, 6
      %v5305 = vsel %vm5032, %v5302, %v5304
      %v5306 = vrot.slane %v5248, 6
      %v5307 = vrot.slane %v5249, 6
      %v5308 = vsel %vm5032, %v5306, %v5307
      %v5309 = vrot.slane %v5250, 6
      %v5310 = vsel %vm5032, %v5307, %v5309
      %v5311 = vrot.slane %v5251, 6
      %v5312 = vrot.slane %v5252, 6
      %v5313 = vsel %vm5032, %v5311, %v5312
      %v5314 = vrot.slane %v5253, 6
      %v5315 = vsel %vm5032, %v5312, %v5314
      %v5316 = vrot.slane %v5254, 6
      %v5317 = vrot.slane %v5255, 6
      %v5318 = vsel %vm5032, %v5316, %v5317
      %v5319 = vrot.slane %v5256, 6
      %v5320 = vsel %vm5032, %v5317, %v5319
      %v5337 = vadd.f32 %v5213, %v5283
      %v5338 = vadd.f32 %v5214, %v5285
      %v5339 = vadd.f32 %v5215, %v5288
      %v5340 = vadd.f32 %v5216, %v5290
      %v5341 = vadd.f32 %v5217, %v5293
      %v5342 = vadd.f32 %v5218, %v5295
      %v5343 = vadd.f32 %v5219, %v5298
      %v5344 = vadd.f32 %v5220, %v5300
      %v5345 = vadd.f32 %v5221, %v5303
      %v5346 = vadd.f32 %v5222, %v5305
      %v5347 = vadd.f32 %v5223, %v5308
      %v5348 = vadd.f32 %v5224, %v5310
      %v5349 = vadd.f32 %v5225, %v5313
      %v5350 = vadd.f32 %v5226, %v5315
      %v5351 = vadd.f32 %v5227, %v5318
      %v5352 = vadd.f32 %v5228, %v5320
      %v5353 = vlaneseq
      %v5354 = vshrl.u32 %v5353, 7
      %v5355 = vsub.s32 6, %v5354
      %v5356 = vrot.slane %v379, %v5355
      %v5357 = vmul.f32 %v343, %v5356
      %v5358 = vmul.f32 %v344, %v5356
      %v5359 = vmul.f32 %v345, %v5356
      %v5360 = vmul.f32 %v346, %v5356
      %v5361 = vmul.f32 %v347, %v5356
      %v5362 = vmul.f32 %v348, %v5356
      %v5363 = vmul.f32 %v349, %v5356
      %v5364 = vmul.f32 %v350, %v5356
      %v5365 = vmul.f32 %v351, %v5356
      %v5366 = vmul.f32 %v352, %v5356
      %v5367 = vmul.f32 %v353, %v5356
      %v5368 = vmul.f32 %v354, %v5356
      %v5369 = vmul.f32 %v355, %v5356
      %v5370 = vmul.f32 %v356, %v5356
      %v5371 = vmul.f32 %v357, %v5356
      %v5372 = vmul.f32 %v358, %v5356
      %v5373 = vmul.f32 %v359, %v5356
      %v5374 = vmul.f32 %v360, %v5356
      %v5375 = vmul.f32 %v361, %v5356
      %v5376 = vmul.f32 %v362, %v5356
      %v5377 = vmul.f32 %v363, %v5356
      %v5378 = vmul.f32 %v364, %v5356
      %v5379 = vmul.f32 %v365, %v5356
      %v5380 = vmul.f32 %v366, %v5356
      %v5405 = vrot.slane %v5357, 6
      %v5406 = vrot.slane %v5358, 6
      %v5407 = vsel %vm5032, %v5405, %v5406
      %v5408 = vrot.slane %v5359, 6
      %v5409 = vsel %vm5032, %v5406, %v5408
      %v5410 = vrot.slane %v5360, 6
      %v5411 = vrot.slane %v5361, 6
      %v5412 = vsel %vm5032, %v5410, %v5411
      %v5413 = vrot.slane %v5362, 6
      %v5414 = vsel %vm5032, %v5411, %v5413
      %v5415 = vrot.slane %v5363, 6
      %v5416 = vrot.slane %v5364, 6
      %v5417 = vsel %vm5032, %v5415, %v5416
      %v5418 = vrot.slane %v5365, 6
      %v5419 = vsel %vm5032, %v5416, %v5418
      %v5420 = vrot.slane %v5366, 6
      %v5421 = vrot.slane %v5367, 6
      %v5422 = vsel %vm5032, %v5420, %v5421
      %v5423 = vrot.slane %v5368, 6
      %v5424 = vsel %vm5032, %v5421, %v5423
      %v5425 = vrot.slane %v5369, 6
      %v5426 = vrot.slane %v5370, 6
      %v5427 = vsel %vm5032, %v5425, %v5426
      %v5428 = vrot.slane %v5371, 6
      %v5429 = vsel %vm5032, %v5426, %v5428
      %v5430 = vrot.slane %v5372, 6
      %v5431 = vrot.slane %v5373, 6
      %v5432 = vsel %vm5032, %v5430, %v5431
      %v5433 = vrot.slane %v5374, 6
      %v5434 = vsel %vm5032, %v5431, %v5433
      %v5435 = vrot.slane %v5375, 6
      %v5436 = vrot.slane %v5376, 6
      %v5437 = vsel %vm5032, %v5435, %v5436
      %v5438 = vrot.slane %v5377, 6
      %v5439 = vsel %vm5032, %v5436, %v5438
      %v5440 = vrot.slane %v5378, 6
      %v5441 = vrot.slane %v5379, 6
      %v5442 = vsel %vm5032, %v5440, %v5441
      %v5443 = vrot.slane %v5380, 6
      %v5444 = vsel %vm5032, %v5441, %v5443
      %v5461 = vadd.f32 %v5337, %v5407
      %v5462 = vadd.f32 %v5338, %v5409
      %v5463 = vadd.f32 %v5339, %v5412
      %v5464 = vadd.f32 %v5340, %v5414
      %v5465 = vadd.f32 %v5341, %v5417
      %v5466 = vadd.f32 %v5342, %v5419
      %v5467 = vadd.f32 %v5343, %v5422
      %v5468 = vadd.f32 %v5344, %v5424
      %v5469 = vadd.f32 %v5345, %v5427
      %v5470 = vadd.f32 %v5346, %v5429
      %v5471 = vadd.f32 %v5347, %v5432
      %v5472 = vadd.f32 %v5348, %v5434
      %v5473 = vadd.f32 %v5349, %v5437
      %v5474 = vadd.f32 %v5350, %v5439
      %v5475 = vadd.f32 %v5351, %v5442
      %v5476 = vadd.f32 %v5352, %v5444
      %v5477 = vlaneseq
      %v5478 = vshrl.u32 %v5477, 7
      %v5479 = vsub.s32 6, %v5478
      %v5480 = vrot.slane %v380, %v5479
      %v5481 = vmul.f32 %v346, %v5480
      %v5482 = vmul.f32 %v347, %v5480
      %v5483 = vmul.f32 %v348, %v5480
      %v5484 = vmul.f32 %v349, %v5480
      %v5485 = vmul.f32 %v350, %v5480
      %v5486 = vmul.f32 %v351, %v5480
      %v5487 = vmul.f32 %v352, %v5480
      %v5488 = vmul.f32 %v353, %v5480
      %v5489 = vmul.f32 %v354, %v5480
      %v5490 = vmul.f32 %v355, %v5480
      %v5491 = vmul.f32 %v356, %v5480
      %v5492 = vmul.f32 %v357, %v5480
      %v5493 = vmul.f32 %v358, %v5480
      %v5494 = vmul.f32 %v359, %v5480
      %v5495 = vmul.f32 %v360, %v5480
      %v5496 = vmul.f32 %v361, %v5480
      %v5497 = vmul.f32 %v362, %v5480
      %v5498 = vmul.f32 %v363, %v5480
      %v5499 = vmul.f32 %v364, %v5480
      %v5500 = vmul.f32 %v365, %v5480
      %v5501 = vmul.f32 %v366, %v5480
      %v5502 = vmul.f32 %v367, %v5480
      %v5503 = vmul.f32 %v368, %v5480
      %v5504 = vmul.f32 %v369, %v5480
      %v5529 = vrot.slane %v5481, 6
      %v5530 = vrot.slane %v5482, 6
      %v5531 = vsel %vm5032, %v5529, %v5530
      %v5532 = vrot.slane %v5483, 6
      %v5533 = vsel %vm5032, %v5530, %v5532
      %v5534 = vrot.slane %v5484, 6
      %v5535 = vrot.slane %v5485, 6
      %v5536 = vsel %vm5032, %v5534, %v5535
      %v5537 = vrot.slane %v5486, 6
      %v5538 = vsel %vm5032, %v5535, %v5537
      %v5539 = vrot.slane %v5487, 6
      %v5540 = vrot.slane %v5488, 6
      %v5541 = vsel %vm5032, %v5539, %v5540
      %v5542 = vrot.slane %v5489, 6
      %v5543 = vsel %vm5032, %v5540, %v5542
      %v5544 = vrot.slane %v5490, 6
      %v5545 = vrot.slane %v5491, 6
      %v5546 = vsel %vm5032, %v5544, %v5545
      %v5547 = vrot.slane %v5492, 6
      %v5548 = vsel %vm5032, %v5545, %v5547
      %v5549 = vrot.slane %v5493, 6
      %v5550 = vrot.slane %v5494, 6
      %v5551 = vsel %vm5032, %v5549, %v5550
      %v5552 = vrot.slane %v5495, 6
      %v5553 = vsel %vm5032, %v5550, %v5552
      %v5554 = vrot.slane %v5496, 6
      %v5555 = vrot.slane %v5497, 6
      %v5556 = vsel %vm5032, %v5554, %v5555
      %v5557 = vrot.slane %v5498, 6
      %v5558 = vsel %vm5032, %v5555, %v5557
      %v5559 = vrot.slane %v5499, 6
      %v5560 = vrot.slane %v5500, 6
      %v5561 = vsel %vm5032, %v5559, %v5560
      %v5562 = vrot.slane %v5501, 6
      %v5563 = vsel %vm5032, %v5560, %v5562
      %v5564 = vrot.slane %v5502, 6
      %v5565 = vrot.slane %v5503, 6
      %v5566 = vsel %vm5032, %v5564, %v5565
      %v5567 = vrot.slane %v5504, 6
      %v5568 = vsel %vm5032, %v5565, %v5567
      %v5585 = vadd.f32 %v5461, %v5531
      %v5586 = vadd.f32 %v5462, %v5533
      %v5587 = vadd.f32 %v5463, %v5536
      %v5588 = vadd.f32 %v5464, %v5538
      %v5589 = vadd.f32 %v5465, %v5541
      %v5590 = vadd.f32 %v5466, %v5543
      %v5591 = vadd.f32 %v5467, %v5546
      %v5592 = vadd.f32 %v5468, %v5548
      %v5593 = vadd.f32 %v5469, %v5551
      %v5594 = vadd.f32 %v5470, %v5553
      %v5595 = vadd.f32 %v5471, %v5556
      %v5596 = vadd.f32 %v5472, %v5558
      %v5597 = vadd.f32 %v5473, %v5561
      %v5598 = vadd.f32 %v5474, %v5563
      %v5599 = vadd.f32 %v5475, %v5566
      %v5600 = vadd.f32 %v5476, %v5568
      %v5601 = vlaneseq
      %v5602 = vshrl.u32 %v5601, 7
      %v5603 = vsub.s32 6, %v5602
      %v5604 = vrot.slane %v381, %v5603
      %v5605 = vmul.f32 %v349, %v5604
      %v5606 = vmul.f32 %v350, %v5604
      %v5607 = vmul.f32 %v351, %v5604
      %v5608 = vmul.f32 %v352, %v5604
      %v5609 = vmul.f32 %v353, %v5604
      %v5610 = vmul.f32 %v354, %v5604
      %v5611 = vmul.f32 %v355, %v5604
      %v5612 = vmul.f32 %v356, %v5604
      %v5613 = vmul.f32 %v357, %v5604
      %v5614 = vmul.f32 %v358, %v5604
      %v5615 = vmul.f32 %v359, %v5604
      %v5616 = vmul.f32 %v360, %v5604
      %v5617 = vmul.f32 %v361, %v5604
      %v5618 = vmul.f32 %v362, %v5604
      %v5619 = vmul.f32 %v363, %v5604
      %v5620 = vmul.f32 %v364, %v5604
      %v5621 = vmul.f32 %v365, %v5604
      %v5622 = vmul.f32 %v366, %v5604
      %v5623 = vmul.f32 %v367, %v5604
      %v5624 = vmul.f32 %v368, %v5604
      %v5625 = vmul.f32 %v369, %v5604
      %v5626 = vmul.f32 %v370, %v5604
      %v5627 = vmul.f32 %v371, %v5604
      %v5628 = vmul.f32 %v372, %v5604
      %v5653 = vrot.slane %v5605, 6
      %v5654 = vrot.slane %v5606, 6
      %v5655 = vsel %vm5032, %v5653, %v5654
      %v5656 = vrot.slane %v5607, 6
      %v5657 = vsel %vm5032, %v5654, %v5656
      %v5658 = vrot.slane %v5608, 6
      %v5659 = vrot.slane %v5609, 6
      %v5660 = vsel %vm5032, %v5658, %v5659
      %v5661 = vrot.slane %v5610, 6
      %v5662 = vsel %vm5032, %v5659, %v5661
      %v5663 = vrot.slane %v5611, 6
      %v5664 = vrot.slane %v5612, 6
      %v5665 = vsel %vm5032, %v5663, %v5664
      %v5666 = vrot.slane %v5613, 6
      %v5667 = vsel %vm5032, %v5664, %v5666
      %v5668 = vrot.slane %v5614, 6
      %v5669 = vrot.slane %v5615, 6
      %v5670 = vsel %vm5032, %v5668, %v5669
      %v5671 = vrot.slane %v5616, 6
      %v5672 = vsel %vm5032, %v5669, %v5671
      %v5673 = vrot.slane %v5617, 6
      %v5674 = vrot.slane %v5618, 6
      %v5675 = vsel %vm5032, %v5673, %v5674
      %v5676 = vrot.slane %v5619, 6
      %v5677 = vsel %vm5032, %v5674, %v5676
      %v5678 = vrot.slane %v5620, 6
      %v5679 = vrot.slane %v5621, 6
      %v5680 = vsel %vm5032, %v5678, %v5679
      %v5681 = vrot.slane %v5622, 6
      %v5682 = vsel %vm5032, %v5679, %v5681
      %v5683 = vrot.slane %v5623, 6
      %v5684 = vrot.slane %v5624, 6
      %v5685 = vsel %vm5032, %v5683, %v5684
      %v5686 = vrot.slane %v5625, 6
      %v5687 = vsel %vm5032, %v5684, %v5686
      %v5688 = vrot.slane %v5626, 6
      %v5689 = vrot.slane %v5627, 6
      %v5690 = vsel %vm5032, %v5688, %v5689
      %v5691 = vrot.slane %v5628, 6
      %v5692 = vsel %vm5032, %v5689, %v5691
      %v5709 = vadd.f32 %v5585, %v5655
      %v5710 = vadd.f32 %v5586, %v5657
      %v5711 = vadd.f32 %v5587, %v5660
      %v5712 = vadd.f32 %v5588, %v5662
      %v5713 = vadd.f32 %v5589, %v5665
      %v5714 = vadd.f32 %v5590, %v5667
      %v5715 = vadd.f32 %v5591, %v5670
      %v5716 = vadd.f32 %v5592, %v5672
      %v5717 = vadd.f32 %v5593, %v5675
      %v5718 = vadd.f32 %v5594, %v5677
      %v5719 = vadd.f32 %v5595, %v5680
      %v5720 = vadd.f32 %v5596, %v5682
      %v5721 = vadd.f32 %v5597, %v5685
      %v5722 = vadd.f32 %v5598, %v5687
      %v5723 = vadd.f32 %v5599, %v5690
      %v5724 = vadd.f32 %v5600, %v5692
      %v5725 = vlaneseq
      %v5726 = vshrl.u32 %v5725, 7
      %v5727 = vsub.s32 6, %v5726
      %v5728 = vrot.slane %v382, %v5727
      %v5729 = vmul.f32 %v352, %v5728
      %v5730 = vmul.f32 %v353, %v5728
      %v5731 = vmul.f32 %v354, %v5728
      %v5732 = vmul.f32 %v355, %v5728
      %v5733 = vmul.f32 %v356, %v5728
      %v5734 = vmul.f32 %v357, %v5728
      %v5735 = vmul.f32 %v358, %v5728
      %v5736 = vmul.f32 %v359, %v5728
      %v5737 = vmul.f32 %v360, %v5728
      %v5738 = vmul.f32 %v361, %v5728
      %v5739 = vmul.f32 %v362, %v5728
      %v5740 = vmul.f32 %v363, %v5728
      %v5741 = vmul.f32 %v364, %v5728
      %v5742 = vmul.f32 %v365, %v5728
      %v5743 = vmul.f32 %v366, %v5728
      %v5744 = vmul.f32 %v367, %v5728
      %v5745 = vmul.f32 %v368, %v5728
      %v5746 = vmul.f32 %v369, %v5728
      %v5747 = vmul.f32 %v370, %v5728
      %v5748 = vmul.f32 %v371, %v5728
      %v5749 = vmul.f32 %v372, %v5728
      %v5750 = vmul.f32 %v373, %v5728
      %v5751 = vmul.f32 %v374, %v5728
      %v5752 = vmul.f32 %v375, %v5728
      %v5777 = vrot.slane %v5729, 6
      %v5778 = vrot.slane %v5730, 6
      %v5779 = vsel %vm5032, %v5777, %v5778
      %v5780 = vrot.slane %v5731, 6
      %v5781 = vsel %vm5032, %v5778, %v5780
      %v5782 = vrot.slane %v5732, 6
      %v5783 = vrot.slane %v5733, 6
      %v5784 = vsel %vm5032, %v5782, %v5783
      %v5785 = vrot.slane %v5734, 6
      %v5786 = vsel %vm5032, %v5783, %v5785
      %v5787 = vrot.slane %v5735, 6
      %v5788 = vrot.slane %v5736, 6
      %v5789 = vsel %vm5032, %v5787, %v5788
      %v5790 = vrot.slane %v5737, 6
      %v5791 = vsel %vm5032, %v5788, %v5790
      %v5792 = vrot.slane %v5738, 6
      %v5793 = vrot.slane %v5739, 6
      %v5794 = vsel %vm5032, %v5792, %v5793
      %v5795 = vrot.slane %v5740, 6
      %v5796 = vsel %vm5032, %v5793, %v5795
      %v5797 = vrot.slane %v5741, 6
      %v5798 = vrot.slane %v5742, 6
      %v5799 = vsel %vm5032, %v5797, %v5798
      %v5800 = vrot.slane %v5743, 6
      %v5801 = vsel %vm5032, %v5798, %v5800
      %v5802 = vrot.slane %v5744, 6
      %v5803 = vrot.slane %v5745, 6
      %v5804 = vsel %vm5032, %v5802, %v5803
      %v5805 = vrot.slane %v5746, 6
      %v5806 = vsel %vm5032, %v5803, %v5805
      %v5807 = vrot.slane %v5747, 6
      %v5808 = vrot.slane %v5748, 6
      %v5809 = vsel %vm5032, %v5807, %v5808
      %v5810 = vrot.slane %v5749, 6
      %v5811 = vsel %vm5032, %v5808, %v5810
      %v5812 = vrot.slane %v5750, 6
      %v5813 = vrot.slane %v5751, 6
      %v5814 = vsel %vm5032, %v5812, %v5813
      %v5815 = vrot.slane %v5752, 6
      %v5816 = vsel %vm5032, %v5813, %v5815
      %v5833 = vadd.f32 %v5709, %v5779
      %v5834 = vadd.f32 %v5710, %v5781
      %v5835 = vadd.f32 %v5711, %v5784
      %v5836 = vadd.f32 %v5712, %v5786
      %v5837 = vadd.f32 %v5713, %v5789
      %v5838 = vadd.f32 %v5714, %v5791
      %v5839 = vadd.f32 %v5715, %v5794
      %v5840 = vadd.f32 %v5716, %v5796
      %v5841 = vadd.f32 %v5717, %v5799
      %v5842 = vadd.f32 %v5718, %v5801
      %v5843 = vadd.f32 %v5719, %v5804
      %v5844 = vadd.f32 %v5720, %v5806
      %v5845 = vadd.f32 %v5721, %v5809
      %v5846 = vadd.f32 %v5722, %v5811
      %v5847 = vadd.f32 %v5723, %v5814
      %v5848 = vadd.f32 %v5724, %v5816
      %v5849 = vld [vmem:[%s2] sm:$0x1]
      %v5851 = vlaneseq
      %v5852 = vshrl.u32 %v5851, 7
      %v5853 = vsub.s32 0, %v5852
      %v5854 = vrot.slane %v5849, %v5853
      %v5856 = vadd.f32 %v5833, %v5854
      %v5857 = vadd.f32 %v5834, %v5854
      %v5858 = vadd.f32 %v5835, %v5854
      %v5859 = vadd.f32 %v5836, %v5854
      %v5860 = vadd.f32 %v5837, %v5854
      %v5861 = vadd.f32 %v5838, %v5854
      %v5862 = vadd.f32 %v5839, %v5854
      %v5863 = vadd.f32 %v5840, %v5854
      %v5864 = vadd.f32 %v5841, %v5854
      %v5865 = vadd.f32 %v5842, %v5854
      %v5866 = vadd.f32 %v5843, %v5854
      %v5867 = vadd.f32 %v5844, %v5854
      %v5868 = vadd.f32 %v5845, %v5854
      %v5869 = vadd.f32 %v5846, %v5854
      %v5870 = vadd.f32 %v5847, %v5854
      %v5871 = vadd.f32 %v5848, %v5854
      %vm5872 = vcmask 64512
      %v5873 = vsel %vm5872, %v5856, 0.0
      %5874 = vadd.xlane.f32.xlu0 %v5873
      %v5875 = vpop.xlane.xlu0 %5874
      %v5876 = vsel %vm5872, %v5857, 0.0
      %5877 = vadd.xlane.f32.xlu0 %v5876
      %v5878 = vpop.xlane.xlu0 %5877
      %v5879 = vsel %vm5872, %v5858, 0.0
      %5880 = vadd.xlane.f32.xlu0 %v5879
      %v5881 = vpop.xlane.xlu0 %5880
      %v5882 = vsel %vm5872, %v5859, 0.0
      %5883 = vadd.xlane.f32.xlu0 %v5882
      %v5884 = vpop.xlane.xlu0 %5883
      %v5885 = vsel %vm5872, %v5860, 0.0
      %5886 = vadd.xlane.f32.xlu0 %v5885
      %v5887 = vpop.xlane.xlu0 %5886
      %v5888 = vsel %vm5872, %v5861, 0.0
      %5889 = vadd.xlane.f32.xlu0 %v5888
      %v5890 = vpop.xlane.xlu0 %5889
      %v5891 = vsel %vm5872, %v5862, 0.0
      %5892 = vadd.xlane.f32.xlu0 %v5891
      %v5893 = vpop.xlane.xlu0 %5892
      %v5894 = vsel %vm5872, %v5863, 0.0
      %5895 = vadd.xlane.f32.xlu0 %v5894
      %v5896 = vpop.xlane.xlu0 %5895
      %v5897 = vsel %vm5872, %v5864, 0.0
      %5898 = vadd.xlane.f32.xlu0 %v5897
      %v5899 = vpop.xlane.xlu0 %5898
      %v5900 = vsel %vm5872, %v5865, 0.0
      %5901 = vadd.xlane.f32.xlu0 %v5900
      %v5902 = vpop.xlane.xlu0 %5901
      %v5903 = vsel %vm5872, %v5866, 0.0
      %5904 = vadd.xlane.f32.xlu0 %v5903
      %v5905 = vpop.xlane.xlu0 %5904
      %v5906 = vsel %vm5872, %v5867, 0.0
      %5907 = vadd.xlane.f32.xlu0 %v5906
      %v5908 = vpop.xlane.xlu0 %5907
      %v5909 = vsel %vm5872, %v5868, 0.0
      %5910 = vadd.xlane.f32.xlu0 %v5909
      %v5911 = vpop.xlane.xlu0 %5910
      %v5912 = vsel %vm5872, %v5869, 0.0
      %5913 = vadd.xlane.f32.xlu0 %v5912
      %v5914 = vpop.xlane.xlu0 %5913
      %v5915 = vsel %vm5872, %v5870, 0.0
      %5916 = vadd.xlane.f32.xlu0 %v5915
      %v5917 = vpop.xlane.xlu0 %5916
      %v5918 = vsel %vm5872, %v5871, 0.0
      %5919 = vadd.xlane.f32.xlu0 %v5918
      %v5920 = vpop.xlane.xlu0 %5919
      %v5921 = vrcp.pop 8.0
      %v5922 = vmul.f32 %v5875, %v5921
      %v5923 = vmul.f32 %v5878, %v5921
      %v5924 = vmul.f32 %v5881, %v5921
      %v5925 = vmul.f32 %v5884, %v5921
      %v5926 = vmul.f32 %v5887, %v5921
      %v5927 = vmul.f32 %v5890, %v5921
      %v5928 = vmul.f32 %v5893, %v5921
      %v5929 = vmul.f32 %v5896, %v5921
      %v5930 = vmul.f32 %v5899, %v5921
      %v5931 = vmul.f32 %v5902, %v5921
      %v5932 = vmul.f32 %v5905, %v5921
      %v5933 = vmul.f32 %v5908, %v5921
      %v5934 = vmul.f32 %v5911, %v5921
      %v5935 = vmul.f32 %v5914, %v5921
      %v5936 = vmul.f32 %v5917, %v5921
      %v5937 = vmul.f32 %v5920, %v5921
      %v5938 = vsub.f32 %v5856, %v5922
      %v5939 = vsub.f32 %v5857, %v5923
      %v5940 = vsub.f32 %v5858, %v5924
      %v5941 = vsub.f32 %v5859, %v5925
      %v5942 = vsub.f32 %v5860, %v5926
      %v5943 = vsub.f32 %v5861, %v5927
      %v5944 = vsub.f32 %v5862, %v5928
      %v5945 = vsub.f32 %v5863, %v5929
      %v5946 = vsub.f32 %v5864, %v5930
      %v5947 = vsub.f32 %v5865, %v5931
      %v5948 = vsub.f32 %v5866, %v5932
      %v5949 = vsub.f32 %v5867, %v5933
      %v5950 = vsub.f32 %v5868, %v5934
      %v5951 = vsub.f32 %v5869, %v5935
      %v5952 = vsub.f32 %v5870, %v5936
      %v5953 = vsub.f32 %v5871, %v5937
      %v5954 = vmul.f32 %v5938, %v5938
      %v5955 = vmul.f32 %v5939, %v5939
      %v5956 = vmul.f32 %v5940, %v5940
      %v5957 = vmul.f32 %v5941, %v5941
      %v5958 = vmul.f32 %v5942, %v5942
      %v5959 = vmul.f32 %v5943, %v5943
      %v5960 = vmul.f32 %v5944, %v5944
      %v5961 = vmul.f32 %v5945, %v5945
      %v5962 = vmul.f32 %v5946, %v5946
      %v5963 = vmul.f32 %v5947, %v5947
      %v5964 = vmul.f32 %v5948, %v5948
      %v5965 = vmul.f32 %v5949, %v5949
      %v5966 = vmul.f32 %v5950, %v5950
      %v5967 = vmul.f32 %v5951, %v5951
      %v5968 = vmul.f32 %v5952, %v5952
      %v5969 = vmul.f32 %v5953, %v5953
      %v5970 = vsel %vm5872, %v5954, 0.0
      %5971 = vadd.xlane.f32.xlu0 %v5970
      %v5972 = vpop.xlane.xlu0 %5971
      %v5973 = vsel %vm5872, %v5955, 0.0
      %5974 = vadd.xlane.f32.xlu0 %v5973
      %v5975 = vpop.xlane.xlu0 %5974
      %v5976 = vsel %vm5872, %v5956, 0.0
      %5977 = vadd.xlane.f32.xlu0 %v5976
      %v5978 = vpop.xlane.xlu0 %5977
      %v5979 = vsel %vm5872, %v5957, 0.0
      %5980 = vadd.xlane.f32.xlu0 %v5979
      %v5981 = vpop.xlane.xlu0 %5980
      %v5982 = vsel %vm5872, %v5958, 0.0
      %5983 = vadd.xlane.f32.xlu0 %v5982
      %v5984 = vpop.xlane.xlu0 %5983
      %v5985 = vsel %vm5872, %v5959, 0.0
      %5986 = vadd.xlane.f32.xlu0 %v5985
      %v5987 = vpop.xlane.xlu0 %5986
      %v5988 = vsel %vm5872, %v5960, 0.0
      %5989 = vadd.xlane.f32.xlu0 %v5988
      %v5990 = vpop.xlane.xlu0 %5989
      %v5991 = vsel %vm5872, %v5961, 0.0
      %5992 = vadd.xlane.f32.xlu0 %v5991
      %v5993 = vpop.xlane.xlu0 %5992
      %v5994 = vsel %vm5872, %v5962, 0.0
      %5995 = vadd.xlane.f32.xlu0 %v5994
      %v5996 = vpop.xlane.xlu0 %5995
      %v5997 = vsel %vm5872, %v5963, 0.0
      %5998 = vadd.xlane.f32.xlu0 %v5997
      %v5999 = vpop.xlane.xlu0 %5998
      %v6000 = vsel %vm5872, %v5964, 0.0
      %6001 = vadd.xlane.f32.xlu0 %v6000
      %v6002 = vpop.xlane.xlu0 %6001
      %v6003 = vsel %vm5872, %v5965, 0.0
      %6004 = vadd.xlane.f32.xlu0 %v6003
      %v6005 = vpop.xlane.xlu0 %6004
      %v6006 = vsel %vm5872, %v5966, 0.0
      %6007 = vadd.xlane.f32.xlu0 %v6006
      %v6008 = vpop.xlane.xlu0 %6007
      %v6009 = vsel %vm5872, %v5967, 0.0
      %6010 = vadd.xlane.f32.xlu0 %v6009
      %v6011 = vpop.xlane.xlu0 %6010
      %v6012 = vsel %vm5872, %v5968, 0.0
      %6013 = vadd.xlane.f32.xlu0 %v6012
      %v6014 = vpop.xlane.xlu0 %6013
      %v6015 = vsel %vm5872, %v5969, 0.0
      %6016 = vadd.xlane.f32.xlu0 %v6015
      %v6017 = vpop.xlane.xlu0 %6016
      %v6018 = vmul.f32 %v5972, %v5921
      %v6019 = vmul.f32 %v5975, %v5921
      %v6020 = vmul.f32 %v5978, %v5921
      %v6021 = vmul.f32 %v5981, %v5921
      %v6022 = vmul.f32 %v5984, %v5921
      %v6023 = vmul.f32 %v5987, %v5921
      %v6024 = vmul.f32 %v5990, %v5921
      %v6025 = vmul.f32 %v5993, %v5921
      %v6026 = vmul.f32 %v5996, %v5921
      %v6027 = vmul.f32 %v5999, %v5921
      %v6028 = vmul.f32 %v6002, %v5921
      %v6029 = vmul.f32 %v6005, %v5921
      %v6030 = vmul.f32 %v6008, %v5921
      %v6031 = vmul.f32 %v6011, %v5921
      %v6032 = vmul.f32 %v6014, %v5921
      %v6033 = vmul.f32 %v6017, %v5921
      %v6034 = vadd.f32 %v6018, 1e-05
      %v6035 = vadd.f32 %v6019, 1e-05
      %v6036 = vadd.f32 %v6020, 1e-05
      %v6037 = vadd.f32 %v6021, 1e-05
      %v6038 = vadd.f32 %v6022, 1e-05
      %v6039 = vadd.f32 %v6023, 1e-05
      %v6040 = vadd.f32 %v6024, 1e-05
      %v6041 = vadd.f32 %v6025, 1e-05
      %v6042 = vadd.f32 %v6026, 1e-05
      %v6043 = vadd.f32 %v6027, 1e-05
      %v6044 = vadd.f32 %v6028, 1e-05
      %v6045 = vadd.f32 %v6029, 1e-05
      %v6046 = vadd.f32 %v6030, 1e-05
      %v6047 = vadd.f32 %v6031, 1e-05
      %v6048 = vadd.f32 %v6032, 1e-05
      %v6049 = vadd.f32 %v6033, 1e-05
      %v6050 = vrsqrt.pop %v6034
      %v6051 = vrsqrt.pop %v6035
      %v6052 = vrsqrt.pop %v6036
      %v6053 = vrsqrt.pop %v6037
      %v6054 = vrsqrt.pop %v6038
      %v6055 = vrsqrt.pop %v6039
      %v6056 = vrsqrt.pop %v6040
      %v6057 = vrsqrt.pop %v6041
      %v6058 = vrsqrt.pop %v6042
      %v6059 = vrsqrt.pop %v6043
      %v6060 = vrsqrt.pop %v6044
      %v6061 = vrsqrt.pop %v6045
      %v6062 = vrsqrt.pop %v6046
      %v6063 = vrsqrt.pop %v6047
      %v6064 = vrsqrt.pop %v6048
      %v6065 = vrsqrt.pop %v6049
      %v6066 = vmul.f32 %v5938, %v6050
      %v6067 = vmul.f32 %v5939, %v6051
      %v6068 = vmul.f32 %v5940, %v6052
      %v6069 = vmul.f32 %v5941, %v6053
      %v6070 = vmul.f32 %v5942, %v6054
      %v6071 = vmul.f32 %v5943, %v6055
      %v6072 = vmul.f32 %v5944, %v6056
      %v6073 = vmul.f32 %v5945, %v6057
      %v6074 = vmul.f32 %v5946, %v6058
      %v6075 = vmul.f32 %v5947, %v6059
      %v6076 = vmul.f32 %v5948, %v6060
      %v6077 = vmul.f32 %v5949, %v6061
      %v6078 = vmul.f32 %v5950, %v6062
      %v6079 = vmul.f32 %v5951, %v6063
      %v6080 = vmul.f32 %v5952, %v6064
      %v6081 = vmul.f32 %v5953, %v6065
      %v6082 = vld [vmem:[%s3] sm:$0x1]
      %v6084 = vlaneseq
      %v6085 = vshrl.u32 %v6084, 7
      %v6086 = vsub.s32 0, %v6085
      %v6087 = vrot.slane %v6082, %v6086
      %v6089 = vmul.f32 %v6066, %v6087
      %v6090 = vmul.f32 %v6067, %v6087
      %v6091 = vmul.f32 %v6068, %v6087
      %v6092 = vmul.f32 %v6069, %v6087
      %v6093 = vmul.f32 %v6070, %v6087
      %v6094 = vmul.f32 %v6071, %v6087
      %v6095 = vmul.f32 %v6072, %v6087
      %v6096 = vmul.f32 %v6073, %v6087
      %v6097 = vmul.f32 %v6074, %v6087
      %v6098 = vmul.f32 %v6075, %v6087
      %v6099 = vmul.f32 %v6076, %v6087
      %v6100 = vmul.f32 %v6077, %v6087
      %v6101 = vmul.f32 %v6078, %v6087
      %v6102 = vmul.f32 %v6079, %v6087
      %v6103 = vmul.f32 %v6080, %v6087
      %v6104 = vmul.f32 %v6081, %v6087
      %v6105 = vld [vmem:[%s4] sm:$0x1]
      %v6107 = vlaneseq
      %v6108 = vshrl.u32 %v6107, 7
      %v6109 = vsub.s32 0, %v6108
      %v6110 = vrot.slane %v6105, %v6109
      %v6112 = vadd.f32 %v6089, %v6110
      %v6113 = vadd.f32 %v6090, %v6110
      %v6114 = vadd.f32 %v6091, %v6110
      %v6115 = vadd.f32 %v6092, %v6110
      %v6116 = vadd.f32 %v6093, %v6110
      %v6117 = vadd.f32 %v6094, %v6110
      %v6118 = vadd.f32 %v6095, %v6110
      %v6119 = vadd.f32 %v6096, %v6110
      %v6120 = vadd.f32 %v6097, %v6110
      %v6121 = vadd.f32 %v6098, %v6110
      %v6122 = vadd.f32 %v6099, %v6110
      %v6123 = vadd.f32 %v6100, %v6110
      %v6124 = vadd.f32 %v6101, %v6110
      %v6125 = vadd.f32 %v6102, %v6110
      %v6126 = vadd.f32 %v6103, %v6110
      %v6127 = vadd.f32 %v6104, %v6110
      %v6128 = vpack.c.bf16 %v6113, %v6112
      %v6129 = vpack.c.bf16 %v6115, %v6114
      %v6130 = vpack.c.bf16 %v6117, %v6116
      %v6131 = vpack.c.bf16 %v6119, %v6118
      %v6132 = vpack.c.bf16 %v6121, %v6120
      %v6133 = vpack.c.bf16 %v6123, %v6122
      %v6134 = vpack.c.bf16 %v6125, %v6124
      %v6135 = vpack.c.bf16 %v6127, %v6126
      %v6136 = vld [vmem:[%s5] sm:$0xf]
      %v6137 = vld [vmem:[%s6] sm:$0x1]
      %v6139 = vlaneseq
      %v6140 = vshrl.u32 %v6139, 7
      %v6141 = vsub.s32 0, %v6140
      %v6142 = vrot.slane %v6137, %v6141
      %v6145 = vsel %vm5872, %v6128, 0
      %v6148 = vsel %vm5872, %v6129, 0
      %v6151 = vsel %vm5872, %v6130, 0
      %v6154 = vsel %vm5872, %v6131, 0
      %v6157 = vsel %vm5872, %v6132, 0
      %v6160 = vsel %vm5872, %v6133, 0
      %v6163 = vsel %vm5872, %v6134, 0
      %v6166 = vsel %vm5872, %v6135, 0
      %v6169 = vsel %vm3294, %v6136, 0
      %6171 = vmatprep.subr.bf16.mxu0 0
      %6172 = vmatpush1.bf16.msra.mxu0 %v6169
      %6173 = vmatprep.subr.bf16.mxu0 0
      %6174 = vmatpush1.bf16.msra.mxu0 0
      %6175 = vmatprep.subr.bf16.mxu0 0
      %6176 = vmatpush1.bf16.msra.mxu0 0
      %6177 = vmatprep.subr.bf16.mxu0 0
      %6178 = vmatpush1.bf16.msra.mxu0 0
      %6179 = vmatprep.subr.bf16.mxu0 0
      %6180 = vmatpush1.bf16.msra.mxu0 0
      %6181 = vmatprep.subr.bf16.mxu0 0
      %6182 = vmatpush1.bf16.msra.mxu0 0
      %6183 = vmatprep.subr.bf16.mxu0 0
      %6184 = vmatpush1.bf16.msra.mxu0 0
      %6185 = vmatprep.subr.bf16.mxu0 0
      %6186 = vmatpush1.bf16.msra.mxu0 0
      %6187 = vmatprep.subr.bf16.mxu0 0
      %6188 = vmatpush1.bf16.msra.mxu0 0
      %6189 = vmatprep.subr.bf16.mxu0 0
      %6190 = vmatpush1.bf16.msra.mxu0 0
      %6191 = vmatprep.subr.bf16.mxu0 0
      %6192 = vmatpush1.bf16.msra.mxu0 0
      %6193 = vmatprep.subr.bf16.mxu0 0
      %6194 = vmatpush1.bf16.msra.mxu0 0
      %6195 = vmatprep.subr.bf16.mxu0 0
      %6196 = vmatpush1.bf16.msra.mxu0 0
      %6197 = vmatprep.subr.bf16.mxu0 0
      %6198 = vmatpush1.bf16.msra.mxu0 0
      %6199 = vmatprep.subr.bf16.mxu0 0
      %6200 = vmatpush1.bf16.msra.mxu0 0
      %6201 = vmatprep.subr.bf16.mxu0 0
      %6202 = vmatpush1.bf16.msra.mxu0 0
      %6203 = vmatprep.mubr.bf16.mxu0 0
      %6204 = vmatmul.mubr.bf16.gmra.mrb[0].mxu0 %v6145
      %v6205 = vpop.f32.mrb[0].mxu0
      %v6206 = vadd.f32 %v6142, %v6205
      %v6207 = vpop.f32.mrb[0].mxu0
      %v6208 = vpop.f32.mrb[0].mxu0
      %v6209 = vadd.f32 %v6142, %v6208
      %v6210 = vpop.f32.mrb[0].mxu0
      %6211 = vmatprep.mubr.bf16.mxu0 0
      %6212 = vmatmul.mubr.bf16.gmra.mrb[0].mxu0 %v6148
      %v6213 = vpop.f32.mrb[0].mxu0
      %v6214 = vadd.f32 %v6142, %v6213
      %v6215 = vpop.f32.mrb[0].mxu0
      %v6216 = vpop.f32.mrb[0].mxu0
      %v6217 = vadd.f32 %v6142, %v6216
      %v6218 = vpop.f32.mrb[0].mxu0
      %6219 = vmatprep.mubr.bf16.mxu0 0
      %6220 = vmatmul.mubr.bf16.gmra.mrb[0].mxu0 %v6151
      %v6221 = vpop.f32.mrb[0].mxu0
      %v6222 = vadd.f32 %v6142, %v6221
      %v6223 = vpop.f32.mrb[0].mxu0
      %v6224 = vpop.f32.mrb[0].mxu0
      %v6225 = vadd.f32 %v6142, %v6224
      %v6226 = vpop.f32.mrb[0].mxu0
      %6227 = vmatprep.mubr.bf16.mxu0 0
      %6228 = vmatmul.mubr.bf16.gmra.mrb[0].mxu0 %v6154
      %v6229 = vpop.f32.mrb[0].mxu0
      %v6230 = vadd.f32 %v6142, %v6229
      %v6231 = vpop.f32.mrb[0].mxu0
      %v6232 = vpop.f32.mrb[0].mxu0
      %v6233 = vadd.f32 %v6142, %v6232
      %v6234 = vpop.f32.mrb[0].mxu0
      %6235 = vmatprep.mubr.bf16.mxu0 0
      %6236 = vmatmul.mubr.bf16.gmra.mrb[0].mxu0 %v6157
      %v6237 = vpop.f32.mrb[0].mxu0
      %v6238 = vadd.f32 %v6142, %v6237
      %v6239 = vpop.f32.mrb[0].mxu0
      %v6240 = vpop.f32.mrb[0].mxu0
      %v6241 = vadd.f32 %v6142, %v6240
      %v6242 = vpop.f32.mrb[0].mxu0
      %6243 = vmatprep.mubr.bf16.mxu0 0
      %6244 = vmatmul.mubr.bf16.gmra.mrb[0].mxu0 %v6160
      %v6245 = vpop.f32.mrb[0].mxu0
      %v6246 = vadd.f32 %v6142, %v6245
      %v6247 = vpop.f32.mrb[0].mxu0
      %v6248 = vpop.f32.mrb[0].mxu0
      %v6249 = vadd.f32 %v6142, %v6248
      %v6250 = vpop.f32.mrb[0].mxu0
      %6251 = vmatprep.mubr.bf16.mxu0 0
      %6252 = vmatmul.mubr.bf16.gmra.mrb[0].mxu0 %v6163
      %v6253 = vpop.f32.mrb[0].mxu0
      %v6254 = vadd.f32 %v6142, %v6253
      %v6255 = vpop.f32.mrb[0].mxu0
      %v6256 = vpop.f32.mrb[0].mxu0
      %v6257 = vadd.f32 %v6142, %v6256
      %v6258 = vpop.f32.mrb[0].mxu0
      %6259 = vmatprep.mubr.bf16.mxu0 0
      %6260 = vmatmul.mubr.bf16.gmra.mrb[0].mxu0 %v6166
      %v6261 = vpop.f32.mrb[0].mxu0
      %v6262 = vadd.f32 %v6142, %v6261
      %v6263 = vpop.f32.mrb[0].mxu0
      %v6264 = vpop.f32.mrb[0].mxu0
      %v6265 = vadd.f32 %v6142, %v6264
      %v6266 = vpop.f32.mrb[0].mxu0
      %6267 = vdwg.mxu0
      %v6268 = vmul.f32 %v6206, 0.5
      %v6269 = vmul.f32 %v6209, 0.5
      %v6270 = vmul.f32 %v6214, 0.5
      %v6271 = vmul.f32 %v6217, 0.5
      %v6272 = vmul.f32 %v6222, 0.5
      %v6273 = vmul.f32 %v6225, 0.5
      %v6274 = vmul.f32 %v6230, 0.5
      %v6275 = vmul.f32 %v6233, 0.5
      %v6276 = vmul.f32 %v6238, 0.5
      %v6277 = vmul.f32 %v6241, 0.5
      %v6278 = vmul.f32 %v6246, 0.5
      %v6279 = vmul.f32 %v6249, 0.5
      %v6280 = vmul.f32 %v6254, 0.5
      %v6281 = vmul.f32 %v6257, 0.5
      %v6282 = vmul.f32 %v6262, 0.5
      %v6283 = vmul.f32 %v6265, 0.5
      %v6284 = vrcp.pop 1.4142135
      %v6285 = vmul.f32 %v6206, %v6284
      %v6286 = vmul.f32 %v6209, %v6284
      %v6287 = vmul.f32 %v6214, %v6284
      %v6288 = vmul.f32 %v6217, %v6284
      %v6289 = vmul.f32 %v6222, %v6284
      %v6290 = vmul.f32 %v6225, %v6284
      %v6291 = vmul.f32 %v6230, %v6284
      %v6292 = vmul.f32 %v6233, %v6284
      %v6293 = vmul.f32 %v6238, %v6284
      %v6294 = vmul.f32 %v6241, %v6284
      %v6295 = vmul.f32 %v6246, %v6284
      %v6296 = vmul.f32 %v6249, %v6284
      %v6297 = vmul.f32 %v6254, %v6284
      %v6298 = vmul.f32 %v6257, %v6284
      %v6299 = vmul.f32 %v6262, %v6284
      %v6300 = vmul.f32 %v6265, %v6284
      %v6301 = verf.f32.pop %v6285
      %v6302 = verf.f32.pop %v6286
      %v6303 = verf.f32.pop %v6287
      %v6304 = verf.f32.pop %v6288
      %v6305 = verf.f32.pop %v6289
      %v6306 = verf.f32.pop %v6290
      %v6307 = verf.f32.pop %v6291
      %v6308 = verf.f32.pop %v6292
      %v6309 = verf.f32.pop %v6293
      %v6310 = verf.f32.pop %v6294
      %v6311 = verf.f32.pop %v6295
      %v6312 = verf.f32.pop %v6296
      %v6313 = verf.f32.pop %v6297
      %v6314 = verf.f32.pop %v6298
      %v6315 = verf.f32.pop %v6299
      %v6316 = verf.f32.pop %v6300
      %v6317 = vadd.f32 %v6301, 1.0
      %v6318 = vadd.f32 %v6302, 1.0
      %v6319 = vadd.f32 %v6303, 1.0
      %v6320 = vadd.f32 %v6304, 1.0
      %v6321 = vadd.f32 %v6305, 1.0
      %v6322 = vadd.f32 %v6306, 1.0
      %v6323 = vadd.f32 %v6307, 1.0
      %v6324 = vadd.f32 %v6308, 1.0
      %v6325 = vadd.f32 %v6309, 1.0
      %v6326 = vadd.f32 %v6310, 1.0
      %v6327 = vadd.f32 %v6311, 1.0
      %v6328 = vadd.f32 %v6312, 1.0
      %v6329 = vadd.f32 %v6313, 1.0
      %v6330 = vadd.f32 %v6314, 1.0
      %v6331 = vadd.f32 %v6315, 1.0
      %v6332 = vadd.f32 %v6316, 1.0
      %v6333 = vmul.f32 %v6268, %v6317
      %v6334 = vmul.f32 %v6269, %v6318
      %v6335 = vmul.f32 %v6270, %v6319
      %v6336 = vmul.f32 %v6271, %v6320
      %v6337 = vmul.f32 %v6272, %v6321
      %v6338 = vmul.f32 %v6273, %v6322
      %v6339 = vmul.f32 %v6274, %v6323
      %v6340 = vmul.f32 %v6275, %v6324
      %v6341 = vmul.f32 %v6276, %v6325
      %v6342 = vmul.f32 %v6277, %v6326
      %v6343 = vmul.f32 %v6278, %v6327
      %v6344 = vmul.f32 %v6279, %v6328
      %v6345 = vmul.f32 %v6280, %v6329
      %v6346 = vmul.f32 %v6281, %v6330
      %v6347 = vmul.f32 %v6282, %v6331
      %v6348 = vmul.f32 %v6283, %v6332
      %v6349 = vpack.c.bf16 %v6334, %v6333
      %v6350 = vpack.c.bf16 %v6336, %v6335
      %v6351 = vpack.c.bf16 %v6338, %v6337
      %v6352 = vpack.c.bf16 %v6340, %v6339
      %v6353 = vpack.c.bf16 %v6342, %v6341
      %v6354 = vpack.c.bf16 %v6344, %v6343
      %v6355 = vpack.c.bf16 %v6346, %v6345
      %v6356 = vpack.c.bf16 %v6348, %v6347
      %v6357 = vld [vmem:[%s7] sm:$0xf]
      %v6358 = vld [vmem:[%s7 + $0x4] sm:$0xf]
      %v6359 = vld [vmem:[%s7 + $0x8] sm:$0xf]
      %v6360 = vld [vmem:[%s7 + $0xc] sm:$0xf]
      %v6361 = vld [vmem:[%s8] sm:$0x1]
      %v6363 = vlaneseq
      %v6364 = vshrl.u32 %v6363, 7
      %v6365 = vsub.s32 0, %v6364
      %v6366 = vrot.slane %v6361, %v6365
      %v6372 = vunpack.c.l.b16 %v6357
      %v6373 = vunpack.c.l.b16 %v6358
      %v6374 = vunpack.c.l.b16 %v6359
      %v6375 = vunpack.c.l.b16 %v6360
      %v6376 = vpack.c.b16 %v6373, %v6372
      %v6377 = vpack.c.b16 %v6375, %v6374
      %vm6380 = vcmask 261120
      %v6382 = vsel %vm6380, %v6349, 0
      %v6385 = vsel %vm6380, %v6350, 0
      %v6388 = vsel %vm6380, %v6351, 0
      %v6391 = vsel %vm6380, %v6352, 0
      %v6394 = vsel %vm6380, %v6353, 0
      %v6397 = vsel %vm6380, %v6354, 0
      %v6400 = vsel %vm6380, %v6355, 0
      %v6403 = vsel %vm6380, %v6356, 0
      %6405 = vmatprep.subr.bf16.mxu0 0
      %6406 = vmatpush1.bf16.msra.mxu0 %v6376
      %6407 = vmatprep.subr.bf16.mxu0 0
      %6408 = vmatpush1.bf16.msra.mxu0 %v6377
      %6409 = vmatprep.subr.bf16.mxu0 0
      %6410 = vmatpush1.bf16.msra.mxu0 0
      %6411 = vmatprep.subr.bf16.mxu0 0
      %6412 = vmatpush1.bf16.msra.mxu0 0
      %6413 = vmatprep.subr.bf16.mxu0 0
      %6414 = vmatpush1.bf16.msra.mxu0 0
      %6415 = vmatprep.subr.bf16.mxu0 0
      %6416 = vmatpush1.bf16.msra.mxu0 0
      %6417 = vmatprep.subr.bf16.mxu0 0
      %6418 = vmatpush1.bf16.msra.mxu0 0
      %6419 = vmatprep.subr.bf16.mxu0 0
      %6420 = vmatpush1.bf16.msra.mxu0 0
      %6421 = vmatprep.subr.bf16.mxu0 0
      %6422 = vmatpush1.bf16.msra.mxu0 0
      %6423 = vmatprep.subr.bf16.mxu0 0
      %6424 = vmatpush1.bf16.msra.mxu0 0
      %6425 = vmatprep.subr.bf16.mxu0 0
      %6426 = vmatpush1.bf16.msra.mxu0 0
      %6427 = vmatprep.subr.bf16.mxu0 0
      %6428 = vmatpush1.bf16.msra.mxu0 0
      %6429 = vmatprep.subr.bf16.mxu0 0
      %6430 = vmatpush1.bf16.msra.mxu0 0
      %6431 = vmatprep.subr.bf16.mxu0 0
      %6432 = vmatpush1.bf16.msra.mxu0 0
      %6433 = vmatprep.subr.bf16.mxu0 0
      %6434 = vmatpush1.bf16.msra.mxu0 0
      %6435 = vmatprep.subr.bf16.mxu0 0
      %6436 = vmatpush1.bf16.msra.mxu0 0
      %6437 = vmatprep.mubr.bf16.mxu0 0
      %6438 = vmatmul.mubr.bf16.gmra.mrb[0].mxu0 %v6382
      %v6439 = vpop.f32.mrb[0].mxu0
      %v6440 = vadd.f32 %v6366, %v6439
      %v6441 = vpop.f32.mrb[0].mxu0
      %v6442 = vpop.f32.mrb[0].mxu0
      %v6443 = vadd.f32 %v6366, %v6442
      %v6444 = vpop.f32.mrb[0].mxu0
      %6445 = vmatprep.mubr.bf16.mxu0 0
      %6446 = vmatmul.mubr.bf16.gmra.mrb[0].mxu0 %v6385
      %v6447 = vpop.f32.mrb[0].mxu0
      %v6448 = vadd.f32 %v6366, %v6447
      %v6449 = vpop.f32.mrb[0].mxu0
      %v6450 = vpop.f32.mrb[0].mxu0
      %v6451 = vadd.f32 %v6366, %v6450
      %v6452 = vpop.f32.mrb[0].mxu0
      %6453 = vmatprep.mubr.bf16.mxu0 0
      %6454 = vmatmul.mubr.bf16.gmra.mrb[0].mxu0 %v6388
      %v6455 = vpop.f32.mrb[0].mxu0
      %v6456 = vadd.f32 %v6366, %v6455
      %v6457 = vpop.f32.mrb[0].mxu0
      %v6458 = vpop.f32.mrb[0].mxu0
      %v6459 = vadd.f32 %v6366, %v6458
      %v6460 = vpop.f32.mrb[0].mxu0
      %6461 = vmatprep.mubr.bf16.mxu0 0
      %6462 = vmatmul.mubr.bf16.gmra.mrb[0].mxu0 %v6391
      %v6463 = vpop.f32.mrb[0].mxu0
      %v6464 = vadd.f32 %v6366, %v6463
      %v6465 = vpop.f32.mrb[0].mxu0
      %v6466 = vpop.f32.mrb[0].mxu0
      %v6467 = vadd.f32 %v6366, %v6466
      %v6468 = vpop.f32.mrb[0].mxu0
      %6469 = vmatprep.mubr.bf16.mxu0 0
      %6470 = vmatmul.mubr.bf16.gmra.mrb[0].mxu0 %v6394
      %v6471 = vpop.f32.mrb[0].mxu0
      %v6472 = vadd.f32 %v6366, %v6471
      %v6473 = vpop.f32.mrb[0].mxu0
      %v6474 = vpop.f32.mrb[0].mxu0
      %v6475 = vadd.f32 %v6366, %v6474
      %v6476 = vpop.f32.mrb[0].mxu0
      %6477 = vmatprep.mubr.bf16.mxu0 0
      %6478 = vmatmul.mubr.bf16.gmra.mrb[0].mxu0 %v6397
      %v6479 = vpop.f32.mrb[0].mxu0
      %v6480 = vadd.f32 %v6366, %v6479
      %v6481 = vpop.f32.mrb[0].mxu0
      %v6482 = vpop.f32.mrb[0].mxu0
      %v6483 = vadd.f32 %v6366, %v6482
      %v6484 = vpop.f32.mrb[0].mxu0
      %6485 = vmatprep.mubr.bf16.mxu0 0
      %6486 = vmatmul.mubr.bf16.gmra.mrb[0].mxu0 %v6400
      %v6487 = vpop.f32.mrb[0].mxu0
      %v6488 = vadd.f32 %v6366, %v6487
      %v6489 = vpop.f32.mrb[0].mxu0
      %v6490 = vpop.f32.mrb[0].mxu0
      %v6491 = vadd.f32 %v6366, %v6490
      %v6492 = vpop.f32.mrb[0].mxu0
      %6493 = vmatprep.mubr.bf16.mxu0 0
      %6494 = vmatmul.mubr.bf16.gmra.mrb[0].mxu0 %v6403
      %v6495 = vpop.f32.mrb[0].mxu0
      %v6496 = vadd.f32 %v6366, %v6495
      %v6497 = vpop.f32.mrb[0].mxu0
      %v6498 = vpop.f32.mrb[0].mxu0
      %v6499 = vadd.f32 %v6366, %v6498
      %v6500 = vpop.f32.mrb[0].mxu0
      %6501 = vdwg.mxu0
      %v6518 = vrot.slane %v6440, 5
      %v6519 = vrot.slane %v6443, 5
      %v6520 = vsel %vm4163, %v6518, %v6519
      %v6521 = vrot.slane %v6448, 5
      %v6522 = vrot.slane %v6451, 5
      %v6523 = vsel %vm4163, %v6521, %v6522
      %v6524 = vrot.slane %v6456, 5
      %v6525 = vrot.slane %v6459, 5
      %v6526 = vsel %vm4163, %v6524, %v6525
      %v6527 = vrot.slane %v6464, 5
      %v6528 = vrot.slane %v6467, 5
      %v6529 = vsel %vm4163, %v6527, %v6528
      %v6530 = vrot.slane %v6472, 5
      %v6531 = vrot.slane %v6475, 5
      %v6532 = vsel %vm4163, %v6530, %v6531
      %v6533 = vrot.slane %v6480, 5
      %v6534 = vrot.slane %v6483, 5
      %v6535 = vsel %vm4163, %v6533, %v6534
      %v6536 = vrot.slane %v6488, 5
      %v6537 = vrot.slane %v6491, 5
      %v6538 = vsel %vm4163, %v6536, %v6537
      %v6539 = vrot.slane %v6496, 5
      %v6540 = vrot.slane %v6499, 5
      %v6541 = vsel %vm4163, %v6539, %v6540
      %v6566 = vadd.f32 %v343, %v6518
      %v6567 = vadd.f32 %v344, %v6520
      %v6568 = vadd.f32 %v345, %v6519
      %v6569 = vadd.f32 %v346, %v6521
      %v6570 = vadd.f32 %v347, %v6523
      %v6571 = vadd.f32 %v348, %v6522
      %v6572 = vadd.f32 %v349, %v6524
      %v6573 = vadd.f32 %v350, %v6526
      %v6574 = vadd.f32 %v351, %v6525
      %v6575 = vadd.f32 %v352, %v6527
      %v6576 = vadd.f32 %v353, %v6529
      %v6577 = vadd.f32 %v354, %v6528
      %v6578 = vadd.f32 %v355, %v6530
      %v6579 = vadd.f32 %v356, %v6532
      %v6580 = vadd.f32 %v357, %v6531
      %v6581 = vadd.f32 %v358, %v6533
      %v6582 = vadd.f32 %v359, %v6535
      %v6583 = vadd.f32 %v360, %v6534
      %v6584 = vadd.f32 %v361, %v6536
      %v6585 = vadd.f32 %v362, %v6538
      %v6586 = vadd.f32 %v363, %v6537
      %v6587 = vadd.f32 %v364, %v6539
      %v6588 = vadd.f32 %v365, %v6541
      %v6589 = vadd.f32 %v366, %v6540
      %vm6590 = vcmask 64515
      %6591 = vst.msk [vmem:[%s332 - $0x3] sm:$0xf8] %vm6590, %v6566
      %6592 = vst.msk [vmem:[%s332 + $0x5] sm:$0xff] %vm5872, %v6567
      %vm6593 = vcmask 59392
      %6594 = vst.msk [vmem:[%s332 + $0xd] sm:$0x7] %vm6593, %v6568
      %6595 = vst.msk [vmem:[%s332 + $0xd] sm:$0xf8] %vm6590, %v6569
      %6596 = vst.msk [vmem:[%s332 + $0x15] sm:$0xff] %vm5872, %v6570
      %6597 = vst.msk [vmem:[%s332 + $0x1d] sm:$0x7] %vm6593, %v6571
      %6598 = vst.msk [vmem:[%s332 + $0x1d] sm:$0xf8] %vm6590, %v6572
      %6599 = vst.msk [vmem:[%s332 + $0x25] sm:$0xff] %vm5872, %v6573
      %6600 = vst.msk [vmem:[%s332 + $0x2d] sm:$0x7] %vm6593, %v6574
      %6601 = vst.msk [vmem:[%s332 + $0x2d] sm:$0xf8] %vm6590, %v6575
      %6602 = vst.msk [vmem:[%s332 + $0x35] sm:$0xff] %vm5872, %v6576
      %6603 = vst.msk [vmem:[%s332 + $0x3d] sm:$0x7] %vm6593, %v6577
      %6604 = vst.msk [vmem:[%s332 + $0x3d] sm:$0xf8] %vm6590, %v6578
      %6605 = vst.msk [vmem:[%s332 + $0x45] sm:$0xff] %vm5872, %v6579
      %6606 = vst.msk [vmem:[%s332 + $0x4d] sm:$0x7] %vm6593, %v6580
      %6607 = vst.msk [vmem:[%s332 + $0x4d] sm:$0xf8] %vm6590, %v6581
      %6608 = vst.msk [vmem:[%s332 + $0x55] sm:$0xff] %vm5872, %v6582
      %6609 = vst.msk [vmem:[%s332 + $0x5d] sm:$0x7] %vm6593, %v6583
      %6610 = vst.msk [vmem:[%s332 + $0x5d] sm:$0xf8] %vm6590, %v6584
      %6611 = vst.msk [vmem:[%s332 + $0x65] sm:$0xff] %vm5872, %v6585
      %6612 = vst.msk [vmem:[%s332 + $0x6d] sm:$0x7] %vm6593, %v6586
      %6613 = vst.msk [vmem:[%s332 + $0x6d] sm:$0xf8] %vm6590, %v6587
      %6614 = vst.msk [vmem:[%s332 + $0x75] sm:$0xff] %vm5872, %v6588
      %6615 = vst.msk [vmem:[%s332 + $0x7d] sm:$0x7] %vm6593, %v6589
      %p6616 = scmp.lt.s32.totalorder %s20, 3
      %s6617 = scalar_select %p6616, %s20, 3
      %s6618 = smul.addr %s6617, 16
      %s6619 = smul.addr %s6618, 8
      %s6620 = scalar_lea.vmem %s9, %s6619
      // Predicated region
      $region57: #{tpu_custom_call.1} parent=55 // pred_check
        %p6621 = pneg %p232
      $region58: #{tpu_custom_call.1} parent=55 // pred_check_branch
        %6623 = sbr.rel (%p6621) target = $region60
      $region59: #{tpu_custom_call.1} parent=55 // pred_region
        _
      $region60: #{tpu_custom_call.1} parent=55 // pred_fallthru
        _
    $region56: #{tpu_custom_call.1} parent=5 // pred_fallthru
      _
    %p6624 = scmp.le.s32.totalorder 2, %s15
    // Predicated region
    $region61: #{tpu_custom_call.1} parent=5 // pred_check
      %p6625 = pneg %p6624
    $region62: #{tpu_custom_call.1} parent=5 // pred_check_branch
      %6627 = sbr.rel (%p6625) target = $region64
    $region63: #{tpu_custom_call.1} parent=5 // pred_region
      %s6628 = ssub.s32 %s15, 2
      // Predicated region
      $region65: #{tpu_custom_call.1} parent=63 // pred_check
        %p6629 = pneg %p238
      $region66: #{tpu_custom_call.1} parent=63 // pred_check_branch
        %6631 = sbr.rel (%p6629) target = $region68
      $region67: #{tpu_custom_call.1} parent=63 // pred_region
        %p6632 = scmp.lt.s32.totalorder %s21, 3
        %s6633 = scalar_select %p6632, %s21, 3
        %s6634 = smul.addr %s6633, 16
        %s6635 = smul.addr %s6634, 8
        %s6636 = scalar_lea.vmem %s9, %s6635
      $region68: #{tpu_custom_call.1} parent=63 // pred_fallthru
        _
    $region64: #{tpu_custom_call.1} parent=5 // pred_fallthru
      _
  $region6: #{tpu_custom_call.1} parent=0 // loop_footer
    %s19 = sadd.s32 1, %s15
  $region7: #{tpu_custom_call.1} parent=0 // loop_footer_branch
    %14 = sbr.rel target = $region3
  $region8: #{tpu_custom_call.1} parent=0 // loop_exit
    _

</llo_original>
